<compile_context>
chip_gen: v6e
topology: v6e:2x2x1
jax: 0.10.0
libtpu: 0.0.40
codegen_flags: <defaults>
</compile_context>

<pallas_src>
import math

import jax
import jax.numpy as jnp
from jax import lax
from jax.experimental import pallas as pl
from jax.experimental.pallas import tpu as pltpu


def _layer_norm(x, gamma, beta, eps=1e-5):
    # x: (S, D); gamma/beta: (1, D). Matches torch.nn.LayerNorm (biased var, eps in sqrt).
    mu = jnp.mean(x, axis=-1, keepdims=True)
    xc = x - mu
    var = jnp.mean(xc * xc, axis=-1, keepdims=True)
    inv = lax.rsqrt(var + eps)
    return xc * inv * gamma + beta


def _make_transformer_head_kernel(n_heads):
    def kernel(x_ref,
               wqkv_ref, bqkv_ref, wo_ref, bo_ref,
               g1_ref, be1_ref,
               w1_ref, bb1_ref, w2_ref, bb2_ref,
               g2_ref, be2_ref,
               o_ref):
        # x_ref : (1, S, D)  one batch element
        # stacked per-layer params, weights already in (in, out) layout
        S = x_ref.shape[1]
        D = x_ref.shape[2]
        L = wqkv_ref.shape[0]
        dh = D // n_heads
        scale = 1.0 / math.sqrt(dh)

        h = x_ref[0]  # (S, D), stays VMEM/vreg resident across all layers

        for l in range(L):  # static unroll over layers
            # --- multi-head self-attention ---
            qkv = jnp.dot(h, wqkv_ref[l],
                          preferred_element_type=jnp.float32) + bqkv_ref[l]   # (S, 3D)
            q = qkv[:, 0:D]
            k = qkv[:, D:2 * D]
            v = qkv[:, 2 * D:3 * D]

            heads = []
            for hd in range(n_heads):  # static unroll over heads
                lo, hi = hd * dh, (hd + 1) * dh
                qh = q[:, lo:hi]
                kh = k[:, lo:hi]
                vh = v[:, lo:hi]
                # scores = qh @ kh^T (contract last dims — no explicit transpose)
                s = lax.dot_general(qh, kh, (((1,), (1,)), ((), ())),
                                    preferred_element_type=jnp.float32) * scale
                s = s - jnp.max(s, axis=-1, keepdims=True)
                p = jnp.exp(s)
                p = p / jnp.sum(p, axis=-1, keepdims=True)
                heads.append(jnp.dot(p, vh, preferred_element_type=jnp.float32))
            attn = jnp.concatenate(heads, axis=-1)                              # (S, D)
            attn = jnp.dot(attn, wo_ref[l],
                           preferred_element_type=jnp.float32) + bo_ref[l]
            h = _layer_norm(h + attn, g1_ref[l], be1_ref[l])

            # --- feed-forward (Linear -> ReLU -> Linear) ---
            ff = jnp.dot(h, w1_ref[l],
                         preferred_element_type=jnp.float32) + bb1_ref[l]        # (S, F)
            ff = jnp.maximum(ff, 0.0)
            ff = jnp.dot(ff, w2_ref[l],
                         preferred_element_type=jnp.float32) + bb2_ref[l]        # (S, D)
            h = _layer_norm(h + ff, g2_ref[l], be2_ref[l])

        # return x[:, -1, :]
        o_ref[0] = h[S - 1:S, :].astype(o_ref.dtype)

    return kernel


def transformer_head_forward(x, params, n_heads):
    """Pallas implementation of TransformerHead.forward.

    x: (B, S, D) float32.  params: dict of per-layer-stacked parameters in PyTorch
    (out, in) weight layout.  Returns (B, D) = transformer(x)[:, -1, :].
    """
    B, S, D = x.shape
    L = params["wqkv"].shape[0]
    F = params["w1"].shape[1]

    # Layout plumbing in the wrapper: weights -> (in, out), vectors -> (L, 1, dim).
    wqkv_t = jnp.transpose(params["wqkv"], (0, 2, 1))   # (L, D, 3D)
    wo_t = jnp.transpose(params["wo"], (0, 2, 1))       # (L, D, D)
    w1_t = jnp.transpose(params["w1"], (0, 2, 1))       # (L, D, F)
    w2_t = jnp.transpose(params["w2"], (0, 2, 1))       # (L, F, D)
    bqkv = params["bqkv"].reshape(L, 1, 3 * D)
    bo = params["bo"].reshape(L, 1, D)
    b1 = params["b1"].reshape(L, 1, F)
    b2 = params["b2"].reshape(L, 1, D)
    g1 = params["ln1_g"].reshape(L, 1, D)
    be1 = params["ln1_b"].reshape(L, 1, D)
    g2 = params["ln2_g"].reshape(L, 1, D)
    be2 = params["ln2_b"].reshape(L, 1, D)

    ins = (wqkv_t, bqkv, wo_t, bo, g1, be1, w1_t, b1, w2_t, b2, g2, be2)

    def full_spec(arr):
        nd = arr.ndim
        return pl.BlockSpec(arr.shape, lambda b, _nd=nd: (0,) * _nd)

    out = pl.pallas_call(
        _make_transformer_head_kernel(n_heads),
        out_shape=jax.ShapeDtypeStruct((B, 1, D), jnp.float32),
        grid=(B,),
        in_specs=[pl.BlockSpec((1, S, D), lambda b: (b, 0, 0))]
                 + [full_spec(a) for a in ins],
        out_specs=pl.BlockSpec((1, 1, D), lambda b: (b, 0, 0)),
        compiler_params=pltpu.CompilerParams(
            dimension_semantics=("parallel",)),
    )(x, *ins)
    return out[:, 0, :]


def transformer_head_ref(x, params, n_heads):
    """Pure-JAX reference (matches PyTorch post-LN encoder semantics, eval mode)."""
    B, S, D = x.shape
    L = params["wqkv"].shape[0]
    dh = D // n_heads
    scale = 1.0 / math.sqrt(dh)

    def ln(t, g, b, eps=1e-5):
        mu = jnp.mean(t, axis=-1, keepdims=True)
        var = jnp.mean((t - mu) ** 2, axis=-1, keepdims=True)
        return (t - mu) / jnp.sqrt(var + eps) * g + b

    h = x
    for l in range(L):
        qkv = jnp.einsum("bsd,ed->bse", h, params["wqkv"][l]) + params["bqkv"][l]
        q, k, v = jnp.split(qkv, 3, axis=-1)

        def split_heads(t):
            return t.reshape(B, S, n_heads, dh).transpose(0, 2, 1, 3)

        qh, kh, vh = split_heads(q), split_heads(k), split_heads(v)
        s = jnp.einsum("bhqd,bhkd->bhqk", qh, kh) * scale
        p = jax.nn.softmax(s, axis=-1)
        a = jnp.einsum("bhqk,bhkd->bhqd", p, vh)
        a = a.transpose(0, 2, 1, 3).reshape(B, S, D)
        a = jnp.einsum("bsd,ed->bse", a, params["wo"][l]) + params["bo"][l]
        h = ln(h + a, params["ln1_g"][l], params["ln1_b"][l])

        ff = jnp.einsum("bsd,fd->bsf", h, params["w1"][l]) + params["b1"][l]
        ff = jax.nn.relu(ff)
        ff = jnp.einsum("bsf,df->bsd", ff, params["w2"][l]) + params["b2"][l]
        h = ln(h + ff, params["ln2_g"][l], params["ln2_b"][l])
    return h[:, -1, :]


def init_params(key, d_model, n_layers, dim_feedforward=2048):
    """Deterministic synthetic init in PyTorch (out, in) weight layout."""
    D, F, L = d_model, dim_feedforward, n_layers
    keys = jax.random.split(key, 8)

    def u(k, shape, fan_in):
        bound = 1.0 / math.sqrt(float(fan_in))
        return jax.random.uniform(k, shape, jnp.float32, -bound, bound)

    return dict(
        wqkv=u(keys[0], (L, 3 * D, D), D),
        bqkv=u(keys[1], (L, 3 * D), D),
        wo=u(keys[2], (L, D, D), D),
        bo=u(keys[3], (L, D), D),
        ln1_g=jnp.ones((L, D), jnp.float32),
        ln1_b=jnp.zeros((L, D), jnp.float32),
        w1=u(keys[4], (L, F, D), D),
        b1=u(keys[5], (L, F), D),
        w2=u(keys[6], (L, D, F), F),
        b2=u(keys[7], (L, D), F),
        ln2_g=jnp.ones((L, D), jnp.float32),
        ln2_b=jnp.zeros((L, D), jnp.float32),
    )


if __name__ == "__main__":
    key = jax.random.PRNGKey(0)
    kx, kp = jax.random.split(key)

    B, S, D, H, L = 2, 8, 32, 4, 2      # batch, seq, d_model, n_heads, n_layers
    FF = 2048                           # nn.TransformerEncoderLayer default dim_feedforward

    x = jax.random.normal(kx, (B, S, D), jnp.float32)
    params = init_params(kp, D, L, FF)

    out = jax.block_until_ready(transformer_head_forward(x, params, H))
    assert out.shape == (B, D), out.shape

    ref = jax.block_until_ready(transformer_head_ref(x, params, H))
    assert jnp.allclose(out, ref, atol=2e-2, rtol=2e-2), \
        float(jnp.max(jnp.abs(out - ref)))

    print("KERNEL_OK")
</pallas_src>

<mosaic_0001>
module attributes {stable_mosaic.version = 11 : i64} {
  func.func @kernel(%arg0: i32, %arg1: memref<1x8x32xf32, #tpu.memory_space<vmem>>, %arg2: memref<2x32x96xf32, #tpu.memory_space<vmem>>, %arg3: memref<2x1x96xf32, #tpu.memory_space<vmem>>, %arg4: memref<2x32x32xf32, #tpu.memory_space<vmem>>, %arg5: memref<2x1x32xf32, #tpu.memory_space<vmem>>, %arg6: memref<2x1x32xf32, #tpu.memory_space<vmem>>, %arg7: memref<2x1x32xf32, #tpu.memory_space<vmem>>, %arg8: memref<2x32x2048xf32, #tpu.memory_space<vmem>>, %arg9: memref<2x1x2048xf32, #tpu.memory_space<vmem>>, %arg10: memref<2x2048x32xf32, #tpu.memory_space<vmem>>, %arg11: memref<2x1x32xf32, #tpu.memory_space<vmem>>, %arg12: memref<2x1x32xf32, #tpu.memory_space<vmem>>, %arg13: memref<2x1x32xf32, #tpu.memory_space<vmem>>, %arg14: memref<1x1x32xf32, #tpu.memory_space<vmem>>) attributes {dimension_semantics = [#tpu.dimension_semantics<parallel>], iteration_bounds = array<i64: 2>, scalar_prefetch = 0 : i64, scratch_operands = 0 : i64, tpu.core_type = #tpu.core_type<tc>, window_params = [{transform_indices = @transform_0, window_bounds = array<i64: 1, 8, 32>}, {pipeline_mode = #tpu.pipeline_mode<synchronous>, transform_indices = @transform_1, window_bounds = array<i64: 2, 32, 96>}, {pipeline_mode = #tpu.pipeline_mode<synchronous>, transform_indices = @transform_2, window_bounds = array<i64: 2, 1, 96>}, {pipeline_mode = #tpu.pipeline_mode<synchronous>, transform_indices = @transform_3, window_bounds = array<i64: 2, 32, 32>}, {pipeline_mode = #tpu.pipeline_mode<synchronous>, transform_indices = @transform_4, window_bounds = array<i64: 2, 1, 32>}, {pipeline_mode = #tpu.pipeline_mode<synchronous>, transform_indices = @transform_5, window_bounds = array<i64: 2, 1, 32>}, {pipeline_mode = #tpu.pipeline_mode<synchronous>, transform_indices = @transform_6, window_bounds = array<i64: 2, 1, 32>}, {pipeline_mode = #tpu.pipeline_mode<synchronous>, transform_indices = @transform_7, window_bounds = array<i64: 2, 32, 2048>}, {pipeline_mode = #tpu.pipeline_mode<synchronous>, transform_indices = @transform_8, window_bounds = array<i64: 2, 1, 2048>}, {pipeline_mode = #tpu.pipeline_mode<synchronous>, transform_indices = @transform_9, window_bounds = array<i64: 2, 2048, 32>}, {pipeline_mode = #tpu.pipeline_mode<synchronous>, transform_indices = @transform_10, window_bounds = array<i64: 2, 1, 32>}, {pipeline_mode = #tpu.pipeline_mode<synchronous>, transform_indices = @transform_11, window_bounds = array<i64: 2, 1, 32>}, {pipeline_mode = #tpu.pipeline_mode<synchronous>, transform_indices = @transform_12, window_bounds = array<i64: 2, 1, 32>}, {transform_indices = @transform_13, window_bounds = array<i64: 1, 1, 32>}]} {
    %c0 = arith.constant 0 : index
    %c0_0 = arith.constant 0 : index
    %c0_1 = arith.constant 0 : index
    %0 = vector.load %arg1[%c0, %c0_0, %c0_1] : memref<1x8x32xf32, #tpu.memory_space<vmem>>, vector<1x8x32xf32>
    %1 = vector.shape_cast %0 : vector<1x8x32xf32> to vector<8x32xf32>
    %c0_2 = arith.constant 0 : index
    %c0_3 = arith.constant 0 : index
    %c0_4 = arith.constant 0 : index
    %2 = vector.load %arg2[%c0_2, %c0_3, %c0_4] : memref<2x32x96xf32, #tpu.memory_space<vmem>>, vector<1x32x96xf32>
    %3 = vector.shape_cast %2 : vector<1x32x96xf32> to vector<32x96xf32>
    %cst = arith.constant dense<0.000000e+00> : vector<8x96xf32>
    %4 = tpu.matmul %1, %3, %cst {dimension_numbers = #tpu.dot_dimension_numbers<[1], [0], [0], [1], [0, 0, 1, 1], [], []>} : vector<8x32xf32>, vector<32x96xf32>, vector<8x96xf32> -> vector<8x96xf32>
    %c0_5 = arith.constant 0 : index
    %c0_6 = arith.constant 0 : index
    %c0_7 = arith.constant 0 : index
    %5 = vector.load %arg3[%c0_5, %c0_6, %c0_7] : memref<2x1x96xf32, #tpu.memory_space<vmem>>, vector<1x1x96xf32>
    %6 = vector.shape_cast %5 : vector<1x1x96xf32> to vector<1x96xf32>
    %7 = vector.broadcast %6 : vector<1x96xf32> to vector<8x96xf32>
    %8 = arith.addf %4, %7 : vector<8x96xf32>
    %9 = vector.extract_strided_slice %8 {offsets = [0, 0], sizes = [8, 32], strides = [1, 1]} : vector<8x96xf32> to vector<8x32xf32>
    %10 = vector.extract_strided_slice %8 {offsets = [0, 32], sizes = [8, 32], strides = [1, 1]} : vector<8x96xf32> to vector<8x32xf32>
    %11 = vector.extract_strided_slice %8 {offsets = [0, 64], sizes = [8, 32], strides = [1, 1]} : vector<8x96xf32> to vector<8x32xf32>
    %12 = vector.extract_strided_slice %9 {offsets = [0, 0], sizes = [8, 8], strides = [1, 1]} : vector<8x32xf32> to vector<8x8xf32>
    %13 = vector.extract_strided_slice %10 {offsets = [0, 0], sizes = [8, 8], strides = [1, 1]} : vector<8x32xf32> to vector<8x8xf32>
    %14 = vector.extract_strided_slice %11 {offsets = [0, 0], sizes = [8, 8], strides = [1, 1]} : vector<8x32xf32> to vector<8x8xf32>
    %cst_8 = arith.constant dense<0.000000e+00> : vector<8x8xf32>
    %15 = tpu.matmul %12, %13, %cst_8 {dimension_numbers = #tpu.dot_dimension_numbers<[1], [1], [0], [0], [0, 0, 1, 0], [], []>} : vector<8x8xf32>, vector<8x8xf32>, vector<8x8xf32> -> vector<8x8xf32>
    %cst_9 = arith.constant 0.353553385 : f32
    %16 = vector.broadcast %cst_9 : f32 to vector<8x8xf32>
    %17 = arith.mulf %15, %16 : vector<8x8xf32>
    %cst_10 = arith.constant dense<0xFF800000> : vector<8xf32>
    %18 = vector.multi_reduction <maximumf>, %17, %cst_10 [1] : vector<8x8xf32> to vector<8xf32>
    %19 = vector.shape_cast %18 : vector<8xf32> to vector<8x1xf32>
    %20 = vector.broadcast %19 : vector<8x1xf32> to vector<8x8xf32>
    %21 = arith.subf %17, %20 : vector<8x8xf32>
    %22 = math.exp %21 : vector<8x8xf32>
    %cst_11 = arith.constant dense<0.000000e+00> : vector<8xf32>
    %23 = vector.multi_reduction <add>, %22, %cst_11 [1] : vector<8x8xf32> to vector<8xf32>
    %24 = vector.shape_cast %23 : vector<8xf32> to vector<8x1xf32>
    %25 = vector.broadcast %24 : vector<8x1xf32> to vector<8x8xf32>
    %26 = arith.divf %22, %25 : vector<8x8xf32>
    %cst_12 = arith.constant dense<0.000000e+00> : vector<8x8xf32>
    %27 = tpu.matmul %26, %14, %cst_12 {dimension_numbers = #tpu.dot_dimension_numbers<[1], [0], [0], [1], [0, 0, 1, 1], [], []>} : vector<8x8xf32>, vector<8x8xf32>, vector<8x8xf32> -> vector<8x8xf32>
    %28 = vector.extract_strided_slice %9 {offsets = [0, 8], sizes = [8, 8], strides = [1, 1]} : vector<8x32xf32> to vector<8x8xf32>
    %29 = vector.extract_strided_slice %10 {offsets = [0, 8], sizes = [8, 8], strides = [1, 1]} : vector<8x32xf32> to vector<8x8xf32>
    %30 = vector.extract_strided_slice %11 {offsets = [0, 8], sizes = [8, 8], strides = [1, 1]} : vector<8x32xf32> to vector<8x8xf32>
    %cst_13 = arith.constant dense<0.000000e+00> : vector<8x8xf32>
    %31 = tpu.matmul %28, %29, %cst_13 {dimension_numbers = #tpu.dot_dimension_numbers<[1], [1], [0], [0], [0, 0, 1, 0], [], []>} : vector<8x8xf32>, vector<8x8xf32>, vector<8x8xf32> -> vector<8x8xf32>
    %cst_14 = arith.constant 0.353553385 : f32
    %32 = vector.broadcast %cst_14 : f32 to vector<8x8xf32>
    %33 = arith.mulf %31, %32 : vector<8x8xf32>
    %cst_15 = arith.constant dense<0xFF800000> : vector<8xf32>
    %34 = vector.multi_reduction <maximumf>, %33, %cst_15 [1] : vector<8x8xf32> to vector<8xf32>
    %35 = vector.shape_cast %34 : vector<8xf32> to vector<8x1xf32>
    %36 = vector.broadcast %35 : vector<8x1xf32> to vector<8x8xf32>
    %37 = arith.subf %33, %36 : vector<8x8xf32>
    %38 = math.exp %37 : vector<8x8xf32>
    %cst_16 = arith.constant dense<0.000000e+00> : vector<8xf32>
    %39 = vector.multi_reduction <add>, %38, %cst_16 [1] : vector<8x8xf32> to vector<8xf32>
    %40 = vector.shape_cast %39 : vector<8xf32> to vector<8x1xf32>
    %41 = vector.broadcast %40 : vector<8x1xf32> to vector<8x8xf32>
    %42 = arith.divf %38, %41 : vector<8x8xf32>
    %cst_17 = arith.constant dense<0.000000e+00> : vector<8x8xf32>
    %43 = tpu.matmul %42, %30, %cst_17 {dimension_numbers = #tpu.dot_dimension_numbers<[1], [0], [0], [1], [0, 0, 1, 1], [], []>} : vector<8x8xf32>, vector<8x8xf32>, vector<8x8xf32> -> vector<8x8xf32>
    %44 = vector.extract_strided_slice %9 {offsets = [0, 16], sizes = [8, 8], strides = [1, 1]} : vector<8x32xf32> to vector<8x8xf32>
    %45 = vector.extract_strided_slice %10 {offsets = [0, 16], sizes = [8, 8], strides = [1, 1]} : vector<8x32xf32> to vector<8x8xf32>
    %46 = vector.extract_strided_slice %11 {offsets = [0, 16], sizes = [8, 8], strides = [1, 1]} : vector<8x32xf32> to vector<8x8xf32>
    %cst_18 = arith.constant dense<0.000000e+00> : vector<8x8xf32>
    %47 = tpu.matmul %44, %45, %cst_18 {dimension_numbers = #tpu.dot_dimension_numbers<[1], [1], [0], [0], [0, 0, 1, 0], [], []>} : vector<8x8xf32>, vector<8x8xf32>, vector<8x8xf32> -> vector<8x8xf32>
    %cst_19 = arith.constant 0.353553385 : f32
    %48 = vector.broadcast %cst_19 : f32 to vector<8x8xf32>
    %49 = arith.mulf %47, %48 : vector<8x8xf32>
    %cst_20 = arith.constant dense<0xFF800000> : vector<8xf32>
    %50 = vector.multi_reduction <maximumf>, %49, %cst_20 [1] : vector<8x8xf32> to vector<8xf32>
    %51 = vector.shape_cast %50 : vector<8xf32> to vector<8x1xf32>
    %52 = vector.broadcast %51 : vector<8x1xf32> to vector<8x8xf32>
    %53 = arith.subf %49, %52 : vector<8x8xf32>
    %54 = math.exp %53 : vector<8x8xf32>
    %cst_21 = arith.constant dense<0.000000e+00> : vector<8xf32>
    %55 = vector.multi_reduction <add>, %54, %cst_21 [1] : vector<8x8xf32> to vector<8xf32>
    %56 = vector.shape_cast %55 : vector<8xf32> to vector<8x1xf32>
    %57 = vector.broadcast %56 : vector<8x1xf32> to vector<8x8xf32>
    %58 = arith.divf %54, %57 : vector<8x8xf32>
    %cst_22 = arith.constant dense<0.000000e+00> : vector<8x8xf32>
    %59 = tpu.matmul %58, %46, %cst_22 {dimension_numbers = #tpu.dot_dimension_numbers<[1], [0], [0], [1], [0, 0, 1, 1], [], []>} : vector<8x8xf32>, vector<8x8xf32>, vector<8x8xf32> -> vector<8x8xf32>
    %60 = vector.extract_strided_slice %9 {offsets = [0, 24], sizes = [8, 8], strides = [1, 1]} : vector<8x32xf32> to vector<8x8xf32>
    %61 = vector.extract_strided_slice %10 {offsets = [0, 24], sizes = [8, 8], strides = [1, 1]} : vector<8x32xf32> to vector<8x8xf32>
    %62 = vector.extract_strided_slice %11 {offsets = [0, 24], sizes = [8, 8], strides = [1, 1]} : vector<8x32xf32> to vector<8x8xf32>
    %cst_23 = arith.constant dense<0.000000e+00> : vector<8x8xf32>
    %63 = tpu.matmul %60, %61, %cst_23 {dimension_numbers = #tpu.dot_dimension_numbers<[1], [1], [0], [0], [0, 0, 1, 0], [], []>} : vector<8x8xf32>, vector<8x8xf32>, vector<8x8xf32> -> vector<8x8xf32>
    %cst_24 = arith.constant 0.353553385 : f32
    %64 = vector.broadcast %cst_24 : f32 to vector<8x8xf32>
    %65 = arith.mulf %63, %64 : vector<8x8xf32>
    %cst_25 = arith.constant dense<0xFF800000> : vector<8xf32>
    %66 = vector.multi_reduction <maximumf>, %65, %cst_25 [1] : vector<8x8xf32> to vector<8xf32>
    %67 = vector.shape_cast %66 : vector<8xf32> to vector<8x1xf32>
    %68 = vector.broadcast %67 : vector<8x1xf32> to vector<8x8xf32>
    %69 = arith.subf %65, %68 : vector<8x8xf32>
    %70 = math.exp %69 : vector<8x8xf32>
    %cst_26 = arith.constant dense<0.000000e+00> : vector<8xf32>
    %71 = vector.multi_reduction <add>, %70, %cst_26 [1] : vector<8x8xf32> to vector<8xf32>
    %72 = vector.shape_cast %71 : vector<8xf32> to vector<8x1xf32>
    %73 = vector.broadcast %72 : vector<8x1xf32> to vector<8x8xf32>
    %74 = arith.divf %70, %73 : vector<8x8xf32>
    %cst_27 = arith.constant dense<0.000000e+00> : vector<8x8xf32>
    %75 = tpu.matmul %74, %62, %cst_27 {dimension_numbers = #tpu.dot_dimension_numbers<[1], [0], [0], [1], [0, 0, 1, 1], [], []>} : vector<8x8xf32>, vector<8x8xf32>, vector<8x8xf32> -> vector<8x8xf32>
    %76 = tpu.concatenate %27, %43, %59, %75 in 1 : vector<8x8xf32>, vector<8x8xf32>, vector<8x8xf32>, vector<8x8xf32> -> vector<8x32xf32>
    %c0_28 = arith.constant 0 : index
    %c0_29 = arith.constant 0 : index
    %c0_30 = arith.constant 0 : index
    %77 = vector.load %arg4[%c0_28, %c0_29, %c0_30] : memref<2x32x32xf32, #tpu.memory_space<vmem>>, vector<1x32x32xf32>
    %78 = vector.shape_cast %77 : vector<1x32x32xf32> to vector<32x32xf32>
    %cst_31 = arith.constant dense<0.000000e+00> : vector<8x32xf32>
    %79 = tpu.matmul %76, %78, %cst_31 {dimension_numbers = #tpu.dot_dimension_numbers<[1], [0], [0], [1], [0, 0, 1, 1], [], []>} : vector<8x32xf32>, vector<32x32xf32>, vector<8x32xf32> -> vector<8x32xf32>
    %c0_32 = arith.constant 0 : index
    %c0_33 = arith.constant 0 : index
    %c0_34 = arith.constant 0 : index
    %80 = vector.load %arg5[%c0_32, %c0_33, %c0_34] : memref<2x1x32xf32, #tpu.memory_space<vmem>>, vector<1x1x32xf32>
    %81 = vector.shape_cast %80 : vector<1x1x32xf32> to vector<1x32xf32>
    %82 = vector.broadcast %81 : vector<1x32xf32> to vector<8x32xf32>
    %83 = arith.addf %79, %82 : vector<8x32xf32>
    %84 = arith.addf %1, %83 : vector<8x32xf32>
    %c0_35 = arith.constant 0 : index
    %c0_36 = arith.constant 0 : index
    %c0_37 = arith.constant 0 : index
    %85 = vector.load %arg6[%c0_35, %c0_36, %c0_37] : memref<2x1x32xf32, #tpu.memory_space<vmem>>, vector<1x1x32xf32>
    %86 = vector.shape_cast %85 : vector<1x1x32xf32> to vector<1x32xf32>
    %c0_38 = arith.constant 0 : index
    %c0_39 = arith.constant 0 : index
    %c0_40 = arith.constant 0 : index
    %87 = vector.load %arg7[%c0_38, %c0_39, %c0_40] : memref<2x1x32xf32, #tpu.memory_space<vmem>>, vector<1x1x32xf32>
    %88 = vector.shape_cast %87 : vector<1x1x32xf32> to vector<1x32xf32>
    %cst_41 = arith.constant dense<0.000000e+00> : vector<8xf32>
    %89 = vector.multi_reduction <add>, %84, %cst_41 [1] : vector<8x32xf32> to vector<8xf32>
    %90 = vector.shape_cast %89 : vector<8xf32> to vector<8x1xf32>
    %cst_42 = arith.constant 3.200000e+01 : f32
    %91 = vector.broadcast %cst_42 : f32 to vector<8x1xf32>
    %92 = arith.divf %90, %91 : vector<8x1xf32>
    %93 = vector.broadcast %92 : vector<8x1xf32> to vector<8x32xf32>
    %94 = arith.subf %84, %93 : vector<8x32xf32>
    %95 = arith.mulf %94, %94 : vector<8x32xf32>
    %cst_43 = arith.constant dense<0.000000e+00> : vector<8xf32>
    %96 = vector.multi_reduction <add>, %95, %cst_43 [1] : vector<8x32xf32> to vector<8xf32>
    %97 = vector.shape_cast %96 : vector<8xf32> to vector<8x1xf32>
    %cst_44 = arith.constant 3.200000e+01 : f32
    %98 = vector.broadcast %cst_44 : f32 to vector<8x1xf32>
    %99 = arith.divf %97, %98 : vector<8x1xf32>
    %cst_45 = arith.constant 9.99999974E-6 : f32
    %100 = vector.broadcast %cst_45 : f32 to vector<8x1xf32>
    %101 = arith.addf %99, %100 : vector<8x1xf32>
    %102 = math.rsqrt %101 : vector<8x1xf32>
    %103 = vector.broadcast %102 : vector<8x1xf32> to vector<8x32xf32>
    %104 = arith.mulf %94, %103 : vector<8x32xf32>
    %105 = vector.broadcast %86 : vector<1x32xf32> to vector<8x32xf32>
    %106 = arith.mulf %104, %105 : vector<8x32xf32>
    %107 = vector.broadcast %88 : vector<1x32xf32> to vector<8x32xf32>
    %108 = arith.addf %106, %107 : vector<8x32xf32>
    %c0_46 = arith.constant 0 : index
    %c0_47 = arith.constant 0 : index
    %c0_48 = arith.constant 0 : index
    %109 = vector.load %arg8[%c0_46, %c0_47, %c0_48] : memref<2x32x2048xf32, #tpu.memory_space<vmem>>, vector<1x32x2048xf32>
    %110 = vector.shape_cast %109 : vector<1x32x2048xf32> to vector<32x2048xf32>
    %cst_49 = arith.constant dense<0.000000e+00> : vector<8x2048xf32>
    %111 = tpu.matmul %108, %110, %cst_49 {dimension_numbers = #tpu.dot_dimension_numbers<[1], [0], [0], [1], [0, 0, 1, 1], [], []>} : vector<8x32xf32>, vector<32x2048xf32>, vector<8x2048xf32> -> vector<8x2048xf32>
    %c0_50 = arith.constant 0 : index
    %c0_51 = arith.constant 0 : index
    %c0_52 = arith.constant 0 : index
    %112 = vector.load %arg9[%c0_50, %c0_51, %c0_52] : memref<2x1x2048xf32, #tpu.memory_space<vmem>>, vector<1x1x2048xf32>
    %113 = vector.shape_cast %112 : vector<1x1x2048xf32> to vector<1x2048xf32>
    %114 = vector.broadcast %113 : vector<1x2048xf32> to vector<8x2048xf32>
    %115 = arith.addf %111, %114 : vector<8x2048xf32>
    %cst_53 = arith.constant 0.000000e+00 : f32
    %116 = vector.broadcast %cst_53 : f32 to vector<8x2048xf32>
    %117 = arith.maximumf %115, %116 : vector<8x2048xf32>
    %c0_54 = arith.constant 0 : index
    %c0_55 = arith.constant 0 : index
    %c0_56 = arith.constant 0 : index
    %118 = vector.load %arg10[%c0_54, %c0_55, %c0_56] : memref<2x2048x32xf32, #tpu.memory_space<vmem>>, vector<1x2048x32xf32>
    %119 = vector.shape_cast %118 : vector<1x2048x32xf32> to vector<2048x32xf32>
    %cst_57 = arith.constant dense<0.000000e+00> : vector<8x32xf32>
    %120 = tpu.matmul %117, %119, %cst_57 {dimension_numbers = #tpu.dot_dimension_numbers<[1], [0], [0], [1], [0, 0, 1, 1], [], []>} : vector<8x2048xf32>, vector<2048x32xf32>, vector<8x32xf32> -> vector<8x32xf32>
    %c0_58 = arith.constant 0 : index
    %c0_59 = arith.constant 0 : index
    %c0_60 = arith.constant 0 : index
    %121 = vector.load %arg11[%c0_58, %c0_59, %c0_60] : memref<2x1x32xf32, #tpu.memory_space<vmem>>, vector<1x1x32xf32>
    %122 = vector.shape_cast %121 : vector<1x1x32xf32> to vector<1x32xf32>
    %123 = vector.broadcast %122 : vector<1x32xf32> to vector<8x32xf32>
    %124 = arith.addf %120, %123 : vector<8x32xf32>
    %125 = arith.addf %108, %124 : vector<8x32xf32>
    %c0_61 = arith.constant 0 : index
    %c0_62 = arith.constant 0 : index
    %c0_63 = arith.constant 0 : index
    %126 = vector.load %arg12[%c0_61, %c0_62, %c0_63] : memref<2x1x32xf32, #tpu.memory_space<vmem>>, vector<1x1x32xf32>
    %127 = vector.shape_cast %126 : vector<1x1x32xf32> to vector<1x32xf32>
    %c0_64 = arith.constant 0 : index
    %c0_65 = arith.constant 0 : index
    %c0_66 = arith.constant 0 : index
    %128 = vector.load %arg13[%c0_64, %c0_65, %c0_66] : memref<2x1x32xf32, #tpu.memory_space<vmem>>, vector<1x1x32xf32>
    %129 = vector.shape_cast %128 : vector<1x1x32xf32> to vector<1x32xf32>
    %cst_67 = arith.constant dense<0.000000e+00> : vector<8xf32>
    %130 = vector.multi_reduction <add>, %125, %cst_67 [1] : vector<8x32xf32> to vector<8xf32>
    %131 = vector.shape_cast %130 : vector<8xf32> to vector<8x1xf32>
    %cst_68 = arith.constant 3.200000e+01 : f32
    %132 = vector.broadcast %cst_68 : f32 to vector<8x1xf32>
    %133 = arith.divf %131, %132 : vector<8x1xf32>
    %134 = vector.broadcast %133 : vector<8x1xf32> to vector<8x32xf32>
    %135 = arith.subf %125, %134 : vector<8x32xf32>
    %136 = arith.mulf %135, %135 : vector<8x32xf32>
    %cst_69 = arith.constant dense<0.000000e+00> : vector<8xf32>
    %137 = vector.multi_reduction <add>, %136, %cst_69 [1] : vector<8x32xf32> to vector<8xf32>
    %138 = vector.shape_cast %137 : vector<8xf32> to vector<8x1xf32>
    %cst_70 = arith.constant 3.200000e+01 : f32
    %139 = vector.broadcast %cst_70 : f32 to vector<8x1xf32>
    %140 = arith.divf %138, %139 : vector<8x1xf32>
    %cst_71 = arith.constant 9.99999974E-6 : f32
    %141 = vector.broadcast %cst_71 : f32 to vector<8x1xf32>
    %142 = arith.addf %140, %141 : vector<8x1xf32>
    %143 = math.rsqrt %142 : vector<8x1xf32>
    %144 = vector.broadcast %143 : vector<8x1xf32> to vector<8x32xf32>
    %145 = arith.mulf %135, %144 : vector<8x32xf32>
    %146 = vector.broadcast %127 : vector<1x32xf32> to vector<8x32xf32>
    %147 = arith.mulf %145, %146 : vector<8x32xf32>
    %148 = vector.broadcast %129 : vector<1x32xf32> to vector<8x32xf32>
    %149 = arith.addf %147, %148 : vector<8x32xf32>
    %c1 = arith.constant 1 : index
    %c0_72 = arith.constant 0 : index
    %c0_73 = arith.constant 0 : index
    %150 = vector.load %arg2[%c1, %c0_72, %c0_73] : memref<2x32x96xf32, #tpu.memory_space<vmem>>, vector<1x32x96xf32>
    %151 = vector.shape_cast %150 : vector<1x32x96xf32> to vector<32x96xf32>
    %cst_74 = arith.constant dense<0.000000e+00> : vector<8x96xf32>
    %152 = tpu.matmul %149, %151, %cst_74 {dimension_numbers = #tpu.dot_dimension_numbers<[1], [0], [0], [1], [0, 0, 1, 1], [], []>} : vector<8x32xf32>, vector<32x96xf32>, vector<8x96xf32> -> vector<8x96xf32>
    %c1_75 = arith.constant 1 : index
    %c0_76 = arith.constant 0 : index
    %c0_77 = arith.constant 0 : index
    %153 = vector.load %arg3[%c1_75, %c0_76, %c0_77] : memref<2x1x96xf32, #tpu.memory_space<vmem>>, vector<1x1x96xf32>
    %154 = vector.shape_cast %153 : vector<1x1x96xf32> to vector<1x96xf32>
    %155 = vector.broadcast %154 : vector<1x96xf32> to vector<8x96xf32>
    %156 = arith.addf %152, %155 : vector<8x96xf32>
    %157 = vector.extract_strided_slice %156 {offsets = [0, 0], sizes = [8, 32], strides = [1, 1]} : vector<8x96xf32> to vector<8x32xf32>
    %158 = vector.extract_strided_slice %156 {offsets = [0, 32], sizes = [8, 32], strides = [1, 1]} : vector<8x96xf32> to vector<8x32xf32>
    %159 = vector.extract_strided_slice %156 {offsets = [0, 64], sizes = [8, 32], strides = [1, 1]} : vector<8x96xf32> to vector<8x32xf32>
    %160 = vector.extract_strided_slice %157 {offsets = [0, 0], sizes = [8, 8], strides = [1, 1]} : vector<8x32xf32> to vector<8x8xf32>
    %161 = vector.extract_strided_slice %158 {offsets = [0, 0], sizes = [8, 8], strides = [1, 1]} : vector<8x32xf32> to vector<8x8xf32>
    %162 = vector.extract_strided_slice %159 {offsets = [0, 0], sizes = [8, 8], strides = [1, 1]} : vector<8x32xf32> to vector<8x8xf32>
    %cst_78 = arith.constant dense<0.000000e+00> : vector<8x8xf32>
    %163 = tpu.matmul %160, %161, %cst_78 {dimension_numbers = #tpu.dot_dimension_numbers<[1], [1], [0], [0], [0, 0, 1, 0], [], []>} : vector<8x8xf32>, vector<8x8xf32>, vector<8x8xf32> -> vector<8x8xf32>
    %cst_79 = arith.constant 0.353553385 : f32
    %164 = vector.broadcast %cst_79 : f32 to vector<8x8xf32>
    %165 = arith.mulf %163, %164 : vector<8x8xf32>
    %cst_80 = arith.constant dense<0xFF800000> : vector<8xf32>
    %166 = vector.multi_reduction <maximumf>, %165, %cst_80 [1] : vector<8x8xf32> to vector<8xf32>
    %167 = vector.shape_cast %166 : vector<8xf32> to vector<8x1xf32>
    %168 = vector.broadcast %167 : vector<8x1xf32> to vector<8x8xf32>
    %169 = arith.subf %165, %168 : vector<8x8xf32>
    %170 = math.exp %169 : vector<8x8xf32>
    %cst_81 = arith.constant dense<0.000000e+00> : vector<8xf32>
    %171 = vector.multi_reduction <add>, %170, %cst_81 [1] : vector<8x8xf32> to vector<8xf32>
    %172 = vector.shape_cast %171 : vector<8xf32> to vector<8x1xf32>
    %173 = vector.broadcast %172 : vector<8x1xf32> to vector<8x8xf32>
    %174 = arith.divf %170, %173 : vector<8x8xf32>
    %cst_82 = arith.constant dense<0.000000e+00> : vector<8x8xf32>
    %175 = tpu.matmul %174, %162, %cst_82 {dimension_numbers = #tpu.dot_dimension_numbers<[1], [0], [0], [1], [0, 0, 1, 1], [], []>} : vector<8x8xf32>, vector<8x8xf32>, vector<8x8xf32> -> vector<8x8xf32>
    %176 = vector.extract_strided_slice %157 {offsets = [0, 8], sizes = [8, 8], strides = [1, 1]} : vector<8x32xf32> to vector<8x8xf32>
    %177 = vector.extract_strided_slice %158 {offsets = [0, 8], sizes = [8, 8], strides = [1, 1]} : vector<8x32xf32> to vector<8x8xf32>
    %178 = vector.extract_strided_slice %159 {offsets = [0, 8], sizes = [8, 8], strides = [1, 1]} : vector<8x32xf32> to vector<8x8xf32>
    %cst_83 = arith.constant dense<0.000000e+00> : vector<8x8xf32>
    %179 = tpu.matmul %176, %177, %cst_83 {dimension_numbers = #tpu.dot_dimension_numbers<[1], [1], [0], [0], [0, 0, 1, 0], [], []>} : vector<8x8xf32>, vector<8x8xf32>, vector<8x8xf32> -> vector<8x8xf32>
    %cst_84 = arith.constant 0.353553385 : f32
    %180 = vector.broadcast %cst_84 : f32 to vector<8x8xf32>
    %181 = arith.mulf %179, %180 : vector<8x8xf32>
    %cst_85 = arith.constant dense<0xFF800000> : vector<8xf32>
    %182 = vector.multi_reduction <maximumf>, %181, %cst_85 [1] : vector<8x8xf32> to vector<8xf32>
    %183 = vector.shape_cast %182 : vector<8xf32> to vector<8x1xf32>
    %184 = vector.broadcast %183 : vector<8x1xf32> to vector<8x8xf32>
    %185 = arith.subf %181, %184 : vector<8x8xf32>
    %186 = math.exp %185 : vector<8x8xf32>
    %cst_86 = arith.constant dense<0.000000e+00> : vector<8xf32>
    %187 = vector.multi_reduction <add>, %186, %cst_86 [1] : vector<8x8xf32> to vector<8xf32>
    %188 = vector.shape_cast %187 : vector<8xf32> to vector<8x1xf32>
    %189 = vector.broadcast %188 : vector<8x1xf32> to vector<8x8xf32>
    %190 = arith.divf %186, %189 : vector<8x8xf32>
    %cst_87 = arith.constant dense<0.000000e+00> : vector<8x8xf32>
    %191 = tpu.matmul %190, %178, %cst_87 {dimension_numbers = #tpu.dot_dimension_numbers<[1], [0], [0], [1], [0, 0, 1, 1], [], []>} : vector<8x8xf32>, vector<8x8xf32>, vector<8x8xf32> -> vector<8x8xf32>
    %192 = vector.extract_strided_slice %157 {offsets = [0, 16], sizes = [8, 8], strides = [1, 1]} : vector<8x32xf32> to vector<8x8xf32>
    %193 = vector.extract_strided_slice %158 {offsets = [0, 16], sizes = [8, 8], strides = [1, 1]} : vector<8x32xf32> to vector<8x8xf32>
    %194 = vector.extract_strided_slice %159 {offsets = [0, 16], sizes = [8, 8], strides = [1, 1]} : vector<8x32xf32> to vector<8x8xf32>
    %cst_88 = arith.constant dense<0.000000e+00> : vector<8x8xf32>
    %195 = tpu.matmul %192, %193, %cst_88 {dimension_numbers = #tpu.dot_dimension_numbers<[1], [1], [0], [0], [0, 0, 1, 0], [], []>} : vector<8x8xf32>, vector<8x8xf32>, vector<8x8xf32> -> vector<8x8xf32>
    %cst_89 = arith.constant 0.353553385 : f32
    %196 = vector.broadcast %cst_89 : f32 to vector<8x8xf32>
    %197 = arith.mulf %195, %196 : vector<8x8xf32>
    %cst_90 = arith.constant dense<0xFF800000> : vector<8xf32>
    %198 = vector.multi_reduction <maximumf>, %197, %cst_90 [1] : vector<8x8xf32> to vector<8xf32>
    %199 = vector.shape_cast %198 : vector<8xf32> to vector<8x1xf32>
    %200 = vector.broadcast %199 : vector<8x1xf32> to vector<8x8xf32>
    %201 = arith.subf %197, %200 : vector<8x8xf32>
    %202 = math.exp %201 : vector<8x8xf32>
    %cst_91 = arith.constant dense<0.000000e+00> : vector<8xf32>
    %203 = vector.multi_reduction <add>, %202, %cst_91 [1] : vector<8x8xf32> to vector<8xf32>
    %204 = vector.shape_cast %203 : vector<8xf32> to vector<8x1xf32>
    %205 = vector.broadcast %204 : vector<8x1xf32> to vector<8x8xf32>
    %206 = arith.divf %202, %205 : vector<8x8xf32>
    %cst_92 = arith.constant dense<0.000000e+00> : vector<8x8xf32>
    %207 = tpu.matmul %206, %194, %cst_92 {dimension_numbers = #tpu.dot_dimension_numbers<[1], [0], [0], [1], [0, 0, 1, 1], [], []>} : vector<8x8xf32>, vector<8x8xf32>, vector<8x8xf32> -> vector<8x8xf32>
    %208 = vector.extract_strided_slice %157 {offsets = [0, 24], sizes = [8, 8], strides = [1, 1]} : vector<8x32xf32> to vector<8x8xf32>
    %209 = vector.extract_strided_slice %158 {offsets = [0, 24], sizes = [8, 8], strides = [1, 1]} : vector<8x32xf32> to vector<8x8xf32>
    %210 = vector.extract_strided_slice %159 {offsets = [0, 24], sizes = [8, 8], strides = [1, 1]} : vector<8x32xf32> to vector<8x8xf32>
    %cst_93 = arith.constant dense<0.000000e+00> : vector<8x8xf32>
    %211 = tpu.matmul %208, %209, %cst_93 {dimension_numbers = #tpu.dot_dimension_numbers<[1], [1], [0], [0], [0, 0, 1, 0], [], []>} : vector<8x8xf32>, vector<8x8xf32>, vector<8x8xf32> -> vector<8x8xf32>
    %cst_94 = arith.constant 0.353553385 : f32
    %212 = vector.broadcast %cst_94 : f32 to vector<8x8xf32>
    %213 = arith.mulf %211, %212 : vector<8x8xf32>
    %cst_95 = arith.constant dense<0xFF800000> : vector<8xf32>
    %214 = vector.multi_reduction <maximumf>, %213, %cst_95 [1] : vector<8x8xf32> to vector<8xf32>
    %215 = vector.shape_cast %214 : vector<8xf32> to vector<8x1xf32>
    %216 = vector.broadcast %215 : vector<8x1xf32> to vector<8x8xf32>
    %217 = arith.subf %213, %216 : vector<8x8xf32>
    %218 = math.exp %217 : vector<8x8xf32>
    %cst_96 = arith.constant dense<0.000000e+00> : vector<8xf32>
    %219 = vector.multi_reduction <add>, %218, %cst_96 [1] : vector<8x8xf32> to vector<8xf32>
    %220 = vector.shape_cast %219 : vector<8xf32> to vector<8x1xf32>
    %221 = vector.broadcast %220 : vector<8x1xf32> to vector<8x8xf32>
    %222 = arith.divf %218, %221 : vector<8x8xf32>
    %cst_97 = arith.constant dense<0.000000e+00> : vector<8x8xf32>
    %223 = tpu.matmul %222, %210, %cst_97 {dimension_numbers = #tpu.dot_dimension_numbers<[1], [0], [0], [1], [0, 0, 1, 1], [], []>} : vector<8x8xf32>, vector<8x8xf32>, vector<8x8xf32> -> vector<8x8xf32>
    %224 = tpu.concatenate %175, %191, %207, %223 in 1 : vector<8x8xf32>, vector<8x8xf32>, vector<8x8xf32>, vector<8x8xf32> -> vector<8x32xf32>
    %c1_98 = arith.constant 1 : index
    %c0_99 = arith.constant 0 : index
    %c0_100 = arith.constant 0 : index
    %225 = vector.load %arg4[%c1_98, %c0_99, %c0_100] : memref<2x32x32xf32, #tpu.memory_space<vmem>>, vector<1x32x32xf32>
    %226 = vector.shape_cast %225 : vector<1x32x32xf32> to vector<32x32xf32>
    %cst_101 = arith.constant dense<0.000000e+00> : vector<8x32xf32>
    %227 = tpu.matmul %224, %226, %cst_101 {dimension_numbers = #tpu.dot_dimension_numbers<[1], [0], [0], [1], [0, 0, 1, 1], [], []>} : vector<8x32xf32>, vector<32x32xf32>, vector<8x32xf32> -> vector<8x32xf32>
    %c1_102 = arith.constant 1 : index
    %c0_103 = arith.constant 0 : index
    %c0_104 = arith.constant 0 : index
    %228 = vector.load %arg5[%c1_102, %c0_103, %c0_104] : memref<2x1x32xf32, #tpu.memory_space<vmem>>, vector<1x1x32xf32>
    %229 = vector.shape_cast %228 : vector<1x1x32xf32> to vector<1x32xf32>
    %230 = vector.broadcast %229 : vector<1x32xf32> to vector<8x32xf32>
    %231 = arith.addf %227, %230 : vector<8x32xf32>
    %232 = arith.addf %149, %231 : vector<8x32xf32>
    %c1_105 = arith.constant 1 : index
    %c0_106 = arith.constant 0 : index
    %c0_107 = arith.constant 0 : index
    %233 = vector.load %arg6[%c1_105, %c0_106, %c0_107] : memref<2x1x32xf32, #tpu.memory_space<vmem>>, vector<1x1x32xf32>
    %234 = vector.shape_cast %233 : vector<1x1x32xf32> to vector<1x32xf32>
    %c1_108 = arith.constant 1 : index
    %c0_109 = arith.constant 0 : index
    %c0_110 = arith.constant 0 : index
    %235 = vector.load %arg7[%c1_108, %c0_109, %c0_110] : memref<2x1x32xf32, #tpu.memory_space<vmem>>, vector<1x1x32xf32>
    %236 = vector.shape_cast %235 : vector<1x1x32xf32> to vector<1x32xf32>
    %cst_111 = arith.constant dense<0.000000e+00> : vector<8xf32>
    %237 = vector.multi_reduction <add>, %232, %cst_111 [1] : vector<8x32xf32> to vector<8xf32>
    %238 = vector.shape_cast %237 : vector<8xf32> to vector<8x1xf32>
    %cst_112 = arith.constant 3.200000e+01 : f32
    %239 = vector.broadcast %cst_112 : f32 to vector<8x1xf32>
    %240 = arith.divf %238, %239 : vector<8x1xf32>
    %241 = vector.broadcast %240 : vector<8x1xf32> to vector<8x32xf32>
    %242 = arith.subf %232, %241 : vector<8x32xf32>
    %243 = arith.mulf %242, %242 : vector<8x32xf32>
    %cst_113 = arith.constant dense<0.000000e+00> : vector<8xf32>
    %244 = vector.multi_reduction <add>, %243, %cst_113 [1] : vector<8x32xf32> to vector<8xf32>
    %245 = vector.shape_cast %244 : vector<8xf32> to vector<8x1xf32>
    %cst_114 = arith.constant 3.200000e+01 : f32
    %246 = vector.broadcast %cst_114 : f32 to vector<8x1xf32>
    %247 = arith.divf %245, %246 : vector<8x1xf32>
    %cst_115 = arith.constant 9.99999974E-6 : f32
    %248 = vector.broadcast %cst_115 : f32 to vector<8x1xf32>
    %249 = arith.addf %247, %248 : vector<8x1xf32>
    %250 = math.rsqrt %249 : vector<8x1xf32>
    %251 = vector.broadcast %250 : vector<8x1xf32> to vector<8x32xf32>
    %252 = arith.mulf %242, %251 : vector<8x32xf32>
    %253 = vector.broadcast %234 : vector<1x32xf32> to vector<8x32xf32>
    %254 = arith.mulf %252, %253 : vector<8x32xf32>
    %255 = vector.broadcast %236 : vector<1x32xf32> to vector<8x32xf32>
    %256 = arith.addf %254, %255 : vector<8x32xf32>
    %c1_116 = arith.constant 1 : index
    %c0_117 = arith.constant 0 : index
    %c0_118 = arith.constant 0 : index
    %257 = vector.load %arg8[%c1_116, %c0_117, %c0_118] : memref<2x32x2048xf32, #tpu.memory_space<vmem>>, vector<1x32x2048xf32>
    %258 = vector.shape_cast %257 : vector<1x32x2048xf32> to vector<32x2048xf32>
    %cst_119 = arith.constant dense<0.000000e+00> : vector<8x2048xf32>
    %259 = tpu.matmul %256, %258, %cst_119 {dimension_numbers = #tpu.dot_dimension_numbers<[1], [0], [0], [1], [0, 0, 1, 1], [], []>} : vector<8x32xf32>, vector<32x2048xf32>, vector<8x2048xf32> -> vector<8x2048xf32>
    %c1_120 = arith.constant 1 : index
    %c0_121 = arith.constant 0 : index
    %c0_122 = arith.constant 0 : index
    %260 = vector.load %arg9[%c1_120, %c0_121, %c0_122] : memref<2x1x2048xf32, #tpu.memory_space<vmem>>, vector<1x1x2048xf32>
    %261 = vector.shape_cast %260 : vector<1x1x2048xf32> to vector<1x2048xf32>
    %262 = vector.broadcast %261 : vector<1x2048xf32> to vector<8x2048xf32>
    %263 = arith.addf %259, %262 : vector<8x2048xf32>
    %cst_123 = arith.constant 0.000000e+00 : f32
    %264 = vector.broadcast %cst_123 : f32 to vector<8x2048xf32>
    %265 = arith.maximumf %263, %264 : vector<8x2048xf32>
    %c1_124 = arith.constant 1 : index
    %c0_125 = arith.constant 0 : index
    %c0_126 = arith.constant 0 : index
    %266 = vector.load %arg10[%c1_124, %c0_125, %c0_126] : memref<2x2048x32xf32, #tpu.memory_space<vmem>>, vector<1x2048x32xf32>
    %267 = vector.shape_cast %266 : vector<1x2048x32xf32> to vector<2048x32xf32>
    %cst_127 = arith.constant dense<0.000000e+00> : vector<8x32xf32>
    %268 = tpu.matmul %265, %267, %cst_127 {dimension_numbers = #tpu.dot_dimension_numbers<[1], [0], [0], [1], [0, 0, 1, 1], [], []>} : vector<8x2048xf32>, vector<2048x32xf32>, vector<8x32xf32> -> vector<8x32xf32>
    %c1_128 = arith.constant 1 : index
    %c0_129 = arith.constant 0 : index
    %c0_130 = arith.constant 0 : index
    %269 = vector.load %arg11[%c1_128, %c0_129, %c0_130] : memref<2x1x32xf32, #tpu.memory_space<vmem>>, vector<1x1x32xf32>
    %270 = vector.shape_cast %269 : vector<1x1x32xf32> to vector<1x32xf32>
    %271 = vector.broadcast %270 : vector<1x32xf32> to vector<8x32xf32>
    %272 = arith.addf %268, %271 : vector<8x32xf32>
    %273 = arith.addf %256, %272 : vector<8x32xf32>
    %c1_131 = arith.constant 1 : index
    %c0_132 = arith.constant 0 : index
    %c0_133 = arith.constant 0 : index
    %274 = vector.load %arg12[%c1_131, %c0_132, %c0_133] : memref<2x1x32xf32, #tpu.memory_space<vmem>>, vector<1x1x32xf32>
    %275 = vector.shape_cast %274 : vector<1x1x32xf32> to vector<1x32xf32>
    %c1_134 = arith.constant 1 : index
    %c0_135 = arith.constant 0 : index
    %c0_136 = arith.constant 0 : index
    %276 = vector.load %arg13[%c1_134, %c0_135, %c0_136] : memref<2x1x32xf32, #tpu.memory_space<vmem>>, vector<1x1x32xf32>
    %277 = vector.shape_cast %276 : vector<1x1x32xf32> to vector<1x32xf32>
    %cst_137 = arith.constant dense<0.000000e+00> : vector<8xf32>
    %278 = vector.multi_reduction <add>, %273, %cst_137 [1] : vector<8x32xf32> to vector<8xf32>
    %279 = vector.shape_cast %278 : vector<8xf32> to vector<8x1xf32>
    %cst_138 = arith.constant 3.200000e+01 : f32
    %280 = vector.broadcast %cst_138 : f32 to vector<8x1xf32>
    %281 = arith.divf %279, %280 : vector<8x1xf32>
    %282 = vector.broadcast %281 : vector<8x1xf32> to vector<8x32xf32>
    %283 = arith.subf %273, %282 : vector<8x32xf32>
    %284 = arith.mulf %283, %283 : vector<8x32xf32>
    %cst_139 = arith.constant dense<0.000000e+00> : vector<8xf32>
    %285 = vector.multi_reduction <add>, %284, %cst_139 [1] : vector<8x32xf32> to vector<8xf32>
    %286 = vector.shape_cast %285 : vector<8xf32> to vector<8x1xf32>
    %cst_140 = arith.constant 3.200000e+01 : f32
    %287 = vector.broadcast %cst_140 : f32 to vector<8x1xf32>
    %288 = arith.divf %286, %287 : vector<8x1xf32>
    %cst_141 = arith.constant 9.99999974E-6 : f32
    %289 = vector.broadcast %cst_141 : f32 to vector<8x1xf32>
    %290 = arith.addf %288, %289 : vector<8x1xf32>
    %291 = math.rsqrt %290 : vector<8x1xf32>
    %292 = vector.broadcast %291 : vector<8x1xf32> to vector<8x32xf32>
    %293 = arith.mulf %283, %292 : vector<8x32xf32>
    %294 = vector.broadcast %275 : vector<1x32xf32> to vector<8x32xf32>
    %295 = arith.mulf %293, %294 : vector<8x32xf32>
    %296 = vector.broadcast %277 : vector<1x32xf32> to vector<8x32xf32>
    %297 = arith.addf %295, %296 : vector<8x32xf32>
    %298 = vector.extract_strided_slice %297 {offsets = [7, 0], sizes = [1, 32], strides = [1, 1]} : vector<8x32xf32> to vector<1x32xf32>
    %c0_142 = arith.constant 0 : index
    %c0_143 = arith.constant 0 : index
    %c0_144 = arith.constant 0 : index
    %299 = vector.load %arg14[%c0_142, %c0_143, %c0_144] : memref<1x1x32xf32, #tpu.memory_space<vmem>>, vector<1x1x32xf32>
    %300 = vector.shape_cast %299 : vector<1x1x32xf32> to vector<1x32xf32>
    %301 = vector.shape_cast %298 : vector<1x32xf32> to vector<1x1x32xf32>
    tpu.vector_store %arg14[%c0_142, %c0_143, %c0_144], %301 {strides = array<i32>} : memref<1x1x32xf32, #tpu.memory_space<vmem>>, vector<1x1x32xf32>,
    return
  }
  func.func @transform_0(%arg0: i32) -> (i32, i32, i32) {
    %c0_i32 = arith.constant 0 : i32
    %c0_i32_0 = arith.constant 0 : i32
    %c0_i32_1 = arith.constant 0 : i32
    return %arg0, %c0_i32, %c0_i32_0 : i32, i32, i32
  }
  func.func @transform_1(%arg0: i32) -> (i32, i32, i32) {
    %c0_i32 = arith.constant 0 : i32
    %c0_i32_0 = arith.constant 0 : i32
    %c0_i32_1 = arith.constant 0 : i32
    %c0_i32_2 = arith.constant 0 : i32
    return %c0_i32, %c0_i32_0, %c0_i32_1 : i32, i32, i32
  }
  func.func @transform_2(%arg0: i32) -> (i32, i32, i32) {
    %c0_i32 = arith.constant 0 : i32
    %c0_i32_0 = arith.constant 0 : i32
    %c0_i32_1 = arith.constant 0 : i32
    %c0_i32_2 = arith.constant 0 : i32
    return %c0_i32, %c0_i32_0, %c0_i32_1 : i32, i32, i32
  }
  func.func @transform_3(%arg0: i32) -> (i32, i32, i32) {
    %c0_i32 = arith.constant 0 : i32
    %c0_i32_0 = arith.constant 0 : i32
    %c0_i32_1 = arith.constant 0 : i32
    %c0_i32_2 = arith.constant 0 : i32
    return %c0_i32, %c0_i32_0, %c0_i32_1 : i32, i32, i32
  }
  func.func @transform_4(%arg0: i32) -> (i32, i32, i32) {
    %c0_i32 = arith.constant 0 : i32
    %c0_i32_0 = arith.constant 0 : i32
    %c0_i32_1 = arith.constant 0 : i32
    %c0_i32_2 = arith.constant 0 : i32
    return %c0_i32, %c0_i32_0, %c0_i32_1 : i32, i32, i32
  }
  func.func @transform_5(%arg0: i32) -> (i32, i32, i32) {
    %c0_i32 = arith.constant 0 : i32
    %c0_i32_0 = arith.constant 0 : i32
    %c0_i32_1 = arith.constant 0 : i32
    %c0_i32_2 = arith.constant 0 : i32
    return %c0_i32, %c0_i32_0, %c0_i32_1 : i32, i32, i32
  }
  func.func @transform_6(%arg0: i32) -> (i32, i32, i32) {
    %c0_i32 = arith.constant 0 : i32
    %c0_i32_0 = arith.constant 0 : i32
    %c0_i32_1 = arith.constant 0 : i32
    %c0_i32_2 = arith.constant 0 : i32
    return %c0_i32, %c0_i32_0, %c0_i32_1 : i32, i32, i32
  }
  func.func @transform_7(%arg0: i32) -> (i32, i32, i32) {
    %c0_i32 = arith.constant 0 : i32
    %c0_i32_0 = arith.constant 0 : i32
    %c0_i32_1 = arith.constant 0 : i32
    %c0_i32_2 = arith.constant 0 : i32
    return %c0_i32, %c0_i32_0, %c0_i32_1 : i32, i32, i32
  }
  func.func @transform_8(%arg0: i32) -> (i32, i32, i32) {
    %c0_i32 = arith.constant 0 : i32
    %c0_i32_0 = arith.constant 0 : i32
    %c0_i32_1 = arith.constant 0 : i32
    %c0_i32_2 = arith.constant 0 : i32
    return %c0_i32, %c0_i32_0, %c0_i32_1 : i32, i32, i32
  }
  func.func @transform_9(%arg0: i32) -> (i32, i32, i32) {
    %c0_i32 = arith.constant 0 : i32
    %c0_i32_0 = arith.constant 0 : i32
    %c0_i32_1 = arith.constant 0 : i32
    %c0_i32_2 = arith.constant 0 : i32
    return %c0_i32, %c0_i32_0, %c0_i32_1 : i32, i32, i32
  }
  func.func @transform_10(%arg0: i32) -> (i32, i32, i32) {
    %c0_i32 = arith.constant 0 : i32
    %c0_i32_0 = arith.constant 0 : i32
    %c0_i32_1 = arith.constant 0 : i32
    %c0_i32_2 = arith.constant 0 : i32
    return %c0_i32, %c0_i32_0, %c0_i32_1 : i32, i32, i32
  }
  func.func @transform_11(%arg0: i32) -> (i32, i32, i32) {
    %c0_i32 = arith.constant 0 : i32
    %c0_i32_0 = arith.constant 0 : i32
    %c0_i32_1 = arith.constant 0 : i32
    %c0_i32_2 = arith.constant 0 : i32
    return %c0_i32, %c0_i32_0, %c0_i32_1 : i32, i32, i32
  }
  func.func @transform_12(%arg0: i32) -> (i32, i32, i32) {
    %c0_i32 = arith.constant 0 : i32
    %c0_i32_0 = arith.constant 0 : i32
    %c0_i32_1 = arith.constant 0 : i32
    %c0_i32_2 = arith.constant 0 : i32
    return %c0_i32, %c0_i32_0, %c0_i32_1 : i32, i32, i32
  }
  func.func @transform_13(%arg0: i32) -> (i32, i32, i32) {
    %c0_i32 = arith.constant 0 : i32
    %c0_i32_0 = arith.constant 0 : i32
    %c0_i32_1 = arith.constant 0 : i32
    return %arg0, %c0_i32, %c0_i32_0 : i32, i32, i32
  }
}

</mosaic_0001>

<llo_original>
// kernel: tpu_custom_call.1
$region0: #{tpu_custom_call.1}
  #allocation0 [shape = 'u32[]', space=smem, size = 0x4, offset = 0x4, fixed_abs, tag = 'smem constant byte address 0x4 - core index']
  #allocation1 [shape = 'u32[144,128]{1,0:T(1,128)}', space=vmem, size = 0x12000, scoped, tag = 'internal scratch']
  %s0 = inlined_call_operand.vmem [shape: f32[2,8,32], index: 0, kind: input, shape index: {}]
  %s1 = inlined_call_operand.vmem [shape: f32[2,32,96], index: 1, kind: input, shape index: {}]
  %s2 = inlined_call_operand.vmem [shape: f32[2,1,96], index: 2, kind: input, shape index: {}]
  %s3 = inlined_call_operand.vmem [shape: f32[2,32,32], index: 3, kind: input, shape index: {}]
  %s4 = inlined_call_operand.vmem [shape: f32[2,1,32], index: 4, kind: input, shape index: {}]
  %s5 = inlined_call_operand.vmem [shape: f32[2,1,32], index: 5, kind: input, shape index: {}]
  %s6 = inlined_call_operand.vmem [shape: f32[2,1,32], index: 6, kind: input, shape index: {}]
  %s7 = inlined_call_operand.vmem [shape: f32[2,32,2048], index: 7, kind: input, shape index: {}]
  %s8 = inlined_call_operand.vmem [shape: f32[2,1,2048], index: 8, kind: input, shape index: {}]
  %s9 = inlined_call_operand.vmem [shape: f32[2,2048,32], index: 9, kind: input, shape index: {}]
  %s10 = inlined_call_operand.vmem [shape: f32[2,1,32], index: 10, kind: input, shape index: {}]
  %s11 = inlined_call_operand.vmem [shape: f32[2,1,32], index: 11, kind: input, shape index: {}]
  %s12 = inlined_call_operand.vmem [shape: f32[2,1,32], index: 12, kind: input, shape index: {}]
  %s13 = inlined_call_operand.hbm [shape: f32[2,1,32], index: 13, kind: output, shape index: {}]
  %s14 = sld [smem:[#allocation0]]
  $region85: #{tpu_custom_call.1} parent=0
    _
  %s16 = ssub.s32 1, %s14
  %s17 = scalar_select 0, %s16, %s14
  $region1: #{tpu_custom_call.1} parent=0
    #allocation2 [shape = 'u8[1024]{0}', space=vmem, size = 0x400, scoped, tag = 'output window, operand 0']
    #allocation3 [shape = 's32[2]{0}', space=sflag, size = 0x8, scoped, tag = 'scoped memory for tpu_custom_call.1']
    %18 = vsyncpa [#allocation3], 0
    %s19 = scalar_lea.sflag [#allocation3], 1
    %20 = vsyncpa %s19, 0
    loop: start=0, step=1, limit=4
    $region2: #{tpu_custom_call.1} parent=1 // loop_pre_header
      _
    $region3: #{tpu_custom_call.1} parent=1 // loop_header
      %s22 = sphi 0, %s26
      %p23 = scmp.ge.s32.totalorder %s22, 4
      %s32 = sphi 0, %s34
      %s35 = sphi 0, %s32
      %s36 = sphi 0, %s35
      %s52 = sphi 0, %s36
      %s56 = sphi 0, %s56
      %s58 = sphi 0, %s56
      %s59 = sphi 0, %s58
      %s73 = sphi 0, %s59
      %s77 = sphi 0, %s77
      %s79 = sphi 0, %s77
      %s80 = sphi 0, %s79
      %s94 = sphi 0, %s80
      %s98 = sphi 0, %s98
      %s100 = sphi 0, %s98
      %s101 = sphi 0, %s100
      %s115 = sphi 0, %s101
      %s119 = sphi 0, %s119
      %s121 = sphi 0, %s119
      %s122 = sphi 0, %s121
      %s136 = sphi 0, %s122
      %s140 = sphi 0, %s140
      %s142 = sphi 0, %s140
      %s143 = sphi 0, %s142
      %s157 = sphi 0, %s143
      %s161 = sphi 0, %s161
      %s163 = sphi 0, %s161
      %s164 = sphi 0, %s163
      %s178 = sphi 0, %s164
      %s182 = sphi 0, %s182
      %s184 = sphi 0, %s182
      %s185 = sphi 0, %s184
      %s199 = sphi 0, %s185
      %s203 = sphi 0, %s203
      %s205 = sphi 0, %s203
      %s206 = sphi 0, %s205
      %s220 = sphi 0, %s206
      %s224 = sphi 0, %s224
      %s226 = sphi 0, %s224
      %s227 = sphi 0, %s226
      %s241 = sphi 0, %s227
      %s245 = sphi 0, %s245
      %s247 = sphi 0, %s245
      %s248 = sphi 0, %s247
      %s262 = sphi 0, %s248
      %s266 = sphi 0, %s266
      %s268 = sphi 0, %s266
      %s269 = sphi 0, %s268
      %s283 = sphi 0, %s269
      %s287 = sphi 0, %s287
      %s289 = sphi 0, %s287
      %s290 = sphi 0, %s289
      %s304 = sphi 0, %s290
      %s310 = sphi 0, %s312
      %s313 = sphi 0, %s310
      %s314 = sphi 0, %s313
      %s330 = sphi 0, %s314
    $region4: #{tpu_custom_call.1} parent=1 // loop_header_branch
      %25 = sbr.rel (%p23) target = $region8
    $region5: #{tpu_custom_call.1} parent=1 // loop_body
      %s27 = ssub.s32 %s22, 1
      %s28 = ssub.s32 %s22, 2
      %s29 = sadd.s32 %s22, 1
      %s30 = ssub.s32 %s22, %s29
      %p31 = scmp.eq.s32.totalorder %s30, 0
      %s33 = sadd.s32 %s32, 1
      %s34 = scalar_select %p31, %s32, %s33
      %p37 = pneg %p31
      %p38 = scmp.eq.s32.totalorder %s22, 1
      %p39 = por %p37, %p38
      %p40 = scmp.ne.s32.totalorder %s32, %s35
      %p41 = scmp.eq.s32.totalorder %s22, 0
      %p42 = por %p40, %p41
      %p43 = scmp.ne.s32.totalorder %s32, %s35
      %p44 = scmp.eq.s32.totalorder %s27, 1
      %p45 = por %p43, %p44
      %p46 = scmp.ne.s32.totalorder %s35, %s36
      %p47 = scmp.eq.s32.totalorder %s27, 0
      %p48 = por %p46, %p47
      %p49 = scmp.ne.s32.totalorder %s35, %s36
      %p50 = scmp.eq.s32.totalorder %s28, 1
      %p51 = por %p49, %p50
      %p53 = scmp.ne.s32.totalorder %s36, %s52
      %p54 = scmp.eq.s32.totalorder %s28, 0
      %p55 = por %p53, %p54
      %s57 = sadd.s32 %s56, 1
      %p60 = scmp.eq.s32.totalorder %s22, 1
      %p61 = scmp.ne.s32.totalorder %s56, %s58
      %p62 = scmp.eq.s32.totalorder %s22, 0
      %p63 = por %p61, %p62
      %p64 = scmp.ne.s32.totalorder %s56, %s58
      %p65 = scmp.eq.s32.totalorder %s27, 1
      %p66 = por %p64, %p65
      %p67 = scmp.ne.s32.totalorder %s58, %s59
      %p68 = scmp.eq.s32.totalorder %s27, 0
      %p69 = por %p67, %p68
      %p70 = scmp.ne.s32.totalorder %s58, %s59
      %p71 = scmp.eq.s32.totalorder %s28, 1
      %p72 = por %p70, %p71
      %p74 = scmp.ne.s32.totalorder %s59, %s73
      %p75 = scmp.eq.s32.totalorder %s28, 0
      %p76 = por %p74, %p75
      %s78 = sadd.s32 %s77, 1
      %p81 = scmp.eq.s32.totalorder %s22, 1
      %p82 = scmp.ne.s32.totalorder %s77, %s79
      %p83 = scmp.eq.s32.totalorder %s22, 0
      %p84 = por %p82, %p83
      %p85 = scmp.ne.s32.totalorder %s77, %s79
      %p86 = scmp.eq.s32.totalorder %s27, 1
      %p87 = por %p85, %p86
      %p88 = scmp.ne.s32.totalorder %s79, %s80
      %p89 = scmp.eq.s32.totalorder %s27, 0
      %p90 = por %p88, %p89
      %p91 = scmp.ne.s32.totalorder %s79, %s80
      %p92 = scmp.eq.s32.totalorder %s28, 1
      %p93 = por %p91, %p92
      %p95 = scmp.ne.s32.totalorder %s80, %s94
      %p96 = scmp.eq.s32.totalorder %s28, 0
      %p97 = por %p95, %p96
      %s99 = sadd.s32 %s98, 1
      %p102 = scmp.eq.s32.totalorder %s22, 1
      %p103 = scmp.ne.s32.totalorder %s98, %s100
      %p104 = scmp.eq.s32.totalorder %s22, 0
      %p105 = por %p103, %p104
      %p106 = scmp.ne.s32.totalorder %s98, %s100
      %p107 = scmp.eq.s32.totalorder %s27, 1
      %p108 = por %p106, %p107
      %p109 = scmp.ne.s32.totalorder %s100, %s101
      %p110 = scmp.eq.s32.totalorder %s27, 0
      %p111 = por %p109, %p110
      %p112 = scmp.ne.s32.totalorder %s100, %s101
      %p113 = scmp.eq.s32.totalorder %s28, 1
      %p114 = por %p112, %p113
      %p116 = scmp.ne.s32.totalorder %s101, %s115
      %p117 = scmp.eq.s32.totalorder %s28, 0
      %p118 = por %p116, %p117
      %s120 = sadd.s32 %s119, 1
      %p123 = scmp.eq.s32.totalorder %s22, 1
      %p124 = scmp.ne.s32.totalorder %s119, %s121
      %p125 = scmp.eq.s32.totalorder %s22, 0
      %p126 = por %p124, %p125
      %p127 = scmp.ne.s32.totalorder %s119, %s121
      %p128 = scmp.eq.s32.totalorder %s27, 1
      %p129 = por %p127, %p128
      %p130 = scmp.ne.s32.totalorder %s121, %s122
      %p131 = scmp.eq.s32.totalorder %s27, 0
      %p132 = por %p130, %p131
      %p133 = scmp.ne.s32.totalorder %s121, %s122
      %p134 = scmp.eq.s32.totalorder %s28, 1
      %p135 = por %p133, %p134
      %p137 = scmp.ne.s32.totalorder %s122, %s136
      %p138 = scmp.eq.s32.totalorder %s28, 0
      %p139 = por %p137, %p138
      %s141 = sadd.s32 %s140, 1
      %p144 = scmp.eq.s32.totalorder %s22, 1
      %p145 = scmp.ne.s32.totalorder %s140, %s142
      %p146 = scmp.eq.s32.totalorder %s22, 0
      %p147 = por %p145, %p146
      %p148 = scmp.ne.s32.totalorder %s140, %s142
      %p149 = scmp.eq.s32.totalorder %s27, 1
      %p150 = por %p148, %p149
      %p151 = scmp.ne.s32.totalorder %s142, %s143
      %p152 = scmp.eq.s32.totalorder %s27, 0
      %p153 = por %p151, %p152
      %p154 = scmp.ne.s32.totalorder %s142, %s143
      %p155 = scmp.eq.s32.totalorder %s28, 1
      %p156 = por %p154, %p155
      %p158 = scmp.ne.s32.totalorder %s143, %s157
      %p159 = scmp.eq.s32.totalorder %s28, 0
      %p160 = por %p158, %p159
      %s162 = sadd.s32 %s161, 1
      %p165 = scmp.eq.s32.totalorder %s22, 1
      %p166 = scmp.ne.s32.totalorder %s161, %s163
      %p167 = scmp.eq.s32.totalorder %s22, 0
      %p168 = por %p166, %p167
      %p169 = scmp.ne.s32.totalorder %s161, %s163
      %p170 = scmp.eq.s32.totalorder %s27, 1
      %p171 = por %p169, %p170
      %p172 = scmp.ne.s32.totalorder %s163, %s164
      %p173 = scmp.eq.s32.totalorder %s27, 0
      %p174 = por %p172, %p173
      %p175 = scmp.ne.s32.totalorder %s163, %s164
      %p176 = scmp.eq.s32.totalorder %s28, 1
      %p177 = por %p175, %p176
      %p179 = scmp.ne.s32.totalorder %s164, %s178
      %p180 = scmp.eq.s32.totalorder %s28, 0
      %p181 = por %p179, %p180
      %s183 = sadd.s32 %s182, 1
      %p186 = scmp.eq.s32.totalorder %s22, 1
      %p187 = scmp.ne.s32.totalorder %s182, %s184
      %p188 = scmp.eq.s32.totalorder %s22, 0
      %p189 = por %p187, %p188
      %p190 = scmp.ne.s32.totalorder %s182, %s184
      %p191 = scmp.eq.s32.totalorder %s27, 1
      %p192 = por %p190, %p191
      %p193 = scmp.ne.s32.totalorder %s184, %s185
      %p194 = scmp.eq.s32.totalorder %s27, 0
      %p195 = por %p193, %p194
      %p196 = scmp.ne.s32.totalorder %s184, %s185
      %p197 = scmp.eq.s32.totalorder %s28, 1
      %p198 = por %p196, %p197
      %p200 = scmp.ne.s32.totalorder %s185, %s199
      %p201 = scmp.eq.s32.totalorder %s28, 0
      %p202 = por %p200, %p201
      %s204 = sadd.s32 %s203, 1
      %p207 = scmp.eq.s32.totalorder %s22, 1
      %p208 = scmp.ne.s32.totalorder %s203, %s205
      %p209 = scmp.eq.s32.totalorder %s22, 0
      %p210 = por %p208, %p209
      %p211 = scmp.ne.s32.totalorder %s203, %s205
      %p212 = scmp.eq.s32.totalorder %s27, 1
      %p213 = por %p211, %p212
      %p214 = scmp.ne.s32.totalorder %s205, %s206
      %p215 = scmp.eq.s32.totalorder %s27, 0
      %p216 = por %p214, %p215
      %p217 = scmp.ne.s32.totalorder %s205, %s206
      %p218 = scmp.eq.s32.totalorder %s28, 1
      %p219 = por %p217, %p218
      %p221 = scmp.ne.s32.totalorder %s206, %s220
      %p222 = scmp.eq.s32.totalorder %s28, 0
      %p223 = por %p221, %p222
      %s225 = sadd.s32 %s224, 1
      %p228 = scmp.eq.s32.totalorder %s22, 1
      %p229 = scmp.ne.s32.totalorder %s224, %s226
      %p230 = scmp.eq.s32.totalorder %s22, 0
      %p231 = por %p229, %p230
      %p232 = scmp.ne.s32.totalorder %s224, %s226
      %p233 = scmp.eq.s32.totalorder %s27, 1
      %p234 = por %p232, %p233
      %p235 = scmp.ne.s32.totalorder %s226, %s227
      %p236 = scmp.eq.s32.totalorder %s27, 0
      %p237 = por %p235, %p236
      %p238 = scmp.ne.s32.totalorder %s226, %s227
      %p239 = scmp.eq.s32.totalorder %s28, 1
      %p240 = por %p238, %p239
      %p242 = scmp.ne.s32.totalorder %s227, %s241
      %p243 = scmp.eq.s32.totalorder %s28, 0
      %p244 = por %p242, %p243
      %s246 = sadd.s32 %s245, 1
      %p249 = scmp.eq.s32.totalorder %s22, 1
      %p250 = scmp.ne.s32.totalorder %s245, %s247
      %p251 = scmp.eq.s32.totalorder %s22, 0
      %p252 = por %p250, %p251
      %p253 = scmp.ne.s32.totalorder %s245, %s247
      %p254 = scmp.eq.s32.totalorder %s27, 1
      %p255 = por %p253, %p254
      %p256 = scmp.ne.s32.totalorder %s247, %s248
      %p257 = scmp.eq.s32.totalorder %s27, 0
      %p258 = por %p256, %p257
      %p259 = scmp.ne.s32.totalorder %s247, %s248
      %p260 = scmp.eq.s32.totalorder %s28, 1
      %p261 = por %p259, %p260
      %p263 = scmp.ne.s32.totalorder %s248, %s262
      %p264 = scmp.eq.s32.totalorder %s28, 0
      %p265 = por %p263, %p264
      %s267 = sadd.s32 %s266, 1
      %p270 = scmp.eq.s32.totalorder %s22, 1
      %p271 = scmp.ne.s32.totalorder %s266, %s268
      %p272 = scmp.eq.s32.totalorder %s22, 0
      %p273 = por %p271, %p272
      %p274 = scmp.ne.s32.totalorder %s266, %s268
      %p275 = scmp.eq.s32.totalorder %s27, 1
      %p276 = por %p274, %p275
      %p277 = scmp.ne.s32.totalorder %s268, %s269
      %p278 = scmp.eq.s32.totalorder %s27, 0
      %p279 = por %p277, %p278
      %p280 = scmp.ne.s32.totalorder %s268, %s269
      %p281 = scmp.eq.s32.totalorder %s28, 1
      %p282 = por %p280, %p281
      %p284 = scmp.ne.s32.totalorder %s269, %s283
      %p285 = scmp.eq.s32.totalorder %s28, 0
      %p286 = por %p284, %p285
      %s288 = sadd.s32 %s287, 1
      %p291 = scmp.eq.s32.totalorder %s22, 1
      %p292 = scmp.ne.s32.totalorder %s287, %s289
      %p293 = scmp.eq.s32.totalorder %s22, 0
      %p294 = por %p292, %p293
      %p295 = scmp.ne.s32.totalorder %s287, %s289
      %p296 = scmp.eq.s32.totalorder %s27, 1
      %p297 = por %p295, %p296
      %p298 = scmp.ne.s32.totalorder %s289, %s290
      %p299 = scmp.eq.s32.totalorder %s27, 0
      %p300 = por %p298, %p299
      %p301 = scmp.ne.s32.totalorder %s289, %s290
      %p302 = scmp.eq.s32.totalorder %s28, 1
      %p303 = por %p301, %p302
      %p305 = scmp.ne.s32.totalorder %s290, %s304
      %p306 = scmp.eq.s32.totalorder %s28, 0
      %p307 = por %p305, %p306
      %s308 = ssub.s32 %s22, %s29
      %p309 = scmp.eq.s32.totalorder %s308, 0
      %s311 = sadd.s32 %s310, 1
      %s312 = scalar_select %p309, %s310, %s311
      %p315 = pneg %p309
      %p316 = scmp.eq.s32.totalorder %s22, 1
      %p317 = por %p315, %p316
      %p318 = scmp.ne.s32.totalorder %s310, %s313
      %p319 = scmp.eq.s32.totalorder %s22, 0
      %p320 = por %p318, %p319
      %p321 = scmp.ne.s32.totalorder %s310, %s313
      %p322 = scmp.eq.s32.totalorder %s27, 1
      %p323 = por %p321, %p322
      %p324 = scmp.ne.s32.totalorder %s313, %s314
      %p325 = scmp.eq.s32.totalorder %s27, 0
      %p326 = por %p324, %p325
      %p327 = scmp.ne.s32.totalorder %s313, %s314
      %p328 = scmp.eq.s32.totalorder %s28, 1
      %p329 = por %p327, %p328
      %p331 = scmp.ne.s32.totalorder %s314, %s330
      %p332 = scmp.eq.s32.totalorder %s28, 0
      %p333 = por %p331, %p332
      %p334 = scmp.le.s32.totalorder 1, %s22
      %p335 = scmp.lt.s32.totalorder %s22, 3
      %p336 = pnand %p334, %p335
      %p337 = pneg %p336
      // Predicated region
      $region9: #{tpu_custom_call.1} parent=5 // pred_check
        _
      $region10: #{tpu_custom_call.1} parent=5 // pred_check_branch
        %339 = sbr.rel (%p336) target = $region12
      $region11: #{tpu_custom_call.1} parent=5 // pred_region
        %s340 = ssub.s32 %s22, 1
        // Predicated region
        $region13: #{tpu_custom_call.1} parent=11 // pred_check
          %p341 = pneg %p69
        $region14: #{tpu_custom_call.1} parent=11 // pred_check_branch
          %343 = sbr.rel (%p341) target = $region16
        $region15: #{tpu_custom_call.1} parent=11 // pred_region
          _
        $region16: #{tpu_custom_call.1} parent=11 // pred_fallthru
          _
        // Predicated region
        $region17: #{tpu_custom_call.1} parent=11 // pred_check
          %p344 = pneg %p90
        $region18: #{tpu_custom_call.1} parent=11 // pred_check_branch
          %346 = sbr.rel (%p344) target = $region20
        $region19: #{tpu_custom_call.1} parent=11 // pred_region
          _
        $region20: #{tpu_custom_call.1} parent=11 // pred_fallthru
          _
        // Predicated region
        $region21: #{tpu_custom_call.1} parent=11 // pred_check
          %p347 = pneg %p111
        $region22: #{tpu_custom_call.1} parent=11 // pred_check_branch
          %349 = sbr.rel (%p347) target = $region24
        $region23: #{tpu_custom_call.1} parent=11 // pred_region
          _
        $region24: #{tpu_custom_call.1} parent=11 // pred_fallthru
          _
        // Predicated region
        $region25: #{tpu_custom_call.1} parent=11 // pred_check
          %p350 = pneg %p132
        $region26: #{tpu_custom_call.1} parent=11 // pred_check_branch
          %352 = sbr.rel (%p350) target = $region28
        $region27: #{tpu_custom_call.1} parent=11 // pred_region
          _
        $region28: #{tpu_custom_call.1} parent=11 // pred_fallthru
          _
        // Predicated region
        $region29: #{tpu_custom_call.1} parent=11 // pred_check
          %p353 = pneg %p153
        $region30: #{tpu_custom_call.1} parent=11 // pred_check_branch
          %355 = sbr.rel (%p353) target = $region32
        $region31: #{tpu_custom_call.1} parent=11 // pred_region
          _
        $region32: #{tpu_custom_call.1} parent=11 // pred_fallthru
          _
        // Predicated region
        $region33: #{tpu_custom_call.1} parent=11 // pred_check
          %p356 = pneg %p174
        $region34: #{tpu_custom_call.1} parent=11 // pred_check_branch
          %358 = sbr.rel (%p356) target = $region36
        $region35: #{tpu_custom_call.1} parent=11 // pred_region
          _
        $region36: #{tpu_custom_call.1} parent=11 // pred_fallthru
          _
        // Predicated region
        $region37: #{tpu_custom_call.1} parent=11 // pred_check
          %p359 = pneg %p195
        $region38: #{tpu_custom_call.1} parent=11 // pred_check_branch
          %361 = sbr.rel (%p359) target = $region40
        $region39: #{tpu_custom_call.1} parent=11 // pred_region
          _
        $region40: #{tpu_custom_call.1} parent=11 // pred_fallthru
          _
        // Predicated region
        $region41: #{tpu_custom_call.1} parent=11 // pred_check
          %p362 = pneg %p216
        $region42: #{tpu_custom_call.1} parent=11 // pred_check_branch
          %364 = sbr.rel (%p362) target = $region44
        $region43: #{tpu_custom_call.1} parent=11 // pred_region
          _
        $region44: #{tpu_custom_call.1} parent=11 // pred_fallthru
          _
        // Predicated region
        $region45: #{tpu_custom_call.1} parent=11 // pred_check
          %p365 = pneg %p237
        $region46: #{tpu_custom_call.1} parent=11 // pred_check_branch
          %367 = sbr.rel (%p365) target = $region48
        $region47: #{tpu_custom_call.1} parent=11 // pred_region
          _
        $region48: #{tpu_custom_call.1} parent=11 // pred_fallthru
          _
        // Predicated region
        $region49: #{tpu_custom_call.1} parent=11 // pred_check
          %p368 = pneg %p258
        $region50: #{tpu_custom_call.1} parent=11 // pred_check_branch
          %370 = sbr.rel (%p368) target = $region52
        $region51: #{tpu_custom_call.1} parent=11 // pred_region
          _
        $region52: #{tpu_custom_call.1} parent=11 // pred_fallthru
          _
        // Predicated region
        $region53: #{tpu_custom_call.1} parent=11 // pred_check
          %p371 = pneg %p279
        $region54: #{tpu_custom_call.1} parent=11 // pred_check_branch
          %373 = sbr.rel (%p371) target = $region56
        $region55: #{tpu_custom_call.1} parent=11 // pred_region
          _
        $region56: #{tpu_custom_call.1} parent=11 // pred_fallthru
          _
        // Predicated region
        $region57: #{tpu_custom_call.1} parent=11 // pred_check
          %p374 = pneg %p300
        $region58: #{tpu_custom_call.1} parent=11 // pred_check_branch
          %376 = sbr.rel (%p374) target = $region60
        $region59: #{tpu_custom_call.1} parent=11 // pred_region
          _
        $region60: #{tpu_custom_call.1} parent=11 // pred_fallthru
          _
      $region12: #{tpu_custom_call.1} parent=5 // pred_fallthru
        _
      %p377 = scmp.lt.s32.totalorder %s22, 2
      // Predicated region
      $region61: #{tpu_custom_call.1} parent=5 // pred_check
        %p378 = pneg %p377
      $region62: #{tpu_custom_call.1} parent=5 // pred_check_branch
        %380 = sbr.rel (%p378) target = $region64
      $region63: #{tpu_custom_call.1} parent=5 // pred_region
        // Predicated region
        $region65: #{tpu_custom_call.1} parent=63 // pred_check
          %p381 = pneg %p42
        $region66: #{tpu_custom_call.1} parent=63 // pred_check_branch
          %383 = sbr.rel (%p381) target = $region68
        $region67: #{tpu_custom_call.1} parent=63 // pred_region
          %p384 = scmp.lt.s32.totalorder %s22, 1
          %s385 = scalar_select %p384, %s22, 1
          %s386 = smul.addr %s385, 8
          %s387 = scalar_lea.vmem %s0, %s386
        $region68: #{tpu_custom_call.1} parent=63 // pred_fallthru
          _
      $region64: #{tpu_custom_call.1} parent=5 // pred_fallthru
        _
      %p388 = scmp.le.s32.totalorder 1, %s22
      %p389 = scmp.lt.s32.totalorder %s22, 3
      %p390 = pnand %p388, %p389
      %p391 = pneg %p390
      // Predicated region
      $region69: #{tpu_custom_call.1} parent=5 // pred_check
        _
      $region70: #{tpu_custom_call.1} parent=5 // pred_check_branch
        %393 = sbr.rel (%p390) target = $region72
      $region71: #{tpu_custom_call.1} parent=5 // pred_region
        %s394 = ssub.s32 %s22, 1
        %p395 = scmp.lt.s32.totalorder %s27, 1
        %s396 = scalar_select %p395, %s27, 1
        %s397 = smul.addr %s396, 8
        %s398 = scalar_lea.vmem %s0, %s397
        %p399 = pneg %p48
        %p400 = pneg %p45
        %p401 = pneg %p69
        %p402 = pneg %p66
        %p403 = pneg %p90
        %p404 = pneg %p87
        %p405 = pneg %p111
        %p406 = pneg %p108
        %p407 = pneg %p132
        %p408 = pneg %p129
        %p409 = pneg %p153
        %p410 = pneg %p150
        %p411 = pneg %p174
        %p412 = pneg %p171
        %p413 = pneg %p195
        %p414 = pneg %p192
        %p415 = pneg %p216
        %p416 = pneg %p213
        %p417 = pneg %p237
        %p418 = pneg %p234
        %p419 = pneg %p258
        %p420 = pneg %p255
        %p421 = pneg %p279
        %p422 = pneg %p276
        %p423 = pneg %p300
        %p424 = pneg %p297
        %p425 = pneg %p326
        %p426 = pneg %p323
        %s427 = sand.u32 %s313, 1
        %s428 = scalar_lea.sflag [#allocation3], %s427
        %s429 = sand.u32 %s313, 1
        %s430 = scalar_lea.vmem [#allocation2], %s429
        %p431 = scmp.lt.s32.totalorder %s27, 1
        %s432 = scalar_select %p431, %s27, 1
        %s433 = smul.addr %s432, 8
        %s434 = scalar_lea.vmem %s0, %s433
        %v435 = vld [vmem:[%s434] sm:$0xff]
        %v436 = vld [vmem:[%s1] sm:$0xff]
        %v437 = vld [vmem:[%s1 + $0x8] sm:$0xff]
        %v438 = vld [vmem:[%s1 + $0x10] sm:$0xff]
        %v439 = vld [vmem:[%s1 + $0x18] sm:$0xff]
        %v440 = vld [vmem:[%s2] sm:$0x1]
        %v442 = vlaneseq
        %v443 = vshrl.u32 %v442, 7
        %v444 = vsub.s32 0, %v443
        %v445 = vrot.slane %v440, %v444
        %vm447 = vcmask 261120
        %v449 = vsel %vm447, %v435, 0
        %451 = vmatprep.subr.mxu0 0.0
        %452 = vmatpush1.msra.mxu0 0.0
        %453 = vmatprep.subr.mxu0 0.0
        %454 = vmatpush1.msra.mxu0 0.0
        %455 = vmatprep.subr.mxu0 0.0
        %456 = vmatpush1.msra.mxu0 0.0
        %457 = vmatprep.subr.mxu0 0.0
        %458 = vmatpush1.msra.mxu0 0.0
        %459 = vmatprep.subr.mxu0 0.0
        %460 = vmatpush1.msra.mxu0 0.0
        %461 = vmatprep.subr.mxu0 0.0
        %462 = vmatpush1.msra.mxu0 0.0
        %463 = vmatprep.subr.mxu0 0.0
        %464 = vmatpush1.msra.mxu0 0.0
        %465 = vmatprep.subr.mxu0 0.0
        %466 = vmatpush1.msra.mxu0 0.0
        %467 = vmatprep.subr.mxu0 0.0
        %468 = vmatpush1.msra.mxu0 0.0
        %469 = vmatprep.subr.mxu0 0.0
        %470 = vmatpush1.msra.mxu0 0.0
        %471 = vmatprep.subr.mxu0 0.0
        %472 = vmatpush1.msra.mxu0 0.0
        %473 = vmatprep.subr.mxu0 0.0
        %474 = vmatpush1.msra.mxu0 0.0
        %475 = vmatprep.subr.mxu0 0.0
        %476 = vmatpush1.msra.mxu0 %v439
        %477 = vmatprep.subr.mxu0 0.0
        %478 = vmatpush1.msra.mxu0 %v438
        %479 = vmatprep.subr.mxu0 0.0
        %480 = vmatpush1.msra.mxu0 %v437
        %481 = vmatprep.subr.mxu0 0.0
        %482 = vmatpush1.msra.mxu0 %v436
        %483 = vmatprep.subr.mxu0 0.0
        %484 = vmatpush2.msra.mxu0 0.0
        %485 = vmatprep.subr.mxu0 0.0
        %486 = vmatpush2.msra.mxu0 0.0
        %487 = vmatprep.subr.mxu0 0.0
        %488 = vmatpush2.msra.mxu0 0.0
        %489 = vmatprep.subr.mxu0 0.0
        %490 = vmatpush2.msra.mxu0 0.0
        %491 = vmatprep.subr.mxu0 0.0
        %492 = vmatpush2.msra.mxu0 0.0
        %493 = vmatprep.subr.mxu0 0.0
        %494 = vmatpush2.msra.mxu0 0.0
        %495 = vmatprep.subr.mxu0 0.0
        %496 = vmatpush2.msra.mxu0 0.0
        %497 = vmatprep.subr.mxu0 0.0
        %498 = vmatpush2.msra.mxu0 0.0
        %499 = vmatprep.subr.mxu0 0.0
        %500 = vmatpush2.msra.mxu0 0.0
        %501 = vmatprep.subr.mxu0 0.0
        %502 = vmatpush2.msra.mxu0 0.0
        %503 = vmatprep.subr.mxu0 0.0
        %504 = vmatpush2.msra.mxu0 0.0
        %505 = vmatprep.subr.mxu0 0.0
        %506 = vmatpush2.msra.mxu0 0.0
        %507 = vmatprep.subr.mxu0 0.0
        %508 = vmatpush2.msra.mxu0 0.0
        %509 = vmatprep.subr.mxu0 0.0
        %510 = vmatpush2.msra.mxu0 0.0
        %511 = vmatprep.subr.mxu0 0.0
        %512 = vmatpush2.msra.mxu0 0.0
        %513 = vmatprep.subr.mxu0 0.0
        %514 = vmatpush2.msra.mxu0 0.0
        %515 = vmatprep.mubr.f32.mxu0 0.0
        %516 = vmatmul.mubr.f32.gmra.mxu0 %v449
        %v517 = vpop.f32.mrf.mxu0
        %v518 = vadd.f32 %v445, %v517
        %v519 = vpop.f32.mrf.mxu0
        %520 = vdwg.mxu0
        %522 = vrot.lane.b32.xlu0 %v518, 96
        %v523 = vpop.permute.xlu0 %522
        %vm524 = vcmask 64512
        %v525 = vsel %vm524, %v518, 0
        %v527 = vsel %vm524, %v523, 0
        %529 = vmatprep.subr.mxu0 0.0
        %530 = vmatpush1.xpose.msra.mxu0 0.0
        %531 = vmatprep.subr.mxu0 0.0
        %532 = vmatpush1.xpose.msra.mxu0 0.0
        %533 = vmatprep.subr.mxu0 0.0
        %534 = vmatpush1.xpose.msra.mxu0 0.0
        %535 = vmatprep.subr.mxu0 0.0
        %536 = vmatpush1.xpose.msra.mxu0 0.0
        %537 = vmatprep.subr.mxu0 0.0
        %538 = vmatpush1.xpose.msra.mxu0 0.0
        %539 = vmatprep.subr.mxu0 0.0
        %540 = vmatpush1.xpose.msra.mxu0 0.0
        %541 = vmatprep.subr.mxu0 0.0
        %542 = vmatpush1.xpose.msra.mxu0 0.0
        %543 = vmatprep.subr.mxu0 0.0
        %544 = vmatpush1.xpose.msra.mxu0 0.0
        %545 = vmatprep.subr.mxu0 0.0
        %546 = vmatpush1.xpose.msra.mxu0 0.0
        %547 = vmatprep.subr.mxu0 0.0
        %548 = vmatpush1.xpose.msra.mxu0 0.0
        %549 = vmatprep.subr.mxu0 0.0
        %550 = vmatpush1.xpose.msra.mxu0 0.0
        %551 = vmatprep.subr.mxu0 0.0
        %552 = vmatpush1.xpose.msra.mxu0 0.0
        %553 = vmatprep.subr.mxu0 0.0
        %554 = vmatpush1.xpose.msra.mxu0 0.0
        %555 = vmatprep.subr.mxu0 0.0
        %556 = vmatpush1.xpose.msra.mxu0 0.0
        %557 = vmatprep.subr.mxu0 0.0
        %558 = vmatpush1.xpose.msra.mxu0 0.0
        %559 = vmatprep.subr.mxu0 0.0
        %560 = vmatpush1.xpose.msra.mxu0 %v527
        %561 = vmatprep.subr.mxu0 0.0
        %562 = vmatpush2.xpose.msra.mxu0 0.0
        %563 = vmatprep.subr.mxu0 0.0
        %564 = vmatpush2.xpose.msra.mxu0 0.0
        %565 = vmatprep.subr.mxu0 0.0
        %566 = vmatpush2.xpose.msra.mxu0 0.0
        %567 = vmatprep.subr.mxu0 0.0
        %568 = vmatpush2.xpose.msra.mxu0 0.0
        %569 = vmatprep.subr.mxu0 0.0
        %570 = vmatpush2.xpose.msra.mxu0 0.0
        %571 = vmatprep.subr.mxu0 0.0
        %572 = vmatpush2.xpose.msra.mxu0 0.0
        %573 = vmatprep.subr.mxu0 0.0
        %574 = vmatpush2.xpose.msra.mxu0 0.0
        %575 = vmatprep.subr.mxu0 0.0
        %576 = vmatpush2.xpose.msra.mxu0 0.0
        %577 = vmatprep.subr.mxu0 0.0
        %578 = vmatpush2.xpose.msra.mxu0 0.0
        %579 = vmatprep.subr.mxu0 0.0
        %580 = vmatpush2.xpose.msra.mxu0 0.0
        %581 = vmatprep.subr.mxu0 0.0
        %582 = vmatpush2.xpose.msra.mxu0 0.0
        %583 = vmatprep.subr.mxu0 0.0
        %584 = vmatpush2.xpose.msra.mxu0 0.0
        %585 = vmatprep.subr.mxu0 0.0
        %586 = vmatpush2.xpose.msra.mxu0 0.0
        %587 = vmatprep.subr.mxu0 0.0
        %588 = vmatpush2.xpose.msra.mxu0 0.0
        %589 = vmatprep.subr.mxu0 0.0
        %590 = vmatpush2.xpose.msra.mxu0 0.0
        %591 = vmatprep.subr.mxu0 0.0
        %592 = vmatpush2.xpose.msra.mxu0 0.0
        %593 = vmatprep.mubr.f32.mxu0 0.0
        %594 = vmatmul.mubr.f32.gmra.mxu0 %v525
        %v595 = vpop.f32.mrf.mxu0
        %v596 = vadd.f32 0.0, %v595
        %v597 = vpop.f32.mrf.mxu0
        %598 = vdwg.mxu0
        %v599 = vmul.f32 %v596, 0.35355338
        %v600 = vsel %vm524, %v599, -inf
        %601 = vmax.xlane.f32.xlu0 %v600
        %v602 = vpop.xlane.xlu0 %601
        %v603 = vsub.f32 %v599, %v602
        %v604 = vmul.f32 %v603, 1.442695
        %v605 = vpow.pop %v604
        %v606 = vsel %vm524, %v605, 0.0
        %607 = vadd.xlane.f32.xlu0 %v606
        %v608 = vpop.xlane.xlu0 %607
        %v609 = vrcp.pop %v608
        %v610 = vmul.f32 %v605, %v609
        %611 = vrot.lane.b32.xlu0 %v518, 64
        %v612 = vpop.permute.xlu0 %611
        %v615 = vsel %vm524, %v610, 0
        %617 = vmatprep.subr.mxu0 0.0
        %618 = vmatpush1.msra.mxu0 0.0
        %619 = vmatprep.subr.mxu0 0.0
        %620 = vmatpush1.msra.mxu0 0.0
        %621 = vmatprep.subr.mxu0 0.0
        %622 = vmatpush1.msra.mxu0 0.0
        %623 = vmatprep.subr.mxu0 0.0
        %624 = vmatpush1.msra.mxu0 0.0
        %625 = vmatprep.subr.mxu0 0.0
        %626 = vmatpush1.msra.mxu0 0.0
        %627 = vmatprep.subr.mxu0 0.0
        %628 = vmatpush1.msra.mxu0 0.0
        %629 = vmatprep.subr.mxu0 0.0
        %630 = vmatpush1.msra.mxu0 0.0
        %631 = vmatprep.subr.mxu0 0.0
        %632 = vmatpush1.msra.mxu0 0.0
        %633 = vmatprep.subr.mxu0 0.0
        %634 = vmatpush1.msra.mxu0 0.0
        %635 = vmatprep.subr.mxu0 0.0
        %636 = vmatpush1.msra.mxu0 0.0
        %637 = vmatprep.subr.mxu0 0.0
        %638 = vmatpush1.msra.mxu0 0.0
        %639 = vmatprep.subr.mxu0 0.0
        %640 = vmatpush1.msra.mxu0 0.0
        %641 = vmatprep.subr.mxu0 0.0
        %642 = vmatpush1.msra.mxu0 0.0
        %643 = vmatprep.subr.mxu0 0.0
        %644 = vmatpush1.msra.mxu0 0.0
        %645 = vmatprep.subr.mxu0 0.0
        %646 = vmatpush1.msra.mxu0 0.0
        %647 = vmatprep.subr.mxu0 0.0
        %648 = vmatpush1.msra.mxu0 %v612
        %649 = vmatprep.subr.mxu0 0.0
        %650 = vmatpush2.msra.mxu0 0.0
        %651 = vmatprep.subr.mxu0 0.0
        %652 = vmatpush2.msra.mxu0 0.0
        %653 = vmatprep.subr.mxu0 0.0
        %654 = vmatpush2.msra.mxu0 0.0
        %655 = vmatprep.subr.mxu0 0.0
        %656 = vmatpush2.msra.mxu0 0.0
        %657 = vmatprep.subr.mxu0 0.0
        %658 = vmatpush2.msra.mxu0 0.0
        %659 = vmatprep.subr.mxu0 0.0
        %660 = vmatpush2.msra.mxu0 0.0
        %661 = vmatprep.subr.mxu0 0.0
        %662 = vmatpush2.msra.mxu0 0.0
        %663 = vmatprep.subr.mxu0 0.0
        %664 = vmatpush2.msra.mxu0 0.0
        %665 = vmatprep.subr.mxu0 0.0
        %666 = vmatpush2.msra.mxu0 0.0
        %667 = vmatprep.subr.mxu0 0.0
        %668 = vmatpush2.msra.mxu0 0.0
        %669 = vmatprep.subr.mxu0 0.0
        %670 = vmatpush2.msra.mxu0 0.0
        %671 = vmatprep.subr.mxu0 0.0
        %672 = vmatpush2.msra.mxu0 0.0
        %673 = vmatprep.subr.mxu0 0.0
        %674 = vmatpush2.msra.mxu0 0.0
        %675 = vmatprep.subr.mxu0 0.0
        %676 = vmatpush2.msra.mxu0 0.0
        %677 = vmatprep.subr.mxu0 0.0
        %678 = vmatpush2.msra.mxu0 0.0
        %679 = vmatprep.subr.mxu0 0.0
        %680 = vmatpush2.msra.mxu0 0.0
        %681 = vmatprep.mubr.f32.mxu0 0.0
        %682 = vmatmul.mubr.f32.gmra.mxu0 %v615
        %v683 = vpop.f32.mrf.mxu0
        %v684 = vadd.f32 0.0, %v683
        %v685 = vpop.f32.mrf.mxu0
        %686 = vdwg.mxu0
        %687 = vrot.lane.b32.xlu0 %v518, 120
        %v688 = vpop.permute.xlu0 %687
        %689 = vrot.lane.b32.xlu0 %v518, 88
        %v690 = vpop.permute.xlu0 %689
        %v691 = vsel %vm524, %v688, 0
        %v693 = vsel %vm524, %v690, 0
        %695 = vmatprep.subr.mxu0 0.0
        %696 = vmatpush1.xpose.msra.mxu0 0.0
        %697 = vmatprep.subr.mxu0 0.0
        %698 = vmatpush1.xpose.msra.mxu0 0.0
        %699 = vmatprep.subr.mxu0 0.0
        %700 = vmatpush1.xpose.msra.mxu0 0.0
        %701 = vmatprep.subr.mxu0 0.0
        %702 = vmatpush1.xpose.msra.mxu0 0.0
        %703 = vmatprep.subr.mxu0 0.0
        %704 = vmatpush1.xpose.msra.mxu0 0.0
        %705 = vmatprep.subr.mxu0 0.0
        %706 = vmatpush1.xpose.msra.mxu0 0.0
        %707 = vmatprep.subr.mxu0 0.0
        %708 = vmatpush1.xpose.msra.mxu0 0.0
        %709 = vmatprep.subr.mxu0 0.0
        %710 = vmatpush1.xpose.msra.mxu0 0.0
        %711 = vmatprep.subr.mxu0 0.0
        %712 = vmatpush1.xpose.msra.mxu0 0.0
        %713 = vmatprep.subr.mxu0 0.0
        %714 = vmatpush1.xpose.msra.mxu0 0.0
        %715 = vmatprep.subr.mxu0 0.0
        %716 = vmatpush1.xpose.msra.mxu0 0.0
        %717 = vmatprep.subr.mxu0 0.0
        %718 = vmatpush1.xpose.msra.mxu0 0.0
        %719 = vmatprep.subr.mxu0 0.0
        %720 = vmatpush1.xpose.msra.mxu0 0.0
        %721 = vmatprep.subr.mxu0 0.0
        %722 = vmatpush1.xpose.msra.mxu0 0.0
        %723 = vmatprep.subr.mxu0 0.0
        %724 = vmatpush1.xpose.msra.mxu0 0.0
        %725 = vmatprep.subr.mxu0 0.0
        %726 = vmatpush1.xpose.msra.mxu0 %v693
        %727 = vmatprep.subr.mxu0 0.0
        %728 = vmatpush2.xpose.msra.mxu0 0.0
        %729 = vmatprep.subr.mxu0 0.0
        %730 = vmatpush2.xpose.msra.mxu0 0.0
        %731 = vmatprep.subr.mxu0 0.0
        %732 = vmatpush2.xpose.msra.mxu0 0.0
        %733 = vmatprep.subr.mxu0 0.0
        %734 = vmatpush2.xpose.msra.mxu0 0.0
        %735 = vmatprep.subr.mxu0 0.0
        %736 = vmatpush2.xpose.msra.mxu0 0.0
        %737 = vmatprep.subr.mxu0 0.0
        %738 = vmatpush2.xpose.msra.mxu0 0.0
        %739 = vmatprep.subr.mxu0 0.0
        %740 = vmatpush2.xpose.msra.mxu0 0.0
        %741 = vmatprep.subr.mxu0 0.0
        %742 = vmatpush2.xpose.msra.mxu0 0.0
        %743 = vmatprep.subr.mxu0 0.0
        %744 = vmatpush2.xpose.msra.mxu0 0.0
        %745 = vmatprep.subr.mxu0 0.0
        %746 = vmatpush2.xpose.msra.mxu0 0.0
        %747 = vmatprep.subr.mxu0 0.0
        %748 = vmatpush2.xpose.msra.mxu0 0.0
        %749 = vmatprep.subr.mxu0 0.0
        %750 = vmatpush2.xpose.msra.mxu0 0.0
        %751 = vmatprep.subr.mxu0 0.0
        %752 = vmatpush2.xpose.msra.mxu0 0.0
        %753 = vmatprep.subr.mxu0 0.0
        %754 = vmatpush2.xpose.msra.mxu0 0.0
        %755 = vmatprep.subr.mxu0 0.0
        %756 = vmatpush2.xpose.msra.mxu0 0.0
        %757 = vmatprep.subr.mxu0 0.0
        %758 = vmatpush2.xpose.msra.mxu0 0.0
        %759 = vmatprep.mubr.f32.mxu0 0.0
        %760 = vmatmul.mubr.f32.gmra.mxu0 %v691
        %v761 = vpop.f32.mrf.mxu0
        %v762 = vadd.f32 0.0, %v761
        %v763 = vpop.f32.mrf.mxu0
        %764 = vdwg.mxu0
        %v765 = vmul.f32 %v762, 0.35355338
        %v766 = vsel %vm524, %v765, -inf
        %767 = vmax.xlane.f32.xlu0 %v766
        %v768 = vpop.xlane.xlu0 %767
        %v769 = vsub.f32 %v765, %v768
        %v770 = vmul.f32 %v769, 1.442695
        %v771 = vpow.pop %v770
        %v772 = vsel %vm524, %v771, 0.0
        %773 = vadd.xlane.f32.xlu0 %v772
        %v774 = vpop.xlane.xlu0 %773
        %v775 = vrcp.pop %v774
        %v776 = vmul.f32 %v771, %v775
        %777 = vrot.lane.b32.xlu0 %v518, 56
        %v778 = vpop.permute.xlu0 %777
        %v781 = vsel %vm524, %v776, 0
        %783 = vmatprep.subr.mxu0 0.0
        %784 = vmatpush1.msra.mxu0 0.0
        %785 = vmatprep.subr.mxu0 0.0
        %786 = vmatpush1.msra.mxu0 0.0
        %787 = vmatprep.subr.mxu0 0.0
        %788 = vmatpush1.msra.mxu0 0.0
        %789 = vmatprep.subr.mxu0 0.0
        %790 = vmatpush1.msra.mxu0 0.0
        %791 = vmatprep.subr.mxu0 0.0
        %792 = vmatpush1.msra.mxu0 0.0
        %793 = vmatprep.subr.mxu0 0.0
        %794 = vmatpush1.msra.mxu0 0.0
        %795 = vmatprep.subr.mxu0 0.0
        %796 = vmatpush1.msra.mxu0 0.0
        %797 = vmatprep.subr.mxu0 0.0
        %798 = vmatpush1.msra.mxu0 0.0
        %799 = vmatprep.subr.mxu0 0.0
        %800 = vmatpush1.msra.mxu0 0.0
        %801 = vmatprep.subr.mxu0 0.0
        %802 = vmatpush1.msra.mxu0 0.0
        %803 = vmatprep.subr.mxu0 0.0
        %804 = vmatpush1.msra.mxu0 0.0
        %805 = vmatprep.subr.mxu0 0.0
        %806 = vmatpush1.msra.mxu0 0.0
        %807 = vmatprep.subr.mxu0 0.0
        %808 = vmatpush1.msra.mxu0 0.0
        %809 = vmatprep.subr.mxu0 0.0
        %810 = vmatpush1.msra.mxu0 0.0
        %811 = vmatprep.subr.mxu0 0.0
        %812 = vmatpush1.msra.mxu0 0.0
        %813 = vmatprep.subr.mxu0 0.0
        %814 = vmatpush1.msra.mxu0 %v778
        %815 = vmatprep.subr.mxu0 0.0
        %816 = vmatpush2.msra.mxu0 0.0
        %817 = vmatprep.subr.mxu0 0.0
        %818 = vmatpush2.msra.mxu0 0.0
        %819 = vmatprep.subr.mxu0 0.0
        %820 = vmatpush2.msra.mxu0 0.0
        %821 = vmatprep.subr.mxu0 0.0
        %822 = vmatpush2.msra.mxu0 0.0
        %823 = vmatprep.subr.mxu0 0.0
        %824 = vmatpush2.msra.mxu0 0.0
        %825 = vmatprep.subr.mxu0 0.0
        %826 = vmatpush2.msra.mxu0 0.0
        %827 = vmatprep.subr.mxu0 0.0
        %828 = vmatpush2.msra.mxu0 0.0
        %829 = vmatprep.subr.mxu0 0.0
        %830 = vmatpush2.msra.mxu0 0.0
        %831 = vmatprep.subr.mxu0 0.0
        %832 = vmatpush2.msra.mxu0 0.0
        %833 = vmatprep.subr.mxu0 0.0
        %834 = vmatpush2.msra.mxu0 0.0
        %835 = vmatprep.subr.mxu0 0.0
        %836 = vmatpush2.msra.mxu0 0.0
        %837 = vmatprep.subr.mxu0 0.0
        %838 = vmatpush2.msra.mxu0 0.0
        %839 = vmatprep.subr.mxu0 0.0
        %840 = vmatpush2.msra.mxu0 0.0
        %841 = vmatprep.subr.mxu0 0.0
        %842 = vmatpush2.msra.mxu0 0.0
        %843 = vmatprep.subr.mxu0 0.0
        %844 = vmatpush2.msra.mxu0 0.0
        %845 = vmatprep.subr.mxu0 0.0
        %846 = vmatpush2.msra.mxu0 0.0
        %847 = vmatprep.mubr.f32.mxu0 0.0
        %848 = vmatmul.mubr.f32.gmra.mxu0 %v781
        %v849 = vpop.f32.mrf.mxu0
        %v850 = vadd.f32 0.0, %v849
        %v851 = vpop.f32.mrf.mxu0
        %852 = vdwg.mxu0
        %853 = vrot.lane.b32.xlu0 %v518, 112
        %v854 = vpop.permute.xlu0 %853
        %855 = vrot.lane.b32.xlu0 %v518, 80
        %v856 = vpop.permute.xlu0 %855
        %v857 = vsel %vm524, %v854, 0
        %v859 = vsel %vm524, %v856, 0
        %861 = vmatprep.subr.mxu0 0.0
        %862 = vmatpush1.xpose.msra.mxu0 0.0
        %863 = vmatprep.subr.mxu0 0.0
        %864 = vmatpush1.xpose.msra.mxu0 0.0
        %865 = vmatprep.subr.mxu0 0.0
        %866 = vmatpush1.xpose.msra.mxu0 0.0
        %867 = vmatprep.subr.mxu0 0.0
        %868 = vmatpush1.xpose.msra.mxu0 0.0
        %869 = vmatprep.subr.mxu0 0.0
        %870 = vmatpush1.xpose.msra.mxu0 0.0
        %871 = vmatprep.subr.mxu0 0.0
        %872 = vmatpush1.xpose.msra.mxu0 0.0
        %873 = vmatprep.subr.mxu0 0.0
        %874 = vmatpush1.xpose.msra.mxu0 0.0
        %875 = vmatprep.subr.mxu0 0.0
        %876 = vmatpush1.xpose.msra.mxu0 0.0
        %877 = vmatprep.subr.mxu0 0.0
        %878 = vmatpush1.xpose.msra.mxu0 0.0
        %879 = vmatprep.subr.mxu0 0.0
        %880 = vmatpush1.xpose.msra.mxu0 0.0
        %881 = vmatprep.subr.mxu0 0.0
        %882 = vmatpush1.xpose.msra.mxu0 0.0
        %883 = vmatprep.subr.mxu0 0.0
        %884 = vmatpush1.xpose.msra.mxu0 0.0
        %885 = vmatprep.subr.mxu0 0.0
        %886 = vmatpush1.xpose.msra.mxu0 0.0
        %887 = vmatprep.subr.mxu0 0.0
        %888 = vmatpush1.xpose.msra.mxu0 0.0
        %889 = vmatprep.subr.mxu0 0.0
        %890 = vmatpush1.xpose.msra.mxu0 0.0
        %891 = vmatprep.subr.mxu0 0.0
        %892 = vmatpush1.xpose.msra.mxu0 %v859
        %893 = vmatprep.subr.mxu0 0.0
        %894 = vmatpush2.xpose.msra.mxu0 0.0
        %895 = vmatprep.subr.mxu0 0.0
        %896 = vmatpush2.xpose.msra.mxu0 0.0
        %897 = vmatprep.subr.mxu0 0.0
        %898 = vmatpush2.xpose.msra.mxu0 0.0
        %899 = vmatprep.subr.mxu0 0.0
        %900 = vmatpush2.xpose.msra.mxu0 0.0
        %901 = vmatprep.subr.mxu0 0.0
        %902 = vmatpush2.xpose.msra.mxu0 0.0
        %903 = vmatprep.subr.mxu0 0.0
        %904 = vmatpush2.xpose.msra.mxu0 0.0
        %905 = vmatprep.subr.mxu0 0.0
        %906 = vmatpush2.xpose.msra.mxu0 0.0
        %907 = vmatprep.subr.mxu0 0.0
        %908 = vmatpush2.xpose.msra.mxu0 0.0
        %909 = vmatprep.subr.mxu0 0.0
        %910 = vmatpush2.xpose.msra.mxu0 0.0
        %911 = vmatprep.subr.mxu0 0.0
        %912 = vmatpush2.xpose.msra.mxu0 0.0
        %913 = vmatprep.subr.mxu0 0.0
        %914 = vmatpush2.xpose.msra.mxu0 0.0
        %915 = vmatprep.subr.mxu0 0.0
        %916 = vmatpush2.xpose.msra.mxu0 0.0
        %917 = vmatprep.subr.mxu0 0.0
        %918 = vmatpush2.xpose.msra.mxu0 0.0
        %919 = vmatprep.subr.mxu0 0.0
        %920 = vmatpush2.xpose.msra.mxu0 0.0
        %921 = vmatprep.subr.mxu0 0.0
        %922 = vmatpush2.xpose.msra.mxu0 0.0
        %923 = vmatprep.subr.mxu0 0.0
        %924 = vmatpush2.xpose.msra.mxu0 0.0
        %925 = vmatprep.mubr.f32.mxu0 0.0
        %926 = vmatmul.mubr.f32.gmra.mxu0 %v857
        %v927 = vpop.f32.mrf.mxu0
        %v928 = vadd.f32 0.0, %v927
        %v929 = vpop.f32.mrf.mxu0
        %930 = vdwg.mxu0
        %v931 = vmul.f32 %v928, 0.35355338
        %v932 = vsel %vm524, %v931, -inf
        %933 = vmax.xlane.f32.xlu0 %v932
        %v934 = vpop.xlane.xlu0 %933
        %v935 = vsub.f32 %v931, %v934
        %v936 = vmul.f32 %v935, 1.442695
        %v937 = vpow.pop %v936
        %v938 = vsel %vm524, %v937, 0.0
        %939 = vadd.xlane.f32.xlu0 %v938
        %v940 = vpop.xlane.xlu0 %939
        %v941 = vrcp.pop %v940
        %v942 = vmul.f32 %v937, %v941
        %943 = vrot.lane.b32.xlu0 %v518, 48
        %v944 = vpop.permute.xlu0 %943
        %v947 = vsel %vm524, %v942, 0
        %949 = vmatprep.subr.mxu0 0.0
        %950 = vmatpush1.msra.mxu0 0.0
        %951 = vmatprep.subr.mxu0 0.0
        %952 = vmatpush1.msra.mxu0 0.0
        %953 = vmatprep.subr.mxu0 0.0
        %954 = vmatpush1.msra.mxu0 0.0
        %955 = vmatprep.subr.mxu0 0.0
        %956 = vmatpush1.msra.mxu0 0.0
        %957 = vmatprep.subr.mxu0 0.0
        %958 = vmatpush1.msra.mxu0 0.0
        %959 = vmatprep.subr.mxu0 0.0
        %960 = vmatpush1.msra.mxu0 0.0
        %961 = vmatprep.subr.mxu0 0.0
        %962 = vmatpush1.msra.mxu0 0.0
        %963 = vmatprep.subr.mxu0 0.0
        %964 = vmatpush1.msra.mxu0 0.0
        %965 = vmatprep.subr.mxu0 0.0
        %966 = vmatpush1.msra.mxu0 0.0
        %967 = vmatprep.subr.mxu0 0.0
        %968 = vmatpush1.msra.mxu0 0.0
        %969 = vmatprep.subr.mxu0 0.0
        %970 = vmatpush1.msra.mxu0 0.0
        %971 = vmatprep.subr.mxu0 0.0
        %972 = vmatpush1.msra.mxu0 0.0
        %973 = vmatprep.subr.mxu0 0.0
        %974 = vmatpush1.msra.mxu0 0.0
        %975 = vmatprep.subr.mxu0 0.0
        %976 = vmatpush1.msra.mxu0 0.0
        %977 = vmatprep.subr.mxu0 0.0
        %978 = vmatpush1.msra.mxu0 0.0
        %979 = vmatprep.subr.mxu0 0.0
        %980 = vmatpush1.msra.mxu0 %v944
        %981 = vmatprep.subr.mxu0 0.0
        %982 = vmatpush2.msra.mxu0 0.0
        %983 = vmatprep.subr.mxu0 0.0
        %984 = vmatpush2.msra.mxu0 0.0
        %985 = vmatprep.subr.mxu0 0.0
        %986 = vmatpush2.msra.mxu0 0.0
        %987 = vmatprep.subr.mxu0 0.0
        %988 = vmatpush2.msra.mxu0 0.0
        %989 = vmatprep.subr.mxu0 0.0
        %990 = vmatpush2.msra.mxu0 0.0
        %991 = vmatprep.subr.mxu0 0.0
        %992 = vmatpush2.msra.mxu0 0.0
        %993 = vmatprep.subr.mxu0 0.0
        %994 = vmatpush2.msra.mxu0 0.0
        %995 = vmatprep.subr.mxu0 0.0
        %996 = vmatpush2.msra.mxu0 0.0
        %997 = vmatprep.subr.mxu0 0.0
        %998 = vmatpush2.msra.mxu0 0.0
        %999 = vmatprep.subr.mxu0 0.0
        %1000 = vmatpush2.msra.mxu0 0.0
        %1001 = vmatprep.subr.mxu0 0.0
        %1002 = vmatpush2.msra.mxu0 0.0
        %1003 = vmatprep.subr.mxu0 0.0
        %1004 = vmatpush2.msra.mxu0 0.0
        %1005 = vmatprep.subr.mxu0 0.0
        %1006 = vmatpush2.msra.mxu0 0.0
        %1007 = vmatprep.subr.mxu0 0.0
        %1008 = vmatpush2.msra.mxu0 0.0
        %1009 = vmatprep.subr.mxu0 0.0
        %1010 = vmatpush2.msra.mxu0 0.0
        %1011 = vmatprep.subr.mxu0 0.0
        %1012 = vmatpush2.msra.mxu0 0.0
        %1013 = vmatprep.mubr.f32.mxu0 0.0
        %1014 = vmatmul.mubr.f32.gmra.mxu0 %v947
        %v1015 = vpop.f32.mrf.mxu0
        %v1016 = vadd.f32 0.0, %v1015
        %v1017 = vpop.f32.mrf.mxu0
        %1018 = vdwg.mxu0
        %1019 = vrot.lane.b32.xlu0 %v518, 104
        %v1020 = vpop.permute.xlu0 %1019
        %1021 = vrot.lane.b32.xlu0 %v518, 72
        %v1022 = vpop.permute.xlu0 %1021
        %v1023 = vsel %vm524, %v1020, 0
        %v1025 = vsel %vm524, %v1022, 0
        %1027 = vmatprep.subr.mxu0 0.0
        %1028 = vmatpush1.xpose.msra.mxu0 0.0
        %1029 = vmatprep.subr.mxu0 0.0
        %1030 = vmatpush1.xpose.msra.mxu0 0.0
        %1031 = vmatprep.subr.mxu0 0.0
        %1032 = vmatpush1.xpose.msra.mxu0 0.0
        %1033 = vmatprep.subr.mxu0 0.0
        %1034 = vmatpush1.xpose.msra.mxu0 0.0
        %1035 = vmatprep.subr.mxu0 0.0
        %1036 = vmatpush1.xpose.msra.mxu0 0.0
        %1037 = vmatprep.subr.mxu0 0.0
        %1038 = vmatpush1.xpose.msra.mxu0 0.0
        %1039 = vmatprep.subr.mxu0 0.0
        %1040 = vmatpush1.xpose.msra.mxu0 0.0
        %1041 = vmatprep.subr.mxu0 0.0
        %1042 = vmatpush1.xpose.msra.mxu0 0.0
        %1043 = vmatprep.subr.mxu0 0.0
        %1044 = vmatpush1.xpose.msra.mxu0 0.0
        %1045 = vmatprep.subr.mxu0 0.0
        %1046 = vmatpush1.xpose.msra.mxu0 0.0
        %1047 = vmatprep.subr.mxu0 0.0
        %1048 = vmatpush1.xpose.msra.mxu0 0.0
        %1049 = vmatprep.subr.mxu0 0.0
        %1050 = vmatpush1.xpose.msra.mxu0 0.0
        %1051 = vmatprep.subr.mxu0 0.0
        %1052 = vmatpush1.xpose.msra.mxu0 0.0
        %1053 = vmatprep.subr.mxu0 0.0
        %1054 = vmatpush1.xpose.msra.mxu0 0.0
        %1055 = vmatprep.subr.mxu0 0.0
        %1056 = vmatpush1.xpose.msra.mxu0 0.0
        %1057 = vmatprep.subr.mxu0 0.0
        %1058 = vmatpush1.xpose.msra.mxu0 %v1025
        %1059 = vmatprep.subr.mxu0 0.0
        %1060 = vmatpush2.xpose.msra.mxu0 0.0
        %1061 = vmatprep.subr.mxu0 0.0
        %1062 = vmatpush2.xpose.msra.mxu0 0.0
        %1063 = vmatprep.subr.mxu0 0.0
        %1064 = vmatpush2.xpose.msra.mxu0 0.0
        %1065 = vmatprep.subr.mxu0 0.0
        %1066 = vmatpush2.xpose.msra.mxu0 0.0
        %1067 = vmatprep.subr.mxu0 0.0
        %1068 = vmatpush2.xpose.msra.mxu0 0.0
        %1069 = vmatprep.subr.mxu0 0.0
        %1070 = vmatpush2.xpose.msra.mxu0 0.0
        %1071 = vmatprep.subr.mxu0 0.0
        %1072 = vmatpush2.xpose.msra.mxu0 0.0
        %1073 = vmatprep.subr.mxu0 0.0
        %1074 = vmatpush2.xpose.msra.mxu0 0.0
        %1075 = vmatprep.subr.mxu0 0.0
        %1076 = vmatpush2.xpose.msra.mxu0 0.0
        %1077 = vmatprep.subr.mxu0 0.0
        %1078 = vmatpush2.xpose.msra.mxu0 0.0
        %1079 = vmatprep.subr.mxu0 0.0
        %1080 = vmatpush2.xpose.msra.mxu0 0.0
        %1081 = vmatprep.subr.mxu0 0.0
        %1082 = vmatpush2.xpose.msra.mxu0 0.0
        %1083 = vmatprep.subr.mxu0 0.0
        %1084 = vmatpush2.xpose.msra.mxu0 0.0
        %1085 = vmatprep.subr.mxu0 0.0
        %1086 = vmatpush2.xpose.msra.mxu0 0.0
        %1087 = vmatprep.subr.mxu0 0.0
        %1088 = vmatpush2.xpose.msra.mxu0 0.0
        %1089 = vmatprep.subr.mxu0 0.0
        %1090 = vmatpush2.xpose.msra.mxu0 0.0
        %1091 = vmatprep.mubr.f32.mxu0 0.0
        %1092 = vmatmul.mubr.f32.gmra.mxu0 %v1023
        %v1093 = vpop.f32.mrf.mxu0
        %v1094 = vadd.f32 0.0, %v1093
        %v1095 = vpop.f32.mrf.mxu0
        %1096 = vdwg.mxu0
        %v1097 = vmul.f32 %v1094, 0.35355338
        %v1098 = vsel %vm524, %v1097, -inf
        %1099 = vmax.xlane.f32.xlu0 %v1098
        %v1100 = vpop.xlane.xlu0 %1099
        %v1101 = vsub.f32 %v1097, %v1100
        %v1102 = vmul.f32 %v1101, 1.442695
        %v1103 = vpow.pop %v1102
        %v1104 = vsel %vm524, %v1103, 0.0
        %1105 = vadd.xlane.f32.xlu0 %v1104
        %v1106 = vpop.xlane.xlu0 %1105
        %v1107 = vrcp.pop %v1106
        %v1108 = vmul.f32 %v1103, %v1107
        %1109 = vrot.lane.b32.xlu0 %v518, 40
        %v1110 = vpop.permute.xlu0 %1109
        %v1113 = vsel %vm524, %v1108, 0
        %1115 = vmatprep.subr.mxu0 0.0
        %1116 = vmatpush1.msra.mxu0 0.0
        %1117 = vmatprep.subr.mxu0 0.0
        %1118 = vmatpush1.msra.mxu0 0.0
        %1119 = vmatprep.subr.mxu0 0.0
        %1120 = vmatpush1.msra.mxu0 0.0
        %1121 = vmatprep.subr.mxu0 0.0
        %1122 = vmatpush1.msra.mxu0 0.0
        %1123 = vmatprep.subr.mxu0 0.0
        %1124 = vmatpush1.msra.mxu0 0.0
        %1125 = vmatprep.subr.mxu0 0.0
        %1126 = vmatpush1.msra.mxu0 0.0
        %1127 = vmatprep.subr.mxu0 0.0
        %1128 = vmatpush1.msra.mxu0 0.0
        %1129 = vmatprep.subr.mxu0 0.0
        %1130 = vmatpush1.msra.mxu0 0.0
        %1131 = vmatprep.subr.mxu0 0.0
        %1132 = vmatpush1.msra.mxu0 0.0
        %1133 = vmatprep.subr.mxu0 0.0
        %1134 = vmatpush1.msra.mxu0 0.0
        %1135 = vmatprep.subr.mxu0 0.0
        %1136 = vmatpush1.msra.mxu0 0.0
        %1137 = vmatprep.subr.mxu0 0.0
        %1138 = vmatpush1.msra.mxu0 0.0
        %1139 = vmatprep.subr.mxu0 0.0
        %1140 = vmatpush1.msra.mxu0 0.0
        %1141 = vmatprep.subr.mxu0 0.0
        %1142 = vmatpush1.msra.mxu0 0.0
        %1143 = vmatprep.subr.mxu0 0.0
        %1144 = vmatpush1.msra.mxu0 0.0
        %1145 = vmatprep.subr.mxu0 0.0
        %1146 = vmatpush1.msra.mxu0 %v1110
        %1147 = vmatprep.subr.mxu0 0.0
        %1148 = vmatpush2.msra.mxu0 0.0
        %1149 = vmatprep.subr.mxu0 0.0
        %1150 = vmatpush2.msra.mxu0 0.0
        %1151 = vmatprep.subr.mxu0 0.0
        %1152 = vmatpush2.msra.mxu0 0.0
        %1153 = vmatprep.subr.mxu0 0.0
        %1154 = vmatpush2.msra.mxu0 0.0
        %1155 = vmatprep.subr.mxu0 0.0
        %1156 = vmatpush2.msra.mxu0 0.0
        %1157 = vmatprep.subr.mxu0 0.0
        %1158 = vmatpush2.msra.mxu0 0.0
        %1159 = vmatprep.subr.mxu0 0.0
        %1160 = vmatpush2.msra.mxu0 0.0
        %1161 = vmatprep.subr.mxu0 0.0
        %1162 = vmatpush2.msra.mxu0 0.0
        %1163 = vmatprep.subr.mxu0 0.0
        %1164 = vmatpush2.msra.mxu0 0.0
        %1165 = vmatprep.subr.mxu0 0.0
        %1166 = vmatpush2.msra.mxu0 0.0
        %1167 = vmatprep.subr.mxu0 0.0
        %1168 = vmatpush2.msra.mxu0 0.0
        %1169 = vmatprep.subr.mxu0 0.0
        %1170 = vmatpush2.msra.mxu0 0.0
        %1171 = vmatprep.subr.mxu0 0.0
        %1172 = vmatpush2.msra.mxu0 0.0
        %1173 = vmatprep.subr.mxu0 0.0
        %1174 = vmatpush2.msra.mxu0 0.0
        %1175 = vmatprep.subr.mxu0 0.0
        %1176 = vmatpush2.msra.mxu0 0.0
        %1177 = vmatprep.subr.mxu0 0.0
        %1178 = vmatpush2.msra.mxu0 0.0
        %1179 = vmatprep.mubr.f32.mxu0 0.0
        %1180 = vmatmul.mubr.f32.gmra.mxu0 %v1113
        %v1181 = vpop.f32.mrf.mxu0
        %v1182 = vadd.f32 0.0, %v1181
        %v1183 = vpop.f32.mrf.mxu0
        %1184 = vdwg.mxu0
        %1186 = vrot.lane.b32.xlu0 %v850, 8
        %v1187 = vpop.permute.xlu0 %1186
        %1190 = vrot.lane.b32.xlu0 %v1016, 16
        %v1191 = vpop.permute.xlu0 %1190
        %1194 = vrot.lane.b32.xlu0 %v1182, 24
        %v1195 = vpop.permute.xlu0 %1194
        %v1197 = vsel %vm524, %v684, %v1187
        %vm1198 = vcmask 130048
        %v1199 = vsel %vm1198, %v1197, %v1191
        %vm1200 = vcmask 195584
        %v1201 = vsel %vm1200, %v1199, %v1195
        %v1202 = vld [vmem:[%s3] sm:$0xff]
        %v1203 = vld [vmem:[%s3 + $0x8] sm:$0xff]
        %v1204 = vld [vmem:[%s3 + $0x10] sm:$0xff]
        %v1205 = vld [vmem:[%s3 + $0x18] sm:$0xff]
        %v1206 = vld [vmem:[%s4] sm:$0x1]
        %v1208 = vlaneseq
        %v1209 = vshrl.u32 %v1208, 7
        %v1210 = vsub.s32 0, %v1209
        %v1211 = vrot.slane %v1206, %v1210
        %v1214 = vsel %vm447, %v1201, 0
        %1216 = vmatprep.subr.mxu0 0.0
        %1217 = vmatpush1.msra.mxu0 0.0
        %1218 = vmatprep.subr.mxu0 0.0
        %1219 = vmatpush1.msra.mxu0 0.0
        %1220 = vmatprep.subr.mxu0 0.0
        %1221 = vmatpush1.msra.mxu0 0.0
        %1222 = vmatprep.subr.mxu0 0.0
        %1223 = vmatpush1.msra.mxu0 0.0
        %1224 = vmatprep.subr.mxu0 0.0
        %1225 = vmatpush1.msra.mxu0 0.0
        %1226 = vmatprep.subr.mxu0 0.0
        %1227 = vmatpush1.msra.mxu0 0.0
        %1228 = vmatprep.subr.mxu0 0.0
        %1229 = vmatpush1.msra.mxu0 0.0
        %1230 = vmatprep.subr.mxu0 0.0
        %1231 = vmatpush1.msra.mxu0 0.0
        %1232 = vmatprep.subr.mxu0 0.0
        %1233 = vmatpush1.msra.mxu0 0.0
        %1234 = vmatprep.subr.mxu0 0.0
        %1235 = vmatpush1.msra.mxu0 0.0
        %1236 = vmatprep.subr.mxu0 0.0
        %1237 = vmatpush1.msra.mxu0 0.0
        %1238 = vmatprep.subr.mxu0 0.0
        %1239 = vmatpush1.msra.mxu0 0.0
        %1240 = vmatprep.subr.mxu0 0.0
        %1241 = vmatpush1.msra.mxu0 %v1205
        %1242 = vmatprep.subr.mxu0 0.0
        %1243 = vmatpush1.msra.mxu0 %v1204
        %1244 = vmatprep.subr.mxu0 0.0
        %1245 = vmatpush1.msra.mxu0 %v1203
        %1246 = vmatprep.subr.mxu0 0.0
        %1247 = vmatpush1.msra.mxu0 %v1202
        %1248 = vmatprep.subr.mxu0 0.0
        %1249 = vmatpush2.msra.mxu0 0.0
        %1250 = vmatprep.subr.mxu0 0.0
        %1251 = vmatpush2.msra.mxu0 0.0
        %1252 = vmatprep.subr.mxu0 0.0
        %1253 = vmatpush2.msra.mxu0 0.0
        %1254 = vmatprep.subr.mxu0 0.0
        %1255 = vmatpush2.msra.mxu0 0.0
        %1256 = vmatprep.subr.mxu0 0.0
        %1257 = vmatpush2.msra.mxu0 0.0
        %1258 = vmatprep.subr.mxu0 0.0
        %1259 = vmatpush2.msra.mxu0 0.0
        %1260 = vmatprep.subr.mxu0 0.0
        %1261 = vmatpush2.msra.mxu0 0.0
        %1262 = vmatprep.subr.mxu0 0.0
        %1263 = vmatpush2.msra.mxu0 0.0
        %1264 = vmatprep.subr.mxu0 0.0
        %1265 = vmatpush2.msra.mxu0 0.0
        %1266 = vmatprep.subr.mxu0 0.0
        %1267 = vmatpush2.msra.mxu0 0.0
        %1268 = vmatprep.subr.mxu0 0.0
        %1269 = vmatpush2.msra.mxu0 0.0
        %1270 = vmatprep.subr.mxu0 0.0
        %1271 = vmatpush2.msra.mxu0 0.0
        %1272 = vmatprep.subr.mxu0 0.0
        %1273 = vmatpush2.msra.mxu0 0.0
        %1274 = vmatprep.subr.mxu0 0.0
        %1275 = vmatpush2.msra.mxu0 0.0
        %1276 = vmatprep.subr.mxu0 0.0
        %1277 = vmatpush2.msra.mxu0 0.0
        %1278 = vmatprep.subr.mxu0 0.0
        %1279 = vmatpush2.msra.mxu0 0.0
        %1280 = vmatprep.mubr.f32.mxu0 0.0
        %1281 = vmatmul.mubr.f32.gmra.mxu0 %v1214
        %v1282 = vpop.f32.mrf.mxu0
        %v1283 = vadd.f32 %v1211, %v1282
        %v1284 = vpop.f32.mrf.mxu0
        %1285 = vdwg.mxu0
        %v1286 = vadd.f32 %v435, %v1283
        %v1287 = vld [vmem:[%s5] sm:$0x1]
        %v1288 = vld [vmem:[%s6] sm:$0x1]
        %v1289 = vsel %vm447, %v1286, 0.0
        %1290 = vadd.xlane.f32.xlu0 %v1289
        %v1291 = vpop.xlane.xlu0 %1290
        %v1292 = vrcp.pop 32.0
        %v1293 = vmul.f32 %v1291, %v1292
        %v1294 = vsub.f32 %v1286, %v1293
        %v1295 = vmul.f32 %v1294, %v1294
        %v1296 = vsel %vm447, %v1295, 0.0
        %1297 = vadd.xlane.f32.xlu0 %v1296
        %v1298 = vpop.xlane.xlu0 %1297
        %v1299 = vmul.f32 %v1298, %v1292
        %v1300 = vadd.f32 %v1299, 1e-05
        %v1301 = vrsqrt.pop %v1300
        %v1302 = vmul.f32 %v1294, %v1301
        %v1304 = vlaneseq
        %v1305 = vshrl.u32 %v1304, 7
        %v1306 = vsub.s32 0, %v1305
        %v1307 = vrot.slane %v1287, %v1306
        %v1309 = vmul.f32 %v1302, %v1307
        %v1311 = vlaneseq
        %v1312 = vshrl.u32 %v1311, 7
        %v1313 = vsub.s32 0, %v1312
        %v1314 = vrot.slane %v1288, %v1313
        %v1316 = vadd.f32 %v1309, %v1314
        %v1317 = vld [vmem:[%s7] sm:$0xff]
        %v1318 = vld [vmem:[%s7 + $0x8] sm:$0xff]
        %v1319 = vld [vmem:[%s7 + $0x10] sm:$0xff]
        %v1320 = vld [vmem:[%s7 + $0x18] sm:$0xff]
        %v1321 = vld [vmem:[%s7 + $0x20] sm:$0xff]
        %v1322 = vld [vmem:[%s7 + $0x28] sm:$0xff]
        %v1323 = vld [vmem:[%s7 + $0x30] sm:$0xff]
        %v1324 = vld [vmem:[%s7 + $0x38] sm:$0xff]
        %v1325 = vld [vmem:[%s7 + $0x40] sm:$0xff]
        %v1326 = vld [vmem:[%s7 + $0x48] sm:$0xff]
        %v1327 = vld [vmem:[%s7 + $0x50] sm:$0xff]
        %v1328 = vld [vmem:[%s7 + $0x58] sm:$0xff]
        %v1329 = vld [vmem:[%s7 + $0x60] sm:$0xff]
        %v1330 = vld [vmem:[%s7 + $0x68] sm:$0xff]
        %v1331 = vld [vmem:[%s7 + $0x70] sm:$0xff]
        %v1332 = vld [vmem:[%s7 + $0x78] sm:$0xff]
        %v1333 = vld [vmem:[%s7 + $0x80] sm:$0xff]
        %v1334 = vld [vmem:[%s7 + $0x88] sm:$0xff]
        %v1335 = vld [vmem:[%s7 + $0x90] sm:$0xff]
        %v1336 = vld [vmem:[%s7 + $0x98] sm:$0xff]
        %v1337 = vld [vmem:[%s7 + $0xa0] sm:$0xff]
        %v1338 = vld [vmem:[%s7 + $0xa8] sm:$0xff]
        %v1339 = vld [vmem:[%s7 + $0xb0] sm:$0xff]
        %v1340 = vld [vmem:[%s7 + $0xb8] sm:$0xff]
        %v1341 = vld [vmem:[%s7 + $0xc0] sm:$0xff]
        %v1342 = vld [vmem:[%s7 + $0xc8] sm:$0xff]
        %v1343 = vld [vmem:[%s7 + $0xd0] sm:$0xff]
        %v1344 = vld [vmem:[%s7 + $0xd8] sm:$0xff]
        %v1345 = vld [vmem:[%s7 + $0xe0] sm:$0xff]
        %v1346 = vld [vmem:[%s7 + $0xe8] sm:$0xff]
        %v1347 = vld [vmem:[%s7 + $0xf0] sm:$0xff]
        %v1348 = vld [vmem:[%s7 + $0xf8] sm:$0xff]
        %v1349 = vld [vmem:[%s7 + $0x100] sm:$0xff]
        %v1350 = vld [vmem:[%s7 + $0x108] sm:$0xff]
        %v1351 = vld [vmem:[%s7 + $0x110] sm:$0xff]
        %v1352 = vld [vmem:[%s7 + $0x118] sm:$0xff]
        %v1353 = vld [vmem:[%s7 + $0x120] sm:$0xff]
        %v1354 = vld [vmem:[%s7 + $0x128] sm:$0xff]
        %v1355 = vld [vmem:[%s7 + $0x130] sm:$0xff]
        %v1356 = vld [vmem:[%s7 + $0x138] sm:$0xff]
        %v1357 = vld [vmem:[%s7 + $0x140] sm:$0xff]
        %v1358 = vld [vmem:[%s7 + $0x148] sm:$0xff]
        %v1359 = vld [vmem:[%s7 + $0x150] sm:$0xff]
        %v1360 = vld [vmem:[%s7 + $0x158] sm:$0xff]
        %v1361 = vld [vmem:[%s7 + $0x160] sm:$0xff]
        %v1362 = vld [vmem:[%s7 + $0x168] sm:$0xff]
        %v1363 = vld [vmem:[%s7 + $0x170] sm:$0xff]
        %v1364 = vld [vmem:[%s7 + $0x178] sm:$0xff]
        %v1365 = vld [vmem:[%s7 + $0x180] sm:$0xff]
        %v1366 = vld [vmem:[%s7 + $0x188] sm:$0xff]
        %v1367 = vld [vmem:[%s7 + $0x190] sm:$0xff]
        %v1368 = vld [vmem:[%s7 + $0x198] sm:$0xff]
        %v1369 = vld [vmem:[%s7 + $0x1a0] sm:$0xff]
        %v1370 = vld [vmem:[%s7 + $0x1a8] sm:$0xff]
        %v1371 = vld [vmem:[%s7 + $0x1b0] sm:$0xff]
        %v1372 = vld [vmem:[%s7 + $0x1b8] sm:$0xff]
        %v1373 = vld [vmem:[%s7 + $0x1c0] sm:$0xff]
        %v1374 = vld [vmem:[%s7 + $0x1c8] sm:$0xff]
        %v1375 = vld [vmem:[%s7 + $0x1d0] sm:$0xff]
        %v1376 = vld [vmem:[%s7 + $0x1d8] sm:$0xff]
        %v1377 = vld [vmem:[%s7 + $0x1e0] sm:$0xff]
        %v1378 = vld [vmem:[%s7 + $0x1e8] sm:$0xff]
        %v1379 = vld [vmem:[%s7 + $0x1f0] sm:$0xff]
        %v1380 = vld [vmem:[%s7 + $0x1f8] sm:$0xff]
        %v1381 = vld [vmem:[%s8] sm:$0xff]
        %v1382 = vld [vmem:[%s8 + $0x8] sm:$0xff]
        %v1385 = vlaneseq
        %v1386 = vshrl.u32 %v1385, 7
        %v1387 = vsub.s32 0, %v1386
        %v1388 = vrot.slane %v1381, %v1387
        %v1389 = vlaneseq
        %v1390 = vshrl.u32 %v1389, 7
        %v1391 = vsub.s32 1, %v1390
        %v1392 = vrot.slane %v1381, %v1391
        %v1393 = vlaneseq
        %v1394 = vshrl.u32 %v1393, 7
        %v1395 = vsub.s32 2, %v1394
        %v1396 = vrot.slane %v1381, %v1395
        %v1397 = vlaneseq
        %v1398 = vshrl.u32 %v1397, 7
        %v1399 = vsub.s32 3, %v1398
        %v1400 = vrot.slane %v1381, %v1399
        %v1401 = vlaneseq
        %v1402 = vshrl.u32 %v1401, 7
        %v1403 = vsub.s32 4, %v1402
        %v1404 = vrot.slane %v1381, %v1403
        %v1405 = vlaneseq
        %v1406 = vshrl.u32 %v1405, 7
        %v1407 = vsub.s32 5, %v1406
        %v1408 = vrot.slane %v1381, %v1407
        %v1409 = vlaneseq
        %v1410 = vshrl.u32 %v1409, 7
        %v1411 = vsub.s32 6, %v1410
        %v1412 = vrot.slane %v1381, %v1411
        %v1413 = vlaneseq
        %v1414 = vshrl.u32 %v1413, 7
        %v1415 = vsub.s32 7, %v1414
        %v1416 = vrot.slane %v1381, %v1415
        %v1417 = vlaneseq
        %v1418 = vshrl.u32 %v1417, 7
        %v1419 = vsub.s32 0, %v1418
        %v1420 = vrot.slane %v1382, %v1419
        %v1421 = vlaneseq
        %v1422 = vshrl.u32 %v1421, 7
        %v1423 = vsub.s32 1, %v1422
        %v1424 = vrot.slane %v1382, %v1423
        %v1425 = vlaneseq
        %v1426 = vshrl.u32 %v1425, 7
        %v1427 = vsub.s32 2, %v1426
        %v1428 = vrot.slane %v1382, %v1427
        %v1429 = vlaneseq
        %v1430 = vshrl.u32 %v1429, 7
        %v1431 = vsub.s32 3, %v1430
        %v1432 = vrot.slane %v1382, %v1431
        %v1433 = vlaneseq
        %v1434 = vshrl.u32 %v1433, 7
        %v1435 = vsub.s32 4, %v1434
        %v1436 = vrot.slane %v1382, %v1435
        %v1437 = vlaneseq
        %v1438 = vshrl.u32 %v1437, 7
        %v1439 = vsub.s32 5, %v1438
        %v1440 = vrot.slane %v1382, %v1439
        %v1441 = vlaneseq
        %v1442 = vshrl.u32 %v1441, 7
        %v1443 = vsub.s32 6, %v1442
        %v1444 = vrot.slane %v1382, %v1443
        %v1445 = vlaneseq
        %v1446 = vshrl.u32 %v1445, 7
        %v1447 = vsub.s32 7, %v1446
        %v1448 = vrot.slane %v1382, %v1447
        %v1466 = vsel %vm447, %v1316, 0
        %1468 = vmatprep.subr.mxu0 0.0
        %1469 = vmatpush1.msra.mxu0 0.0
        %1470 = vmatprep.subr.mxu0 0.0
        %1471 = vmatpush1.msra.mxu0 0.0
        %1472 = vmatprep.subr.mxu0 0.0
        %1473 = vmatpush1.msra.mxu0 0.0
        %1474 = vmatprep.subr.mxu0 0.0
        %1475 = vmatpush1.msra.mxu0 0.0
        %1476 = vmatprep.subr.mxu0 0.0
        %1477 = vmatpush1.msra.mxu0 0.0
        %1478 = vmatprep.subr.mxu0 0.0
        %1479 = vmatpush1.msra.mxu0 0.0
        %1480 = vmatprep.subr.mxu0 0.0
        %1481 = vmatpush1.msra.mxu0 0.0
        %1482 = vmatprep.subr.mxu0 0.0
        %1483 = vmatpush1.msra.mxu0 0.0
        %1484 = vmatprep.subr.mxu0 0.0
        %1485 = vmatpush1.msra.mxu0 0.0
        %1486 = vmatprep.subr.mxu0 0.0
        %1487 = vmatpush1.msra.mxu0 0.0
        %1488 = vmatprep.subr.mxu0 0.0
        %1489 = vmatpush1.msra.mxu0 0.0
        %1490 = vmatprep.subr.mxu0 0.0
        %1491 = vmatpush1.msra.mxu0 0.0
        %1492 = vmatprep.subr.mxu0 %v1366
        %1493 = vmatpush1.msra.mxu0 %v1365
        %1494 = vmatprep.subr.mxu0 %v1350
        %1495 = vmatpush1.msra.mxu0 %v1349
        %1496 = vmatprep.subr.mxu0 %v1334
        %1497 = vmatpush1.msra.mxu0 %v1333
        %1498 = vmatprep.subr.mxu0 %v1318
        %1499 = vmatpush1.msra.mxu0 %v1317
        %1500 = vmatprep.subr.mxu0 0.0
        %1501 = vmatpush2.msra.mxu0 0.0
        %1502 = vmatprep.subr.mxu0 0.0
        %1503 = vmatpush2.msra.mxu0 0.0
        %1504 = vmatprep.subr.mxu0 0.0
        %1505 = vmatpush2.msra.mxu0 0.0
        %1506 = vmatprep.subr.mxu0 0.0
        %1507 = vmatpush2.msra.mxu0 0.0
        %1508 = vmatprep.subr.mxu0 0.0
        %1509 = vmatpush2.msra.mxu0 0.0
        %1510 = vmatprep.subr.mxu0 0.0
        %1511 = vmatpush2.msra.mxu0 0.0
        %1512 = vmatprep.subr.mxu0 0.0
        %1513 = vmatpush2.msra.mxu0 0.0
        %1514 = vmatprep.subr.mxu0 0.0
        %1515 = vmatpush2.msra.mxu0 0.0
        %1516 = vmatprep.subr.mxu0 0.0
        %1517 = vmatpush2.msra.mxu0 0.0
        %1518 = vmatprep.subr.mxu0 0.0
        %1519 = vmatpush2.msra.mxu0 0.0
        %1520 = vmatprep.subr.mxu0 0.0
        %1521 = vmatpush2.msra.mxu0 0.0
        %1522 = vmatprep.subr.mxu0 0.0
        %1523 = vmatpush2.msra.mxu0 0.0
        %1524 = vmatprep.subr.mxu0 0.0
        %1525 = vmatpush2.msra.mxu0 0.0
        %1526 = vmatprep.subr.mxu0 0.0
        %1527 = vmatpush2.msra.mxu0 0.0
        %1528 = vmatprep.subr.mxu0 0.0
        %1529 = vmatpush2.msra.mxu0 0.0
        %1530 = vmatprep.subr.mxu0 0.0
        %1531 = vmatpush2.msra.mxu0 0.0
        %1532 = vmatprep.mubr.f32.mxu0 0.0
        %1533 = vmatmul.mubr.f32.gmra.mxu0 %v1466
        %v1534 = vpop.f32.mrf.mxu0
        %v1535 = vadd.f32 %v1388, %v1534
        %v1536 = vpop.f32.mrf.mxu0
        %v1537 = vadd.f32 %v1392, %v1536
        %1538 = vdwg.mxu0
        %1539 = vmatprep.subr.mxu0 0.0
        %1540 = vmatpush1.msra.mxu0 0.0
        %1541 = vmatprep.subr.mxu0 0.0
        %1542 = vmatpush1.msra.mxu0 0.0
        %1543 = vmatprep.subr.mxu0 0.0
        %1544 = vmatpush1.msra.mxu0 0.0
        %1545 = vmatprep.subr.mxu0 0.0
        %1546 = vmatpush1.msra.mxu0 0.0
        %1547 = vmatprep.subr.mxu0 0.0
        %1548 = vmatpush1.msra.mxu0 0.0
        %1549 = vmatprep.subr.mxu0 0.0
        %1550 = vmatpush1.msra.mxu0 0.0
        %1551 = vmatprep.subr.mxu0 0.0
        %1552 = vmatpush1.msra.mxu0 0.0
        %1553 = vmatprep.subr.mxu0 0.0
        %1554 = vmatpush1.msra.mxu0 0.0
        %1555 = vmatprep.subr.mxu0 0.0
        %1556 = vmatpush1.msra.mxu0 0.0
        %1557 = vmatprep.subr.mxu0 0.0
        %1558 = vmatpush1.msra.mxu0 0.0
        %1559 = vmatprep.subr.mxu0 0.0
        %1560 = vmatpush1.msra.mxu0 0.0
        %1561 = vmatprep.subr.mxu0 0.0
        %1562 = vmatpush1.msra.mxu0 0.0
        %1563 = vmatprep.subr.mxu0 %v1368
        %1564 = vmatpush1.msra.mxu0 %v1367
        %1565 = vmatprep.subr.mxu0 %v1352
        %1566 = vmatpush1.msra.mxu0 %v1351
        %1567 = vmatprep.subr.mxu0 %v1336
        %1568 = vmatpush1.msra.mxu0 %v1335
        %1569 = vmatprep.subr.mxu0 %v1320
        %1570 = vmatpush1.msra.mxu0 %v1319
        %1571 = vmatprep.subr.mxu0 0.0
        %1572 = vmatpush2.msra.mxu0 0.0
        %1573 = vmatprep.subr.mxu0 0.0
        %1574 = vmatpush2.msra.mxu0 0.0
        %1575 = vmatprep.subr.mxu0 0.0
        %1576 = vmatpush2.msra.mxu0 0.0
        %1577 = vmatprep.subr.mxu0 0.0
        %1578 = vmatpush2.msra.mxu0 0.0
        %1579 = vmatprep.subr.mxu0 0.0
        %1580 = vmatpush2.msra.mxu0 0.0
        %1581 = vmatprep.subr.mxu0 0.0
        %1582 = vmatpush2.msra.mxu0 0.0
        %1583 = vmatprep.subr.mxu0 0.0
        %1584 = vmatpush2.msra.mxu0 0.0
        %1585 = vmatprep.subr.mxu0 0.0
        %1586 = vmatpush2.msra.mxu0 0.0
        %1587 = vmatprep.subr.mxu0 0.0
        %1588 = vmatpush2.msra.mxu0 0.0
        %1589 = vmatprep.subr.mxu0 0.0
        %1590 = vmatpush2.msra.mxu0 0.0
        %1591 = vmatprep.subr.mxu0 0.0
        %1592 = vmatpush2.msra.mxu0 0.0
        %1593 = vmatprep.subr.mxu0 0.0
        %1594 = vmatpush2.msra.mxu0 0.0
        %1595 = vmatprep.subr.mxu0 0.0
        %1596 = vmatpush2.msra.mxu0 0.0
        %1597 = vmatprep.subr.mxu0 0.0
        %1598 = vmatpush2.msra.mxu0 0.0
        %1599 = vmatprep.subr.mxu0 0.0
        %1600 = vmatpush2.msra.mxu0 0.0
        %1601 = vmatprep.subr.mxu0 0.0
        %1602 = vmatpush2.msra.mxu0 0.0
        %1603 = vmatprep.mubr.f32.mxu0 0.0
        %1604 = vmatmul.mubr.f32.gmra.mxu0 %v1466
        %v1605 = vpop.f32.mrf.mxu0
        %v1606 = vadd.f32 %v1396, %v1605
        %v1607 = vpop.f32.mrf.mxu0
        %v1608 = vadd.f32 %v1400, %v1607
        %1609 = vdwg.mxu0
        %1610 = vmatprep.subr.mxu0 0.0
        %1611 = vmatpush1.msra.mxu0 0.0
        %1612 = vmatprep.subr.mxu0 0.0
        %1613 = vmatpush1.msra.mxu0 0.0
        %1614 = vmatprep.subr.mxu0 0.0
        %1615 = vmatpush1.msra.mxu0 0.0
        %1616 = vmatprep.subr.mxu0 0.0
        %1617 = vmatpush1.msra.mxu0 0.0
        %1618 = vmatprep.subr.mxu0 0.0
        %1619 = vmatpush1.msra.mxu0 0.0
        %1620 = vmatprep.subr.mxu0 0.0
        %1621 = vmatpush1.msra.mxu0 0.0
        %1622 = vmatprep.subr.mxu0 0.0
        %1623 = vmatpush1.msra.mxu0 0.0
        %1624 = vmatprep.subr.mxu0 0.0
        %1625 = vmatpush1.msra.mxu0 0.0
        %1626 = vmatprep.subr.mxu0 0.0
        %1627 = vmatpush1.msra.mxu0 0.0
        %1628 = vmatprep.subr.mxu0 0.0
        %1629 = vmatpush1.msra.mxu0 0.0
        %1630 = vmatprep.subr.mxu0 0.0
        %1631 = vmatpush1.msra.mxu0 0.0
        %1632 = vmatprep.subr.mxu0 0.0
        %1633 = vmatpush1.msra.mxu0 0.0
        %1634 = vmatprep.subr.mxu0 %v1370
        %1635 = vmatpush1.msra.mxu0 %v1369
        %1636 = vmatprep.subr.mxu0 %v1354
        %1637 = vmatpush1.msra.mxu0 %v1353
        %1638 = vmatprep.subr.mxu0 %v1338
        %1639 = vmatpush1.msra.mxu0 %v1337
        %1640 = vmatprep.subr.mxu0 %v1322
        %1641 = vmatpush1.msra.mxu0 %v1321
        %1642 = vmatprep.subr.mxu0 0.0
        %1643 = vmatpush2.msra.mxu0 0.0
        %1644 = vmatprep.subr.mxu0 0.0
        %1645 = vmatpush2.msra.mxu0 0.0
        %1646 = vmatprep.subr.mxu0 0.0
        %1647 = vmatpush2.msra.mxu0 0.0
        %1648 = vmatprep.subr.mxu0 0.0
        %1649 = vmatpush2.msra.mxu0 0.0
        %1650 = vmatprep.subr.mxu0 0.0
        %1651 = vmatpush2.msra.mxu0 0.0
        %1652 = vmatprep.subr.mxu0 0.0
        %1653 = vmatpush2.msra.mxu0 0.0
        %1654 = vmatprep.subr.mxu0 0.0
        %1655 = vmatpush2.msra.mxu0 0.0
        %1656 = vmatprep.subr.mxu0 0.0
        %1657 = vmatpush2.msra.mxu0 0.0
        %1658 = vmatprep.subr.mxu0 0.0
        %1659 = vmatpush2.msra.mxu0 0.0
        %1660 = vmatprep.subr.mxu0 0.0
        %1661 = vmatpush2.msra.mxu0 0.0
        %1662 = vmatprep.subr.mxu0 0.0
        %1663 = vmatpush2.msra.mxu0 0.0
        %1664 = vmatprep.subr.mxu0 0.0
        %1665 = vmatpush2.msra.mxu0 0.0
        %1666 = vmatprep.subr.mxu0 0.0
        %1667 = vmatpush2.msra.mxu0 0.0
        %1668 = vmatprep.subr.mxu0 0.0
        %1669 = vmatpush2.msra.mxu0 0.0
        %1670 = vmatprep.subr.mxu0 0.0
        %1671 = vmatpush2.msra.mxu0 0.0
        %1672 = vmatprep.subr.mxu0 0.0
        %1673 = vmatpush2.msra.mxu0 0.0
        %1674 = vmatprep.mubr.f32.mxu0 0.0
        %1675 = vmatmul.mubr.f32.gmra.mxu0 %v1466
        %v1676 = vpop.f32.mrf.mxu0
        %v1677 = vadd.f32 %v1404, %v1676
        %v1678 = vpop.f32.mrf.mxu0
        %v1679 = vadd.f32 %v1408, %v1678
        %1680 = vdwg.mxu0
        %1681 = vmatprep.subr.mxu0 0.0
        %1682 = vmatpush1.msra.mxu0 0.0
        %1683 = vmatprep.subr.mxu0 0.0
        %1684 = vmatpush1.msra.mxu0 0.0
        %1685 = vmatprep.subr.mxu0 0.0
        %1686 = vmatpush1.msra.mxu0 0.0
        %1687 = vmatprep.subr.mxu0 0.0
        %1688 = vmatpush1.msra.mxu0 0.0
        %1689 = vmatprep.subr.mxu0 0.0
        %1690 = vmatpush1.msra.mxu0 0.0
        %1691 = vmatprep.subr.mxu0 0.0
        %1692 = vmatpush1.msra.mxu0 0.0
        %1693 = vmatprep.subr.mxu0 0.0
        %1694 = vmatpush1.msra.mxu0 0.0
        %1695 = vmatprep.subr.mxu0 0.0
        %1696 = vmatpush1.msra.mxu0 0.0
        %1697 = vmatprep.subr.mxu0 0.0
        %1698 = vmatpush1.msra.mxu0 0.0
        %1699 = vmatprep.subr.mxu0 0.0
        %1700 = vmatpush1.msra.mxu0 0.0
        %1701 = vmatprep.subr.mxu0 0.0
        %1702 = vmatpush1.msra.mxu0 0.0
        %1703 = vmatprep.subr.mxu0 0.0
        %1704 = vmatpush1.msra.mxu0 0.0
        %1705 = vmatprep.subr.mxu0 %v1372
        %1706 = vmatpush1.msra.mxu0 %v1371
        %1707 = vmatprep.subr.mxu0 %v1356
        %1708 = vmatpush1.msra.mxu0 %v1355
        %1709 = vmatprep.subr.mxu0 %v1340
        %1710 = vmatpush1.msra.mxu0 %v1339
        %1711 = vmatprep.subr.mxu0 %v1324
        %1712 = vmatpush1.msra.mxu0 %v1323
        %1713 = vmatprep.subr.mxu0 0.0
        %1714 = vmatpush2.msra.mxu0 0.0
        %1715 = vmatprep.subr.mxu0 0.0
        %1716 = vmatpush2.msra.mxu0 0.0
        %1717 = vmatprep.subr.mxu0 0.0
        %1718 = vmatpush2.msra.mxu0 0.0
        %1719 = vmatprep.subr.mxu0 0.0
        %1720 = vmatpush2.msra.mxu0 0.0
        %1721 = vmatprep.subr.mxu0 0.0
        %1722 = vmatpush2.msra.mxu0 0.0
        %1723 = vmatprep.subr.mxu0 0.0
        %1724 = vmatpush2.msra.mxu0 0.0
        %1725 = vmatprep.subr.mxu0 0.0
        %1726 = vmatpush2.msra.mxu0 0.0
        %1727 = vmatprep.subr.mxu0 0.0
        %1728 = vmatpush2.msra.mxu0 0.0
        %1729 = vmatprep.subr.mxu0 0.0
        %1730 = vmatpush2.msra.mxu0 0.0
        %1731 = vmatprep.subr.mxu0 0.0
        %1732 = vmatpush2.msra.mxu0 0.0
        %1733 = vmatprep.subr.mxu0 0.0
        %1734 = vmatpush2.msra.mxu0 0.0
        %1735 = vmatprep.subr.mxu0 0.0
        %1736 = vmatpush2.msra.mxu0 0.0
        %1737 = vmatprep.subr.mxu0 0.0
        %1738 = vmatpush2.msra.mxu0 0.0
        %1739 = vmatprep.subr.mxu0 0.0
        %1740 = vmatpush2.msra.mxu0 0.0
        %1741 = vmatprep.subr.mxu0 0.0
        %1742 = vmatpush2.msra.mxu0 0.0
        %1743 = vmatprep.subr.mxu0 0.0
        %1744 = vmatpush2.msra.mxu0 0.0
        %1745 = vmatprep.mubr.f32.mxu0 0.0
        %1746 = vmatmul.mubr.f32.gmra.mxu0 %v1466
        %v1747 = vpop.f32.mrf.mxu0
        %v1748 = vadd.f32 %v1412, %v1747
        %v1749 = vpop.f32.mrf.mxu0
        %v1750 = vadd.f32 %v1416, %v1749
        %1751 = vdwg.mxu0
        %1752 = vmatprep.subr.mxu0 0.0
        %1753 = vmatpush1.msra.mxu0 0.0
        %1754 = vmatprep.subr.mxu0 0.0
        %1755 = vmatpush1.msra.mxu0 0.0
        %1756 = vmatprep.subr.mxu0 0.0
        %1757 = vmatpush1.msra.mxu0 0.0
        %1758 = vmatprep.subr.mxu0 0.0
        %1759 = vmatpush1.msra.mxu0 0.0
        %1760 = vmatprep.subr.mxu0 0.0
        %1761 = vmatpush1.msra.mxu0 0.0
        %1762 = vmatprep.subr.mxu0 0.0
        %1763 = vmatpush1.msra.mxu0 0.0
        %1764 = vmatprep.subr.mxu0 0.0
        %1765 = vmatpush1.msra.mxu0 0.0
        %1766 = vmatprep.subr.mxu0 0.0
        %1767 = vmatpush1.msra.mxu0 0.0
        %1768 = vmatprep.subr.mxu0 0.0
        %1769 = vmatpush1.msra.mxu0 0.0
        %1770 = vmatprep.subr.mxu0 0.0
        %1771 = vmatpush1.msra.mxu0 0.0
        %1772 = vmatprep.subr.mxu0 0.0
        %1773 = vmatpush1.msra.mxu0 0.0
        %1774 = vmatprep.subr.mxu0 0.0
        %1775 = vmatpush1.msra.mxu0 0.0
        %1776 = vmatprep.subr.mxu0 %v1374
        %1777 = vmatpush1.msra.mxu0 %v1373
        %1778 = vmatprep.subr.mxu0 %v1358
        %1779 = vmatpush1.msra.mxu0 %v1357
        %1780 = vmatprep.subr.mxu0 %v1342
        %1781 = vmatpush1.msra.mxu0 %v1341
        %1782 = vmatprep.subr.mxu0 %v1326
        %1783 = vmatpush1.msra.mxu0 %v1325
        %1784 = vmatprep.subr.mxu0 0.0
        %1785 = vmatpush2.msra.mxu0 0.0
        %1786 = vmatprep.subr.mxu0 0.0
        %1787 = vmatpush2.msra.mxu0 0.0
        %1788 = vmatprep.subr.mxu0 0.0
        %1789 = vmatpush2.msra.mxu0 0.0
        %1790 = vmatprep.subr.mxu0 0.0
        %1791 = vmatpush2.msra.mxu0 0.0
        %1792 = vmatprep.subr.mxu0 0.0
        %1793 = vmatpush2.msra.mxu0 0.0
        %1794 = vmatprep.subr.mxu0 0.0
        %1795 = vmatpush2.msra.mxu0 0.0
        %1796 = vmatprep.subr.mxu0 0.0
        %1797 = vmatpush2.msra.mxu0 0.0
        %1798 = vmatprep.subr.mxu0 0.0
        %1799 = vmatpush2.msra.mxu0 0.0
        %1800 = vmatprep.subr.mxu0 0.0
        %1801 = vmatpush2.msra.mxu0 0.0
        %1802 = vmatprep.subr.mxu0 0.0
        %1803 = vmatpush2.msra.mxu0 0.0
        %1804 = vmatprep.subr.mxu0 0.0
        %1805 = vmatpush2.msra.mxu0 0.0
        %1806 = vmatprep.subr.mxu0 0.0
        %1807 = vmatpush2.msra.mxu0 0.0
        %1808 = vmatprep.subr.mxu0 0.0
        %1809 = vmatpush2.msra.mxu0 0.0
        %1810 = vmatprep.subr.mxu0 0.0
        %1811 = vmatpush2.msra.mxu0 0.0
        %1812 = vmatprep.subr.mxu0 0.0
        %1813 = vmatpush2.msra.mxu0 0.0
        %1814 = vmatprep.subr.mxu0 0.0
        %1815 = vmatpush2.msra.mxu0 0.0
        %1816 = vmatprep.mubr.f32.mxu0 0.0
        %1817 = vmatmul.mubr.f32.gmra.mxu0 %v1466
        %v1818 = vpop.f32.mrf.mxu0
        %v1819 = vadd.f32 %v1420, %v1818
        %v1820 = vpop.f32.mrf.mxu0
        %v1821 = vadd.f32 %v1424, %v1820
        %1822 = vdwg.mxu0
        %1823 = vmatprep.subr.mxu0 0.0
        %1824 = vmatpush1.msra.mxu0 0.0
        %1825 = vmatprep.subr.mxu0 0.0
        %1826 = vmatpush1.msra.mxu0 0.0
        %1827 = vmatprep.subr.mxu0 0.0
        %1828 = vmatpush1.msra.mxu0 0.0
        %1829 = vmatprep.subr.mxu0 0.0
        %1830 = vmatpush1.msra.mxu0 0.0
        %1831 = vmatprep.subr.mxu0 0.0
        %1832 = vmatpush1.msra.mxu0 0.0
        %1833 = vmatprep.subr.mxu0 0.0
        %1834 = vmatpush1.msra.mxu0 0.0
        %1835 = vmatprep.subr.mxu0 0.0
        %1836 = vmatpush1.msra.mxu0 0.0
        %1837 = vmatprep.subr.mxu0 0.0
        %1838 = vmatpush1.msra.mxu0 0.0
        %1839 = vmatprep.subr.mxu0 0.0
        %1840 = vmatpush1.msra.mxu0 0.0
        %1841 = vmatprep.subr.mxu0 0.0
        %1842 = vmatpush1.msra.mxu0 0.0
        %1843 = vmatprep.subr.mxu0 0.0
        %1844 = vmatpush1.msra.mxu0 0.0
        %1845 = vmatprep.subr.mxu0 0.0
        %1846 = vmatpush1.msra.mxu0 0.0
        %1847 = vmatprep.subr.mxu0 %v1376
        %1848 = vmatpush1.msra.mxu0 %v1375
        %1849 = vmatprep.subr.mxu0 %v1360
        %1850 = vmatpush1.msra.mxu0 %v1359
        %1851 = vmatprep.subr.mxu0 %v1344
        %1852 = vmatpush1.msra.mxu0 %v1343
        %1853 = vmatprep.subr.mxu0 %v1328
        %1854 = vmatpush1.msra.mxu0 %v1327
        %1855 = vmatprep.subr.mxu0 0.0
        %1856 = vmatpush2.msra.mxu0 0.0
        %1857 = vmatprep.subr.mxu0 0.0
        %1858 = vmatpush2.msra.mxu0 0.0
        %1859 = vmatprep.subr.mxu0 0.0
        %1860 = vmatpush2.msra.mxu0 0.0
        %1861 = vmatprep.subr.mxu0 0.0
        %1862 = vmatpush2.msra.mxu0 0.0
        %1863 = vmatprep.subr.mxu0 0.0
        %1864 = vmatpush2.msra.mxu0 0.0
        %1865 = vmatprep.subr.mxu0 0.0
        %1866 = vmatpush2.msra.mxu0 0.0
        %1867 = vmatprep.subr.mxu0 0.0
        %1868 = vmatpush2.msra.mxu0 0.0
        %1869 = vmatprep.subr.mxu0 0.0
        %1870 = vmatpush2.msra.mxu0 0.0
        %1871 = vmatprep.subr.mxu0 0.0
        %1872 = vmatpush2.msra.mxu0 0.0
        %1873 = vmatprep.subr.mxu0 0.0
        %1874 = vmatpush2.msra.mxu0 0.0
        %1875 = vmatprep.subr.mxu0 0.0
        %1876 = vmatpush2.msra.mxu0 0.0
        %1877 = vmatprep.subr.mxu0 0.0
        %1878 = vmatpush2.msra.mxu0 0.0
        %1879 = vmatprep.subr.mxu0 0.0
        %1880 = vmatpush2.msra.mxu0 0.0
        %1881 = vmatprep.subr.mxu0 0.0
        %1882 = vmatpush2.msra.mxu0 0.0
        %1883 = vmatprep.subr.mxu0 0.0
        %1884 = vmatpush2.msra.mxu0 0.0
        %1885 = vmatprep.subr.mxu0 0.0
        %1886 = vmatpush2.msra.mxu0 0.0
        %1887 = vmatprep.mubr.f32.mxu0 0.0
        %1888 = vmatmul.mubr.f32.gmra.mxu0 %v1466
        %v1889 = vpop.f32.mrf.mxu0
        %v1890 = vadd.f32 %v1428, %v1889
        %v1891 = vpop.f32.mrf.mxu0
        %v1892 = vadd.f32 %v1432, %v1891
        %1893 = vdwg.mxu0
        %1894 = vmatprep.subr.mxu0 0.0
        %1895 = vmatpush1.msra.mxu0 0.0
        %1896 = vmatprep.subr.mxu0 0.0
        %1897 = vmatpush1.msra.mxu0 0.0
        %1898 = vmatprep.subr.mxu0 0.0
        %1899 = vmatpush1.msra.mxu0 0.0
        %1900 = vmatprep.subr.mxu0 0.0
        %1901 = vmatpush1.msra.mxu0 0.0
        %1902 = vmatprep.subr.mxu0 0.0
        %1903 = vmatpush1.msra.mxu0 0.0
        %1904 = vmatprep.subr.mxu0 0.0
        %1905 = vmatpush1.msra.mxu0 0.0
        %1906 = vmatprep.subr.mxu0 0.0
        %1907 = vmatpush1.msra.mxu0 0.0
        %1908 = vmatprep.subr.mxu0 0.0
        %1909 = vmatpush1.msra.mxu0 0.0
        %1910 = vmatprep.subr.mxu0 0.0
        %1911 = vmatpush1.msra.mxu0 0.0
        %1912 = vmatprep.subr.mxu0 0.0
        %1913 = vmatpush1.msra.mxu0 0.0
        %1914 = vmatprep.subr.mxu0 0.0
        %1915 = vmatpush1.msra.mxu0 0.0
        %1916 = vmatprep.subr.mxu0 0.0
        %1917 = vmatpush1.msra.mxu0 0.0
        %1918 = vmatprep.subr.mxu0 %v1378
        %1919 = vmatpush1.msra.mxu0 %v1377
        %1920 = vmatprep.subr.mxu0 %v1362
        %1921 = vmatpush1.msra.mxu0 %v1361
        %1922 = vmatprep.subr.mxu0 %v1346
        %1923 = vmatpush1.msra.mxu0 %v1345
        %1924 = vmatprep.subr.mxu0 %v1330
        %1925 = vmatpush1.msra.mxu0 %v1329
        %1926 = vmatprep.subr.mxu0 0.0
        %1927 = vmatpush2.msra.mxu0 0.0
        %1928 = vmatprep.subr.mxu0 0.0
        %1929 = vmatpush2.msra.mxu0 0.0
        %1930 = vmatprep.subr.mxu0 0.0
        %1931 = vmatpush2.msra.mxu0 0.0
        %1932 = vmatprep.subr.mxu0 0.0
        %1933 = vmatpush2.msra.mxu0 0.0
        %1934 = vmatprep.subr.mxu0 0.0
        %1935 = vmatpush2.msra.mxu0 0.0
        %1936 = vmatprep.subr.mxu0 0.0
        %1937 = vmatpush2.msra.mxu0 0.0
        %1938 = vmatprep.subr.mxu0 0.0
        %1939 = vmatpush2.msra.mxu0 0.0
        %1940 = vmatprep.subr.mxu0 0.0
        %1941 = vmatpush2.msra.mxu0 0.0
        %1942 = vmatprep.subr.mxu0 0.0
        %1943 = vmatpush2.msra.mxu0 0.0
        %1944 = vmatprep.subr.mxu0 0.0
        %1945 = vmatpush2.msra.mxu0 0.0
        %1946 = vmatprep.subr.mxu0 0.0
        %1947 = vmatpush2.msra.mxu0 0.0
        %1948 = vmatprep.subr.mxu0 0.0
        %1949 = vmatpush2.msra.mxu0 0.0
        %1950 = vmatprep.subr.mxu0 0.0
        %1951 = vmatpush2.msra.mxu0 0.0
        %1952 = vmatprep.subr.mxu0 0.0
        %1953 = vmatpush2.msra.mxu0 0.0
        %1954 = vmatprep.subr.mxu0 0.0
        %1955 = vmatpush2.msra.mxu0 0.0
        %1956 = vmatprep.subr.mxu0 0.0
        %1957 = vmatpush2.msra.mxu0 0.0
        %1958 = vmatprep.mubr.f32.mxu0 0.0
        %1959 = vmatmul.mubr.f32.gmra.mxu0 %v1466
        %v1960 = vpop.f32.mrf.mxu0
        %v1961 = vadd.f32 %v1436, %v1960
        %v1962 = vpop.f32.mrf.mxu0
        %v1963 = vadd.f32 %v1440, %v1962
        %1964 = vdwg.mxu0
        %1965 = vmatprep.subr.mxu0 0.0
        %1966 = vmatpush1.msra.mxu0 0.0
        %1967 = vmatprep.subr.mxu0 0.0
        %1968 = vmatpush1.msra.mxu0 0.0
        %1969 = vmatprep.subr.mxu0 0.0
        %1970 = vmatpush1.msra.mxu0 0.0
        %1971 = vmatprep.subr.mxu0 0.0
        %1972 = vmatpush1.msra.mxu0 0.0
        %1973 = vmatprep.subr.mxu0 0.0
        %1974 = vmatpush1.msra.mxu0 0.0
        %1975 = vmatprep.subr.mxu0 0.0
        %1976 = vmatpush1.msra.mxu0 0.0
        %1977 = vmatprep.subr.mxu0 0.0
        %1978 = vmatpush1.msra.mxu0 0.0
        %1979 = vmatprep.subr.mxu0 0.0
        %1980 = vmatpush1.msra.mxu0 0.0
        %1981 = vmatprep.subr.mxu0 0.0
        %1982 = vmatpush1.msra.mxu0 0.0
        %1983 = vmatprep.subr.mxu0 0.0
        %1984 = vmatpush1.msra.mxu0 0.0
        %1985 = vmatprep.subr.mxu0 0.0
        %1986 = vmatpush1.msra.mxu0 0.0
        %1987 = vmatprep.subr.mxu0 0.0
        %1988 = vmatpush1.msra.mxu0 0.0
        %1989 = vmatprep.subr.mxu0 %v1380
        %1990 = vmatpush1.msra.mxu0 %v1379
        %1991 = vmatprep.subr.mxu0 %v1364
        %1992 = vmatpush1.msra.mxu0 %v1363
        %1993 = vmatprep.subr.mxu0 %v1348
        %1994 = vmatpush1.msra.mxu0 %v1347
        %1995 = vmatprep.subr.mxu0 %v1332
        %1996 = vmatpush1.msra.mxu0 %v1331
        %1997 = vmatprep.subr.mxu0 0.0
        %1998 = vmatpush2.msra.mxu0 0.0
        %1999 = vmatprep.subr.mxu0 0.0
        %2000 = vmatpush2.msra.mxu0 0.0
        %2001 = vmatprep.subr.mxu0 0.0
        %2002 = vmatpush2.msra.mxu0 0.0
        %2003 = vmatprep.subr.mxu0 0.0
        %2004 = vmatpush2.msra.mxu0 0.0
        %2005 = vmatprep.subr.mxu0 0.0
        %2006 = vmatpush2.msra.mxu0 0.0
        %2007 = vmatprep.subr.mxu0 0.0
        %2008 = vmatpush2.msra.mxu0 0.0
        %2009 = vmatprep.subr.mxu0 0.0
        %2010 = vmatpush2.msra.mxu0 0.0
        %2011 = vmatprep.subr.mxu0 0.0
        %2012 = vmatpush2.msra.mxu0 0.0
        %2013 = vmatprep.subr.mxu0 0.0
        %2014 = vmatpush2.msra.mxu0 0.0
        %2015 = vmatprep.subr.mxu0 0.0
        %2016 = vmatpush2.msra.mxu0 0.0
        %2017 = vmatprep.subr.mxu0 0.0
        %2018 = vmatpush2.msra.mxu0 0.0
        %2019 = vmatprep.subr.mxu0 0.0
        %2020 = vmatpush2.msra.mxu0 0.0
        %2021 = vmatprep.subr.mxu0 0.0
        %2022 = vmatpush2.msra.mxu0 0.0
        %2023 = vmatprep.subr.mxu0 0.0
        %2024 = vmatpush2.msra.mxu0 0.0
        %2025 = vmatprep.subr.mxu0 0.0
        %2026 = vmatpush2.msra.mxu0 0.0
        %2027 = vmatprep.subr.mxu0 0.0
        %2028 = vmatpush2.msra.mxu0 0.0
        %2029 = vmatprep.mubr.f32.mxu0 0.0
        %2030 = vmatmul.mubr.f32.gmra.mxu0 %v1466
        %v2031 = vpop.f32.mrf.mxu0
        %v2032 = vadd.f32 %v1444, %v2031
        %v2033 = vpop.f32.mrf.mxu0
        %v2034 = vadd.f32 %v1448, %v2033
        %2035 = vdwg.mxu0
        %v2036 = vmax.f32 %v1535, 0.0
        %v2037 = vmax.f32 %v1537, 0.0
        %v2038 = vmax.f32 %v1606, 0.0
        %v2039 = vmax.f32 %v1608, 0.0
        %v2040 = vmax.f32 %v1677, 0.0
        %v2041 = vmax.f32 %v1679, 0.0
        %v2042 = vmax.f32 %v1748, 0.0
        %v2043 = vmax.f32 %v1750, 0.0
        %v2044 = vmax.f32 %v1819, 0.0
        %v2045 = vmax.f32 %v1821, 0.0
        %v2046 = vmax.f32 %v1890, 0.0
        %v2047 = vmax.f32 %v1892, 0.0
        %v2048 = vmax.f32 %v1961, 0.0
        %v2049 = vmax.f32 %v1963, 0.0
        %v2050 = vmax.f32 %v2032, 0.0
        %v2051 = vmax.f32 %v2034, 0.0
        %v2052 = vld [vmem:[%s9] sm:$0xff]
        %v2053 = vld [vmem:[%s9 + $0x8] sm:$0xff]
        %v2054 = vld [vmem:[%s9 + $0x10] sm:$0xff]
        %v2055 = vld [vmem:[%s9 + $0x18] sm:$0xff]
        %v2056 = vld [vmem:[%s9 + $0x20] sm:$0xff]
        %v2057 = vld [vmem:[%s9 + $0x28] sm:$0xff]
        %v2058 = vld [vmem:[%s9 + $0x30] sm:$0xff]
        %v2059 = vld [vmem:[%s9 + $0x38] sm:$0xff]
        %v2060 = vld [vmem:[%s9 + $0x40] sm:$0xff]
        %v2061 = vld [vmem:[%s9 + $0x48] sm:$0xff]
        %v2062 = vld [vmem:[%s9 + $0x50] sm:$0xff]
        %v2063 = vld [vmem:[%s9 + $0x58] sm:$0xff]
        %v2064 = vld [vmem:[%s9 + $0x60] sm:$0xff]
        %v2065 = vld [vmem:[%s9 + $0x68] sm:$0xff]
        %v2066 = vld [vmem:[%s9 + $0x70] sm:$0xff]
        %v2067 = vld [vmem:[%s9 + $0x78] sm:$0xff]
        %v2068 = vld [vmem:[%s9 + $0x80] sm:$0xff]
        %v2069 = vld [vmem:[%s9 + $0x88] sm:$0xff]
        %v2070 = vld [vmem:[%s9 + $0x90] sm:$0xff]
        %v2071 = vld [vmem:[%s9 + $0x98] sm:$0xff]
        %v2072 = vld [vmem:[%s9 + $0xa0] sm:$0xff]
        %v2073 = vld [vmem:[%s9 + $0xa8] sm:$0xff]
        %v2074 = vld [vmem:[%s9 + $0xb0] sm:$0xff]
        %v2075 = vld [vmem:[%s9 + $0xb8] sm:$0xff]
        %v2076 = vld [vmem:[%s9 + $0xc0] sm:$0xff]
        %v2077 = vld [vmem:[%s9 + $0xc8] sm:$0xff]
        %v2078 = vld [vmem:[%s9 + $0xd0] sm:$0xff]
        %v2079 = vld [vmem:[%s9 + $0xd8] sm:$0xff]
        %v2080 = vld [vmem:[%s9 + $0xe0] sm:$0xff]
        %v2081 = vld [vmem:[%s9 + $0xe8] sm:$0xff]
        %v2082 = vld [vmem:[%s9 + $0xf0] sm:$0xff]
        %v2083 = vld [vmem:[%s9 + $0xf8] sm:$0xff]
        %v2084 = vld [vmem:[%s9 + $0x100] sm:$0xff]
        %v2085 = vld [vmem:[%s9 + $0x108] sm:$0xff]
        %v2086 = vld [vmem:[%s9 + $0x110] sm:$0xff]
        %v2087 = vld [vmem:[%s9 + $0x118] sm:$0xff]
        %v2088 = vld [vmem:[%s9 + $0x120] sm:$0xff]
        %v2089 = vld [vmem:[%s9 + $0x128] sm:$0xff]
        %v2090 = vld [vmem:[%s9 + $0x130] sm:$0xff]
        %v2091 = vld [vmem:[%s9 + $0x138] sm:$0xff]
        %v2092 = vld [vmem:[%s9 + $0x140] sm:$0xff]
        %v2093 = vld [vmem:[%s9 + $0x148] sm:$0xff]
        %v2094 = vld [vmem:[%s9 + $0x150] sm:$0xff]
        %v2095 = vld [vmem:[%s9 + $0x158] sm:$0xff]
        %v2096 = vld [vmem:[%s9 + $0x160] sm:$0xff]
        %v2097 = vld [vmem:[%s9 + $0x168] sm:$0xff]
        %v2098 = vld [vmem:[%s9 + $0x170] sm:$0xff]
        %v2099 = vld [vmem:[%s9 + $0x178] sm:$0xff]
        %v2100 = vld [vmem:[%s9 + $0x180] sm:$0xff]
        %v2101 = vld [vmem:[%s9 + $0x188] sm:$0xff]
        %v2102 = vld [vmem:[%s9 + $0x190] sm:$0xff]
        %v2103 = vld [vmem:[%s9 + $0x198] sm:$0xff]
        %v2104 = vld [vmem:[%s9 + $0x1a0] sm:$0xff]
        %v2105 = vld [vmem:[%s9 + $0x1a8] sm:$0xff]
        %v2106 = vld [vmem:[%s9 + $0x1b0] sm:$0xff]
        %v2107 = vld [vmem:[%s9 + $0x1b8] sm:$0xff]
        %v2108 = vld [vmem:[%s9 + $0x1c0] sm:$0xff]
        %v2109 = vld [vmem:[%s9 + $0x1c8] sm:$0xff]
        %v2110 = vld [vmem:[%s9 + $0x1d0] sm:$0xff]
        %v2111 = vld [vmem:[%s9 + $0x1d8] sm:$0xff]
        %v2112 = vld [vmem:[%s9 + $0x1e0] sm:$0xff]
        %v2113 = vld [vmem:[%s9 + $0x1e8] sm:$0xff]
        %v2114 = vld [vmem:[%s9 + $0x1f0] sm:$0xff]
        %v2115 = vld [vmem:[%s9 + $0x1f8] sm:$0xff]
        %v2116 = vld [vmem:[%s9 + $0x200] sm:$0xff]
        %v2117 = vld [vmem:[%s9 + $0x208] sm:$0xff]
        %v2118 = vld [vmem:[%s9 + $0x210] sm:$0xff]
        %v2119 = vld [vmem:[%s9 + $0x218] sm:$0xff]
        %v2120 = vld [vmem:[%s9 + $0x220] sm:$0xff]
        %v2121 = vld [vmem:[%s9 + $0x228] sm:$0xff]
        %v2122 = vld [vmem:[%s9 + $0x230] sm:$0xff]
        %v2123 = vld [vmem:[%s9 + $0x238] sm:$0xff]
        %v2124 = vld [vmem:[%s9 + $0x240] sm:$0xff]
        %v2125 = vld [vmem:[%s9 + $0x248] sm:$0xff]
        %v2126 = vld [vmem:[%s9 + $0x250] sm:$0xff]
        %v2127 = vld [vmem:[%s9 + $0x258] sm:$0xff]
        %v2128 = vld [vmem:[%s9 + $0x260] sm:$0xff]
        %v2129 = vld [vmem:[%s9 + $0x268] sm:$0xff]
        %v2130 = vld [vmem:[%s9 + $0x270] sm:$0xff]
        %v2131 = vld [vmem:[%s9 + $0x278] sm:$0xff]
        %v2132 = vld [vmem:[%s9 + $0x280] sm:$0xff]
        %v2133 = vld [vmem:[%s9 + $0x288] sm:$0xff]
        %v2134 = vld [vmem:[%s9 + $0x290] sm:$0xff]
        %v2135 = vld [vmem:[%s9 + $0x298] sm:$0xff]
        %v2136 = vld [vmem:[%s9 + $0x2a0] sm:$0xff]
        %v2137 = vld [vmem:[%s9 + $0x2a8] sm:$0xff]
        %v2138 = vld [vmem:[%s9 + $0x2b0] sm:$0xff]
        %v2139 = vld [vmem:[%s9 + $0x2b8] sm:$0xff]
        %v2140 = vld [vmem:[%s9 + $0x2c0] sm:$0xff]
        %v2141 = vld [vmem:[%s9 + $0x2c8] sm:$0xff]
        %v2142 = vld [vmem:[%s9 + $0x2d0] sm:$0xff]
        %v2143 = vld [vmem:[%s9 + $0x2d8] sm:$0xff]
        %v2144 = vld [vmem:[%s9 + $0x2e0] sm:$0xff]
        %v2145 = vld [vmem:[%s9 + $0x2e8] sm:$0xff]
        %v2146 = vld [vmem:[%s9 + $0x2f0] sm:$0xff]
        %v2147 = vld [vmem:[%s9 + $0x2f8] sm:$0xff]
        %v2148 = vld [vmem:[%s9 + $0x300] sm:$0xff]
        %v2149 = vld [vmem:[%s9 + $0x308] sm:$0xff]
        %v2150 = vld [vmem:[%s9 + $0x310] sm:$0xff]
        %v2151 = vld [vmem:[%s9 + $0x318] sm:$0xff]
        %v2152 = vld [vmem:[%s9 + $0x320] sm:$0xff]
        %v2153 = vld [vmem:[%s9 + $0x328] sm:$0xff]
        %v2154 = vld [vmem:[%s9 + $0x330] sm:$0xff]
        %v2155 = vld [vmem:[%s9 + $0x338] sm:$0xff]
        %v2156 = vld [vmem:[%s9 + $0x340] sm:$0xff]
        %v2157 = vld [vmem:[%s9 + $0x348] sm:$0xff]
        %v2158 = vld [vmem:[%s9 + $0x350] sm:$0xff]
        %v2159 = vld [vmem:[%s9 + $0x358] sm:$0xff]
        %v2160 = vld [vmem:[%s9 + $0x360] sm:$0xff]
        %v2161 = vld [vmem:[%s9 + $0x368] sm:$0xff]
        %v2162 = vld [vmem:[%s9 + $0x370] sm:$0xff]
        %v2163 = vld [vmem:[%s9 + $0x378] sm:$0xff]
        %v2164 = vld [vmem:[%s9 + $0x380] sm:$0xff]
        %v2165 = vld [vmem:[%s9 + $0x388] sm:$0xff]
        %v2166 = vld [vmem:[%s9 + $0x390] sm:$0xff]
        %v2167 = vld [vmem:[%s9 + $0x398] sm:$0xff]
        %v2168 = vld [vmem:[%s9 + $0x3a0] sm:$0xff]
        %v2169 = vld [vmem:[%s9 + $0x3a8] sm:$0xff]
        %v2170 = vld [vmem:[%s9 + $0x3b0] sm:$0xff]
        %v2171 = vld [vmem:[%s9 + $0x3b8] sm:$0xff]
        %v2172 = vld [vmem:[%s9 + $0x3c0] sm:$0xff]
        %v2173 = vld [vmem:[%s9 + $0x3c8] sm:$0xff]
        %v2174 = vld [vmem:[%s9 + $0x3d0] sm:$0xff]
        %v2175 = vld [vmem:[%s9 + $0x3d8] sm:$0xff]
        %v2176 = vld [vmem:[%s9 + $0x3e0] sm:$0xff]
        %v2177 = vld [vmem:[%s9 + $0x3e8] sm:$0xff]
        %v2178 = vld [vmem:[%s9 + $0x3f0] sm:$0xff]
        %v2179 = vld [vmem:[%s9 + $0x3f8] sm:$0xff]
        %v2180 = vld [vmem:[%s9 + $0x400] sm:$0xff]
        %v2181 = vld [vmem:[%s9 + $0x408] sm:$0xff]
        %v2182 = vld [vmem:[%s9 + $0x410] sm:$0xff]
        %v2183 = vld [vmem:[%s9 + $0x418] sm:$0xff]
        %v2184 = vld [vmem:[%s9 + $0x420] sm:$0xff]
        %v2185 = vld [vmem:[%s9 + $0x428] sm:$0xff]
        %v2186 = vld [vmem:[%s9 + $0x430] sm:$0xff]
        %v2187 = vld [vmem:[%s9 + $0x438] sm:$0xff]
        %v2188 = vld [vmem:[%s9 + $0x440] sm:$0xff]
        %v2189 = vld [vmem:[%s9 + $0x448] sm:$0xff]
        %v2190 = vld [vmem:[%s9 + $0x450] sm:$0xff]
        %v2191 = vld [vmem:[%s9 + $0x458] sm:$0xff]
        %v2192 = vld [vmem:[%s9 + $0x460] sm:$0xff]
        %v2193 = vld [vmem:[%s9 + $0x468] sm:$0xff]
        %v2194 = vld [vmem:[%s9 + $0x470] sm:$0xff]
        %v2195 = vld [vmem:[%s9 + $0x478] sm:$0xff]
        %v2196 = vld [vmem:[%s9 + $0x480] sm:$0xff]
        %v2197 = vld [vmem:[%s9 + $0x488] sm:$0xff]
        %v2198 = vld [vmem:[%s9 + $0x490] sm:$0xff]
        %v2199 = vld [vmem:[%s9 + $0x498] sm:$0xff]
        %v2200 = vld [vmem:[%s9 + $0x4a0] sm:$0xff]
        %v2201 = vld [vmem:[%s9 + $0x4a8] sm:$0xff]
        %v2202 = vld [vmem:[%s9 + $0x4b0] sm:$0xff]
        %v2203 = vld [vmem:[%s9 + $0x4b8] sm:$0xff]
        %v2204 = vld [vmem:[%s9 + $0x4c0] sm:$0xff]
        %v2205 = vld [vmem:[%s9 + $0x4c8] sm:$0xff]
        %v2206 = vld [vmem:[%s9 + $0x4d0] sm:$0xff]
        %v2207 = vld [vmem:[%s9 + $0x4d8] sm:$0xff]
        %v2208 = vld [vmem:[%s9 + $0x4e0] sm:$0xff]
        %v2209 = vld [vmem:[%s9 + $0x4e8] sm:$0xff]
        %v2210 = vld [vmem:[%s9 + $0x4f0] sm:$0xff]
        %v2211 = vld [vmem:[%s9 + $0x4f8] sm:$0xff]
        %v2212 = vld [vmem:[%s9 + $0x500] sm:$0xff]
        %v2213 = vld [vmem:[%s9 + $0x508] sm:$0xff]
        %v2214 = vld [vmem:[%s9 + $0x510] sm:$0xff]
        %v2215 = vld [vmem:[%s9 + $0x518] sm:$0xff]
        %v2216 = vld [vmem:[%s9 + $0x520] sm:$0xff]
        %v2217 = vld [vmem:[%s9 + $0x528] sm:$0xff]
        %v2218 = vld [vmem:[%s9 + $0x530] sm:$0xff]
        %v2219 = vld [vmem:[%s9 + $0x538] sm:$0xff]
        %v2220 = vld [vmem:[%s9 + $0x540] sm:$0xff]
        %v2221 = vld [vmem:[%s9 + $0x548] sm:$0xff]
        %v2222 = vld [vmem:[%s9 + $0x550] sm:$0xff]
        %v2223 = vld [vmem:[%s9 + $0x558] sm:$0xff]
        %v2224 = vld [vmem:[%s9 + $0x560] sm:$0xff]
        %v2225 = vld [vmem:[%s9 + $0x568] sm:$0xff]
        %v2226 = vld [vmem:[%s9 + $0x570] sm:$0xff]
        %v2227 = vld [vmem:[%s9 + $0x578] sm:$0xff]
        %v2228 = vld [vmem:[%s9 + $0x580] sm:$0xff]
        %v2229 = vld [vmem:[%s9 + $0x588] sm:$0xff]
        %v2230 = vld [vmem:[%s9 + $0x590] sm:$0xff]
        %v2231 = vld [vmem:[%s9 + $0x598] sm:$0xff]
        %v2232 = vld [vmem:[%s9 + $0x5a0] sm:$0xff]
        %v2233 = vld [vmem:[%s9 + $0x5a8] sm:$0xff]
        %v2234 = vld [vmem:[%s9 + $0x5b0] sm:$0xff]
        %v2235 = vld [vmem:[%s9 + $0x5b8] sm:$0xff]
        %v2236 = vld [vmem:[%s9 + $0x5c0] sm:$0xff]
        %v2237 = vld [vmem:[%s9 + $0x5c8] sm:$0xff]
        %v2238 = vld [vmem:[%s9 + $0x5d0] sm:$0xff]
        %v2239 = vld [vmem:[%s9 + $0x5d8] sm:$0xff]
        %v2240 = vld [vmem:[%s9 + $0x5e0] sm:$0xff]
        %v2241 = vld [vmem:[%s9 + $0x5e8] sm:$0xff]
        %v2242 = vld [vmem:[%s9 + $0x5f0] sm:$0xff]
        %v2243 = vld [vmem:[%s9 + $0x5f8] sm:$0xff]
        %v2244 = vld [vmem:[%s9 + $0x600] sm:$0xff]
        %v2245 = vld [vmem:[%s9 + $0x608] sm:$0xff]
        %v2246 = vld [vmem:[%s9 + $0x610] sm:$0xff]
        %v2247 = vld [vmem:[%s9 + $0x618] sm:$0xff]
        %v2248 = vld [vmem:[%s9 + $0x620] sm:$0xff]
        %v2249 = vld [vmem:[%s9 + $0x628] sm:$0xff]
        %v2250 = vld [vmem:[%s9 + $0x630] sm:$0xff]
        %v2251 = vld [vmem:[%s9 + $0x638] sm:$0xff]
        %v2252 = vld [vmem:[%s9 + $0x640] sm:$0xff]
        %v2253 = vld [vmem:[%s9 + $0x648] sm:$0xff]
        %v2254 = vld [vmem:[%s9 + $0x650] sm:$0xff]
        %v2255 = vld [vmem:[%s9 + $0x658] sm:$0xff]
        %v2256 = vld [vmem:[%s9 + $0x660] sm:$0xff]
        %v2257 = vld [vmem:[%s9 + $0x668] sm:$0xff]
        %v2258 = vld [vmem:[%s9 + $0x670] sm:$0xff]
        %v2259 = vld [vmem:[%s9 + $0x678] sm:$0xff]
        %v2260 = vld [vmem:[%s9 + $0x680] sm:$0xff]
        %v2261 = vld [vmem:[%s9 + $0x688] sm:$0xff]
        %v2262 = vld [vmem:[%s9 + $0x690] sm:$0xff]
        %v2263 = vld [vmem:[%s9 + $0x698] sm:$0xff]
        %v2264 = vld [vmem:[%s9 + $0x6a0] sm:$0xff]
        %v2265 = vld [vmem:[%s9 + $0x6a8] sm:$0xff]
        %v2266 = vld [vmem:[%s9 + $0x6b0] sm:$0xff]
        %v2267 = vld [vmem:[%s9 + $0x6b8] sm:$0xff]
        %v2268 = vld [vmem:[%s9 + $0x6c0] sm:$0xff]
        %v2269 = vld [vmem:[%s9 + $0x6c8] sm:$0xff]
        %v2270 = vld [vmem:[%s9 + $0x6d0] sm:$0xff]
        %v2271 = vld [vmem:[%s9 + $0x6d8] sm:$0xff]
        %v2272 = vld [vmem:[%s9 + $0x6e0] sm:$0xff]
        %v2273 = vld [vmem:[%s9 + $0x6e8] sm:$0xff]
        %v2274 = vld [vmem:[%s9 + $0x6f0] sm:$0xff]
        %v2275 = vld [vmem:[%s9 + $0x6f8] sm:$0xff]
        %v2276 = vld [vmem:[%s9 + $0x700] sm:$0xff]
        %v2277 = vld [vmem:[%s9 + $0x708] sm:$0xff]
        %v2278 = vld [vmem:[%s9 + $0x710] sm:$0xff]
        %v2279 = vld [vmem:[%s9 + $0x718] sm:$0xff]
        %v2280 = vld [vmem:[%s9 + $0x720] sm:$0xff]
        %v2281 = vld [vmem:[%s9 + $0x728] sm:$0xff]
        %v2282 = vld [vmem:[%s9 + $0x730] sm:$0xff]
        %v2283 = vld [vmem:[%s9 + $0x738] sm:$0xff]
        %v2284 = vld [vmem:[%s9 + $0x740] sm:$0xff]
        %v2285 = vld [vmem:[%s9 + $0x748] sm:$0xff]
        %v2286 = vld [vmem:[%s9 + $0x750] sm:$0xff]
        %v2287 = vld [vmem:[%s9 + $0x758] sm:$0xff]
        %v2288 = vld [vmem:[%s9 + $0x760] sm:$0xff]
        %v2289 = vld [vmem:[%s9 + $0x768] sm:$0xff]
        %v2290 = vld [vmem:[%s9 + $0x770] sm:$0xff]
        %v2291 = vld [vmem:[%s9 + $0x778] sm:$0xff]
        %v2292 = vld [vmem:[%s9 + $0x780] sm:$0xff]
        %v2293 = vld [vmem:[%s9 + $0x788] sm:$0xff]
        %v2294 = vld [vmem:[%s9 + $0x790] sm:$0xff]
        %v2295 = vld [vmem:[%s9 + $0x798] sm:$0xff]
        %v2296 = vld [vmem:[%s9 + $0x7a0] sm:$0xff]
        %v2297 = vld [vmem:[%s9 + $0x7a8] sm:$0xff]
        %v2298 = vld [vmem:[%s9 + $0x7b0] sm:$0xff]
        %v2299 = vld [vmem:[%s9 + $0x7b8] sm:$0xff]
        %v2300 = vld [vmem:[%s9 + $0x7c0] sm:$0xff]
        %v2301 = vld [vmem:[%s9 + $0x7c8] sm:$0xff]
        %v2302 = vld [vmem:[%s9 + $0x7d0] sm:$0xff]
        %v2303 = vld [vmem:[%s9 + $0x7d8] sm:$0xff]
        %v2304 = vld [vmem:[%s9 + $0x7e0] sm:$0xff]
        %v2305 = vld [vmem:[%s9 + $0x7e8] sm:$0xff]
        %v2306 = vld [vmem:[%s9 + $0x7f0] sm:$0xff]
        %v2307 = vld [vmem:[%s9 + $0x7f8] sm:$0xff]
        %v2308 = vld [vmem:[%s10] sm:$0x1]
        %v2310 = vlaneseq
        %v2311 = vshrl.u32 %v2310, 7
        %v2312 = vsub.s32 0, %v2311
        %v2313 = vrot.slane %v2308, %v2312
        %2315 = vmatprep.subr.mxu0 0.0
        %2316 = vmatpush1.msra.mxu0 %v2067
        %2317 = vmatprep.subr.mxu0 0.0
        %2318 = vmatpush1.msra.mxu0 %v2066
        %2319 = vmatprep.subr.mxu0 0.0
        %2320 = vmatpush1.msra.mxu0 %v2065
        %2321 = vmatprep.subr.mxu0 0.0
        %2322 = vmatpush1.msra.mxu0 %v2064
        %2323 = vmatprep.subr.mxu0 0.0
        %2324 = vmatpush1.msra.mxu0 %v2063
        %2325 = vmatprep.subr.mxu0 0.0
        %2326 = vmatpush1.msra.mxu0 %v2062
        %2327 = vmatprep.subr.mxu0 0.0
        %2328 = vmatpush1.msra.mxu0 %v2061
        %2329 = vmatprep.subr.mxu0 0.0
        %2330 = vmatpush1.msra.mxu0 %v2060
        %2331 = vmatprep.subr.mxu0 0.0
        %2332 = vmatpush1.msra.mxu0 %v2059
        %2333 = vmatprep.subr.mxu0 0.0
        %2334 = vmatpush1.msra.mxu0 %v2058
        %2335 = vmatprep.subr.mxu0 0.0
        %2336 = vmatpush1.msra.mxu0 %v2057
        %2337 = vmatprep.subr.mxu0 0.0
        %2338 = vmatpush1.msra.mxu0 %v2056
        %2339 = vmatprep.subr.mxu0 0.0
        %2340 = vmatpush1.msra.mxu0 %v2055
        %2341 = vmatprep.subr.mxu0 0.0
        %2342 = vmatpush1.msra.mxu0 %v2054
        %2343 = vmatprep.subr.mxu0 0.0
        %2344 = vmatpush1.msra.mxu0 %v2053
        %2345 = vmatprep.subr.mxu0 0.0
        %2346 = vmatpush1.msra.mxu0 %v2052
        %2347 = vmatprep.subr.mxu0 0.0
        %2348 = vmatpush2.msra.mxu0 %v2083
        %2349 = vmatprep.subr.mxu0 0.0
        %2350 = vmatpush2.msra.mxu0 %v2082
        %2351 = vmatprep.subr.mxu0 0.0
        %2352 = vmatpush2.msra.mxu0 %v2081
        %2353 = vmatprep.subr.mxu0 0.0
        %2354 = vmatpush2.msra.mxu0 %v2080
        %2355 = vmatprep.subr.mxu0 0.0
        %2356 = vmatpush2.msra.mxu0 %v2079
        %2357 = vmatprep.subr.mxu0 0.0
        %2358 = vmatpush2.msra.mxu0 %v2078
        %2359 = vmatprep.subr.mxu0 0.0
        %2360 = vmatpush2.msra.mxu0 %v2077
        %2361 = vmatprep.subr.mxu0 0.0
        %2362 = vmatpush2.msra.mxu0 %v2076
        %2363 = vmatprep.subr.mxu0 0.0
        %2364 = vmatpush2.msra.mxu0 %v2075
        %2365 = vmatprep.subr.mxu0 0.0
        %2366 = vmatpush2.msra.mxu0 %v2074
        %2367 = vmatprep.subr.mxu0 0.0
        %2368 = vmatpush2.msra.mxu0 %v2073
        %2369 = vmatprep.subr.mxu0 0.0
        %2370 = vmatpush2.msra.mxu0 %v2072
        %2371 = vmatprep.subr.mxu0 0.0
        %2372 = vmatpush2.msra.mxu0 %v2071
        %2373 = vmatprep.subr.mxu0 0.0
        %2374 = vmatpush2.msra.mxu0 %v2070
        %2375 = vmatprep.subr.mxu0 0.0
        %2376 = vmatpush2.msra.mxu0 %v2069
        %2377 = vmatprep.subr.mxu0 0.0
        %2378 = vmatpush2.msra.mxu0 %v2068
        %2379 = vmatprep.mubr.f32.mxu0 %v2037
        %2380 = vmatmul.mubr.f32.gmra.mxu0 %v2036
        %v2381 = vpop.f32.mrf.mxu0
        %v2382 = vadd.f32 %v2313, %v2381
        %v2383 = vpop.f32.mrf.mxu0
        %2384 = vdwg.mxu0
        %2385 = vmatprep.subr.mxu0 0.0
        %2386 = vmatpush1.msra.mxu0 %v2099
        %2387 = vmatprep.subr.mxu0 0.0
        %2388 = vmatpush1.msra.mxu0 %v2098
        %2389 = vmatprep.subr.mxu0 0.0
        %2390 = vmatpush1.msra.mxu0 %v2097
        %2391 = vmatprep.subr.mxu0 0.0
        %2392 = vmatpush1.msra.mxu0 %v2096
        %2393 = vmatprep.subr.mxu0 0.0
        %2394 = vmatpush1.msra.mxu0 %v2095
        %2395 = vmatprep.subr.mxu0 0.0
        %2396 = vmatpush1.msra.mxu0 %v2094
        %2397 = vmatprep.subr.mxu0 0.0
        %2398 = vmatpush1.msra.mxu0 %v2093
        %2399 = vmatprep.subr.mxu0 0.0
        %2400 = vmatpush1.msra.mxu0 %v2092
        %2401 = vmatprep.subr.mxu0 0.0
        %2402 = vmatpush1.msra.mxu0 %v2091
        %2403 = vmatprep.subr.mxu0 0.0
        %2404 = vmatpush1.msra.mxu0 %v2090
        %2405 = vmatprep.subr.mxu0 0.0
        %2406 = vmatpush1.msra.mxu0 %v2089
        %2407 = vmatprep.subr.mxu0 0.0
        %2408 = vmatpush1.msra.mxu0 %v2088
        %2409 = vmatprep.subr.mxu0 0.0
        %2410 = vmatpush1.msra.mxu0 %v2087
        %2411 = vmatprep.subr.mxu0 0.0
        %2412 = vmatpush1.msra.mxu0 %v2086
        %2413 = vmatprep.subr.mxu0 0.0
        %2414 = vmatpush1.msra.mxu0 %v2085
        %2415 = vmatprep.subr.mxu0 0.0
        %2416 = vmatpush1.msra.mxu0 %v2084
        %2417 = vmatprep.subr.mxu0 0.0
        %2418 = vmatpush2.msra.mxu0 %v2115
        %2419 = vmatprep.subr.mxu0 0.0
        %2420 = vmatpush2.msra.mxu0 %v2114
        %2421 = vmatprep.subr.mxu0 0.0
        %2422 = vmatpush2.msra.mxu0 %v2113
        %2423 = vmatprep.subr.mxu0 0.0
        %2424 = vmatpush2.msra.mxu0 %v2112
        %2425 = vmatprep.subr.mxu0 0.0
        %2426 = vmatpush2.msra.mxu0 %v2111
        %2427 = vmatprep.subr.mxu0 0.0
        %2428 = vmatpush2.msra.mxu0 %v2110
        %2429 = vmatprep.subr.mxu0 0.0
        %2430 = vmatpush2.msra.mxu0 %v2109
        %2431 = vmatprep.subr.mxu0 0.0
        %2432 = vmatpush2.msra.mxu0 %v2108
        %2433 = vmatprep.subr.mxu0 0.0
        %2434 = vmatpush2.msra.mxu0 %v2107
        %2435 = vmatprep.subr.mxu0 0.0
        %2436 = vmatpush2.msra.mxu0 %v2106
        %2437 = vmatprep.subr.mxu0 0.0
        %2438 = vmatpush2.msra.mxu0 %v2105
        %2439 = vmatprep.subr.mxu0 0.0
        %2440 = vmatpush2.msra.mxu0 %v2104
        %2441 = vmatprep.subr.mxu0 0.0
        %2442 = vmatpush2.msra.mxu0 %v2103
        %2443 = vmatprep.subr.mxu0 0.0
        %2444 = vmatpush2.msra.mxu0 %v2102
        %2445 = vmatprep.subr.mxu0 0.0
        %2446 = vmatpush2.msra.mxu0 %v2101
        %2447 = vmatprep.subr.mxu0 0.0
        %2448 = vmatpush2.msra.mxu0 %v2100
        %2449 = vmatprep.mubr.f32.mxu0 %v2039
        %2450 = vmatmul.mubr.f32.gmra.mxu0 %v2038
        %v2451 = vpop.f32.mrf.mxu0
        %v2452 = vadd.f32 %v2382, %v2451
        %v2453 = vpop.f32.mrf.mxu0
        %2454 = vdwg.mxu0
        %2455 = vmatprep.subr.mxu0 0.0
        %2456 = vmatpush1.msra.mxu0 %v2131
        %2457 = vmatprep.subr.mxu0 0.0
        %2458 = vmatpush1.msra.mxu0 %v2130
        %2459 = vmatprep.subr.mxu0 0.0
        %2460 = vmatpush1.msra.mxu0 %v2129
        %2461 = vmatprep.subr.mxu0 0.0
        %2462 = vmatpush1.msra.mxu0 %v2128
        %2463 = vmatprep.subr.mxu0 0.0
        %2464 = vmatpush1.msra.mxu0 %v2127
        %2465 = vmatprep.subr.mxu0 0.0
        %2466 = vmatpush1.msra.mxu0 %v2126
        %2467 = vmatprep.subr.mxu0 0.0
        %2468 = vmatpush1.msra.mxu0 %v2125
        %2469 = vmatprep.subr.mxu0 0.0
        %2470 = vmatpush1.msra.mxu0 %v2124
        %2471 = vmatprep.subr.mxu0 0.0
        %2472 = vmatpush1.msra.mxu0 %v2123
        %2473 = vmatprep.subr.mxu0 0.0
        %2474 = vmatpush1.msra.mxu0 %v2122
        %2475 = vmatprep.subr.mxu0 0.0
        %2476 = vmatpush1.msra.mxu0 %v2121
        %2477 = vmatprep.subr.mxu0 0.0
        %2478 = vmatpush1.msra.mxu0 %v2120
        %2479 = vmatprep.subr.mxu0 0.0
        %2480 = vmatpush1.msra.mxu0 %v2119
        %2481 = vmatprep.subr.mxu0 0.0
        %2482 = vmatpush1.msra.mxu0 %v2118
        %2483 = vmatprep.subr.mxu0 0.0
        %2484 = vmatpush1.msra.mxu0 %v2117
        %2485 = vmatprep.subr.mxu0 0.0
        %2486 = vmatpush1.msra.mxu0 %v2116
        %2487 = vmatprep.subr.mxu0 0.0
        %2488 = vmatpush2.msra.mxu0 %v2147
        %2489 = vmatprep.subr.mxu0 0.0
        %2490 = vmatpush2.msra.mxu0 %v2146
        %2491 = vmatprep.subr.mxu0 0.0
        %2492 = vmatpush2.msra.mxu0 %v2145
        %2493 = vmatprep.subr.mxu0 0.0
        %2494 = vmatpush2.msra.mxu0 %v2144
        %2495 = vmatprep.subr.mxu0 0.0
        %2496 = vmatpush2.msra.mxu0 %v2143
        %2497 = vmatprep.subr.mxu0 0.0
        %2498 = vmatpush2.msra.mxu0 %v2142
        %2499 = vmatprep.subr.mxu0 0.0
        %2500 = vmatpush2.msra.mxu0 %v2141
        %2501 = vmatprep.subr.mxu0 0.0
        %2502 = vmatpush2.msra.mxu0 %v2140
        %2503 = vmatprep.subr.mxu0 0.0
        %2504 = vmatpush2.msra.mxu0 %v2139
        %2505 = vmatprep.subr.mxu0 0.0
        %2506 = vmatpush2.msra.mxu0 %v2138
        %2507 = vmatprep.subr.mxu0 0.0
        %2508 = vmatpush2.msra.mxu0 %v2137
        %2509 = vmatprep.subr.mxu0 0.0
        %2510 = vmatpush2.msra.mxu0 %v2136
        %2511 = vmatprep.subr.mxu0 0.0
        %2512 = vmatpush2.msra.mxu0 %v2135
        %2513 = vmatprep.subr.mxu0 0.0
        %2514 = vmatpush2.msra.mxu0 %v2134
        %2515 = vmatprep.subr.mxu0 0.0
        %2516 = vmatpush2.msra.mxu0 %v2133
        %2517 = vmatprep.subr.mxu0 0.0
        %2518 = vmatpush2.msra.mxu0 %v2132
        %2519 = vmatprep.mubr.f32.mxu0 %v2041
        %2520 = vmatmul.mubr.f32.gmra.mxu0 %v2040
        %v2521 = vpop.f32.mrf.mxu0
        %v2522 = vadd.f32 %v2452, %v2521
        %v2523 = vpop.f32.mrf.mxu0
        %2524 = vdwg.mxu0
        %2525 = vmatprep.subr.mxu0 0.0
        %2526 = vmatpush1.msra.mxu0 %v2163
        %2527 = vmatprep.subr.mxu0 0.0
        %2528 = vmatpush1.msra.mxu0 %v2162
        %2529 = vmatprep.subr.mxu0 0.0
        %2530 = vmatpush1.msra.mxu0 %v2161
        %2531 = vmatprep.subr.mxu0 0.0
        %2532 = vmatpush1.msra.mxu0 %v2160
        %2533 = vmatprep.subr.mxu0 0.0
        %2534 = vmatpush1.msra.mxu0 %v2159
        %2535 = vmatprep.subr.mxu0 0.0
        %2536 = vmatpush1.msra.mxu0 %v2158
        %2537 = vmatprep.subr.mxu0 0.0
        %2538 = vmatpush1.msra.mxu0 %v2157
        %2539 = vmatprep.subr.mxu0 0.0
        %2540 = vmatpush1.msra.mxu0 %v2156
        %2541 = vmatprep.subr.mxu0 0.0
        %2542 = vmatpush1.msra.mxu0 %v2155
        %2543 = vmatprep.subr.mxu0 0.0
        %2544 = vmatpush1.msra.mxu0 %v2154
        %2545 = vmatprep.subr.mxu0 0.0
        %2546 = vmatpush1.msra.mxu0 %v2153
        %2547 = vmatprep.subr.mxu0 0.0
        %2548 = vmatpush1.msra.mxu0 %v2152
        %2549 = vmatprep.subr.mxu0 0.0
        %2550 = vmatpush1.msra.mxu0 %v2151
        %2551 = vmatprep.subr.mxu0 0.0
        %2552 = vmatpush1.msra.mxu0 %v2150
        %2553 = vmatprep.subr.mxu0 0.0
        %2554 = vmatpush1.msra.mxu0 %v2149
        %2555 = vmatprep.subr.mxu0 0.0
        %2556 = vmatpush1.msra.mxu0 %v2148
        %2557 = vmatprep.subr.mxu0 0.0
        %2558 = vmatpush2.msra.mxu0 %v2179
        %2559 = vmatprep.subr.mxu0 0.0
        %2560 = vmatpush2.msra.mxu0 %v2178
        %2561 = vmatprep.subr.mxu0 0.0
        %2562 = vmatpush2.msra.mxu0 %v2177
        %2563 = vmatprep.subr.mxu0 0.0
        %2564 = vmatpush2.msra.mxu0 %v2176
        %2565 = vmatprep.subr.mxu0 0.0
        %2566 = vmatpush2.msra.mxu0 %v2175
        %2567 = vmatprep.subr.mxu0 0.0
        %2568 = vmatpush2.msra.mxu0 %v2174
        %2569 = vmatprep.subr.mxu0 0.0
        %2570 = vmatpush2.msra.mxu0 %v2173
        %2571 = vmatprep.subr.mxu0 0.0
        %2572 = vmatpush2.msra.mxu0 %v2172
        %2573 = vmatprep.subr.mxu0 0.0
        %2574 = vmatpush2.msra.mxu0 %v2171
        %2575 = vmatprep.subr.mxu0 0.0
        %2576 = vmatpush2.msra.mxu0 %v2170
        %2577 = vmatprep.subr.mxu0 0.0
        %2578 = vmatpush2.msra.mxu0 %v2169
        %2579 = vmatprep.subr.mxu0 0.0
        %2580 = vmatpush2.msra.mxu0 %v2168
        %2581 = vmatprep.subr.mxu0 0.0
        %2582 = vmatpush2.msra.mxu0 %v2167
        %2583 = vmatprep.subr.mxu0 0.0
        %2584 = vmatpush2.msra.mxu0 %v2166
        %2585 = vmatprep.subr.mxu0 0.0
        %2586 = vmatpush2.msra.mxu0 %v2165
        %2587 = vmatprep.subr.mxu0 0.0
        %2588 = vmatpush2.msra.mxu0 %v2164
        %2589 = vmatprep.mubr.f32.mxu0 %v2043
        %2590 = vmatmul.mubr.f32.gmra.mxu0 %v2042
        %v2591 = vpop.f32.mrf.mxu0
        %v2592 = vadd.f32 %v2522, %v2591
        %v2593 = vpop.f32.mrf.mxu0
        %2594 = vdwg.mxu0
        %2595 = vmatprep.subr.mxu0 0.0
        %2596 = vmatpush1.msra.mxu0 %v2195
        %2597 = vmatprep.subr.mxu0 0.0
        %2598 = vmatpush1.msra.mxu0 %v2194
        %2599 = vmatprep.subr.mxu0 0.0
        %2600 = vmatpush1.msra.mxu0 %v2193
        %2601 = vmatprep.subr.mxu0 0.0
        %2602 = vmatpush1.msra.mxu0 %v2192
        %2603 = vmatprep.subr.mxu0 0.0
        %2604 = vmatpush1.msra.mxu0 %v2191
        %2605 = vmatprep.subr.mxu0 0.0
        %2606 = vmatpush1.msra.mxu0 %v2190
        %2607 = vmatprep.subr.mxu0 0.0
        %2608 = vmatpush1.msra.mxu0 %v2189
        %2609 = vmatprep.subr.mxu0 0.0
        %2610 = vmatpush1.msra.mxu0 %v2188
        %2611 = vmatprep.subr.mxu0 0.0
        %2612 = vmatpush1.msra.mxu0 %v2187
        %2613 = vmatprep.subr.mxu0 0.0
        %2614 = vmatpush1.msra.mxu0 %v2186
        %2615 = vmatprep.subr.mxu0 0.0
        %2616 = vmatpush1.msra.mxu0 %v2185
        %2617 = vmatprep.subr.mxu0 0.0
        %2618 = vmatpush1.msra.mxu0 %v2184
        %2619 = vmatprep.subr.mxu0 0.0
        %2620 = vmatpush1.msra.mxu0 %v2183
        %2621 = vmatprep.subr.mxu0 0.0
        %2622 = vmatpush1.msra.mxu0 %v2182
        %2623 = vmatprep.subr.mxu0 0.0
        %2624 = vmatpush1.msra.mxu0 %v2181
        %2625 = vmatprep.subr.mxu0 0.0
        %2626 = vmatpush1.msra.mxu0 %v2180
        %2627 = vmatprep.subr.mxu0 0.0
        %2628 = vmatpush2.msra.mxu0 %v2211
        %2629 = vmatprep.subr.mxu0 0.0
        %2630 = vmatpush2.msra.mxu0 %v2210
        %2631 = vmatprep.subr.mxu0 0.0
        %2632 = vmatpush2.msra.mxu0 %v2209
        %2633 = vmatprep.subr.mxu0 0.0
        %2634 = vmatpush2.msra.mxu0 %v2208
        %2635 = vmatprep.subr.mxu0 0.0
        %2636 = vmatpush2.msra.mxu0 %v2207
        %2637 = vmatprep.subr.mxu0 0.0
        %2638 = vmatpush2.msra.mxu0 %v2206
        %2639 = vmatprep.subr.mxu0 0.0
        %2640 = vmatpush2.msra.mxu0 %v2205
        %2641 = vmatprep.subr.mxu0 0.0
        %2642 = vmatpush2.msra.mxu0 %v2204
        %2643 = vmatprep.subr.mxu0 0.0
        %2644 = vmatpush2.msra.mxu0 %v2203
        %2645 = vmatprep.subr.mxu0 0.0
        %2646 = vmatpush2.msra.mxu0 %v2202
        %2647 = vmatprep.subr.mxu0 0.0
        %2648 = vmatpush2.msra.mxu0 %v2201
        %2649 = vmatprep.subr.mxu0 0.0
        %2650 = vmatpush2.msra.mxu0 %v2200
        %2651 = vmatprep.subr.mxu0 0.0
        %2652 = vmatpush2.msra.mxu0 %v2199
        %2653 = vmatprep.subr.mxu0 0.0
        %2654 = vmatpush2.msra.mxu0 %v2198
        %2655 = vmatprep.subr.mxu0 0.0
        %2656 = vmatpush2.msra.mxu0 %v2197
        %2657 = vmatprep.subr.mxu0 0.0
        %2658 = vmatpush2.msra.mxu0 %v2196
        %2659 = vmatprep.mubr.f32.mxu0 %v2045
        %2660 = vmatmul.mubr.f32.gmra.mxu0 %v2044
        %v2661 = vpop.f32.mrf.mxu0
        %v2662 = vadd.f32 %v2592, %v2661
        %v2663 = vpop.f32.mrf.mxu0
        %2664 = vdwg.mxu0
        %2665 = vmatprep.subr.mxu0 0.0
        %2666 = vmatpush1.msra.mxu0 %v2227
        %2667 = vmatprep.subr.mxu0 0.0
        %2668 = vmatpush1.msra.mxu0 %v2226
        %2669 = vmatprep.subr.mxu0 0.0
        %2670 = vmatpush1.msra.mxu0 %v2225
        %2671 = vmatprep.subr.mxu0 0.0
        %2672 = vmatpush1.msra.mxu0 %v2224
        %2673 = vmatprep.subr.mxu0 0.0
        %2674 = vmatpush1.msra.mxu0 %v2223
        %2675 = vmatprep.subr.mxu0 0.0
        %2676 = vmatpush1.msra.mxu0 %v2222
        %2677 = vmatprep.subr.mxu0 0.0
        %2678 = vmatpush1.msra.mxu0 %v2221
        %2679 = vmatprep.subr.mxu0 0.0
        %2680 = vmatpush1.msra.mxu0 %v2220
        %2681 = vmatprep.subr.mxu0 0.0
        %2682 = vmatpush1.msra.mxu0 %v2219
        %2683 = vmatprep.subr.mxu0 0.0
        %2684 = vmatpush1.msra.mxu0 %v2218
        %2685 = vmatprep.subr.mxu0 0.0
        %2686 = vmatpush1.msra.mxu0 %v2217
        %2687 = vmatprep.subr.mxu0 0.0
        %2688 = vmatpush1.msra.mxu0 %v2216
        %2689 = vmatprep.subr.mxu0 0.0
        %2690 = vmatpush1.msra.mxu0 %v2215
        %2691 = vmatprep.subr.mxu0 0.0
        %2692 = vmatpush1.msra.mxu0 %v2214
        %2693 = vmatprep.subr.mxu0 0.0
        %2694 = vmatpush1.msra.mxu0 %v2213
        %2695 = vmatprep.subr.mxu0 0.0
        %2696 = vmatpush1.msra.mxu0 %v2212
        %2697 = vmatprep.subr.mxu0 0.0
        %2698 = vmatpush2.msra.mxu0 %v2243
        %2699 = vmatprep.subr.mxu0 0.0
        %2700 = vmatpush2.msra.mxu0 %v2242
        %2701 = vmatprep.subr.mxu0 0.0
        %2702 = vmatpush2.msra.mxu0 %v2241
        %2703 = vmatprep.subr.mxu0 0.0
        %2704 = vmatpush2.msra.mxu0 %v2240
        %2705 = vmatprep.subr.mxu0 0.0
        %2706 = vmatpush2.msra.mxu0 %v2239
        %2707 = vmatprep.subr.mxu0 0.0
        %2708 = vmatpush2.msra.mxu0 %v2238
        %2709 = vmatprep.subr.mxu0 0.0
        %2710 = vmatpush2.msra.mxu0 %v2237
        %2711 = vmatprep.subr.mxu0 0.0
        %2712 = vmatpush2.msra.mxu0 %v2236
        %2713 = vmatprep.subr.mxu0 0.0
        %2714 = vmatpush2.msra.mxu0 %v2235
        %2715 = vmatprep.subr.mxu0 0.0
        %2716 = vmatpush2.msra.mxu0 %v2234
        %2717 = vmatprep.subr.mxu0 0.0
        %2718 = vmatpush2.msra.mxu0 %v2233
        %2719 = vmatprep.subr.mxu0 0.0
        %2720 = vmatpush2.msra.mxu0 %v2232
        %2721 = vmatprep.subr.mxu0 0.0
        %2722 = vmatpush2.msra.mxu0 %v2231
        %2723 = vmatprep.subr.mxu0 0.0
        %2724 = vmatpush2.msra.mxu0 %v2230
        %2725 = vmatprep.subr.mxu0 0.0
        %2726 = vmatpush2.msra.mxu0 %v2229
        %2727 = vmatprep.subr.mxu0 0.0
        %2728 = vmatpush2.msra.mxu0 %v2228
        %2729 = vmatprep.mubr.f32.mxu0 %v2047
        %2730 = vmatmul.mubr.f32.gmra.mxu0 %v2046
        %v2731 = vpop.f32.mrf.mxu0
        %v2732 = vadd.f32 %v2662, %v2731
        %v2733 = vpop.f32.mrf.mxu0
        %2734 = vdwg.mxu0
        %2735 = vmatprep.subr.mxu0 0.0
        %2736 = vmatpush1.msra.mxu0 %v2259
        %2737 = vmatprep.subr.mxu0 0.0
        %2738 = vmatpush1.msra.mxu0 %v2258
        %2739 = vmatprep.subr.mxu0 0.0
        %2740 = vmatpush1.msra.mxu0 %v2257
        %2741 = vmatprep.subr.mxu0 0.0
        %2742 = vmatpush1.msra.mxu0 %v2256
        %2743 = vmatprep.subr.mxu0 0.0
        %2744 = vmatpush1.msra.mxu0 %v2255
        %2745 = vmatprep.subr.mxu0 0.0
        %2746 = vmatpush1.msra.mxu0 %v2254
        %2747 = vmatprep.subr.mxu0 0.0
        %2748 = vmatpush1.msra.mxu0 %v2253
        %2749 = vmatprep.subr.mxu0 0.0
        %2750 = vmatpush1.msra.mxu0 %v2252
        %2751 = vmatprep.subr.mxu0 0.0
        %2752 = vmatpush1.msra.mxu0 %v2251
        %2753 = vmatprep.subr.mxu0 0.0
        %2754 = vmatpush1.msra.mxu0 %v2250
        %2755 = vmatprep.subr.mxu0 0.0
        %2756 = vmatpush1.msra.mxu0 %v2249
        %2757 = vmatprep.subr.mxu0 0.0
        %2758 = vmatpush1.msra.mxu0 %v2248
        %2759 = vmatprep.subr.mxu0 0.0
        %2760 = vmatpush1.msra.mxu0 %v2247
        %2761 = vmatprep.subr.mxu0 0.0
        %2762 = vmatpush1.msra.mxu0 %v2246
        %2763 = vmatprep.subr.mxu0 0.0
        %2764 = vmatpush1.msra.mxu0 %v2245
        %2765 = vmatprep.subr.mxu0 0.0
        %2766 = vmatpush1.msra.mxu0 %v2244
        %2767 = vmatprep.subr.mxu0 0.0
        %2768 = vmatpush2.msra.mxu0 %v2275
        %2769 = vmatprep.subr.mxu0 0.0
        %2770 = vmatpush2.msra.mxu0 %v2274
        %2771 = vmatprep.subr.mxu0 0.0
        %2772 = vmatpush2.msra.mxu0 %v2273
        %2773 = vmatprep.subr.mxu0 0.0
        %2774 = vmatpush2.msra.mxu0 %v2272
        %2775 = vmatprep.subr.mxu0 0.0
        %2776 = vmatpush2.msra.mxu0 %v2271
        %2777 = vmatprep.subr.mxu0 0.0
        %2778 = vmatpush2.msra.mxu0 %v2270
        %2779 = vmatprep.subr.mxu0 0.0
        %2780 = vmatpush2.msra.mxu0 %v2269
        %2781 = vmatprep.subr.mxu0 0.0
        %2782 = vmatpush2.msra.mxu0 %v2268
        %2783 = vmatprep.subr.mxu0 0.0
        %2784 = vmatpush2.msra.mxu0 %v2267
        %2785 = vmatprep.subr.mxu0 0.0
        %2786 = vmatpush2.msra.mxu0 %v2266
        %2787 = vmatprep.subr.mxu0 0.0
        %2788 = vmatpush2.msra.mxu0 %v2265
        %2789 = vmatprep.subr.mxu0 0.0
        %2790 = vmatpush2.msra.mxu0 %v2264
        %2791 = vmatprep.subr.mxu0 0.0
        %2792 = vmatpush2.msra.mxu0 %v2263
        %2793 = vmatprep.subr.mxu0 0.0
        %2794 = vmatpush2.msra.mxu0 %v2262
        %2795 = vmatprep.subr.mxu0 0.0
        %2796 = vmatpush2.msra.mxu0 %v2261
        %2797 = vmatprep.subr.mxu0 0.0
        %2798 = vmatpush2.msra.mxu0 %v2260
        %2799 = vmatprep.mubr.f32.mxu0 %v2049
        %2800 = vmatmul.mubr.f32.gmra.mxu0 %v2048
        %v2801 = vpop.f32.mrf.mxu0
        %v2802 = vadd.f32 %v2732, %v2801
        %v2803 = vpop.f32.mrf.mxu0
        %2804 = vdwg.mxu0
        %2805 = vmatprep.subr.mxu0 0.0
        %2806 = vmatpush1.msra.mxu0 %v2291
        %2807 = vmatprep.subr.mxu0 0.0
        %2808 = vmatpush1.msra.mxu0 %v2290
        %2809 = vmatprep.subr.mxu0 0.0
        %2810 = vmatpush1.msra.mxu0 %v2289
        %2811 = vmatprep.subr.mxu0 0.0
        %2812 = vmatpush1.msra.mxu0 %v2288
        %2813 = vmatprep.subr.mxu0 0.0
        %2814 = vmatpush1.msra.mxu0 %v2287
        %2815 = vmatprep.subr.mxu0 0.0
        %2816 = vmatpush1.msra.mxu0 %v2286
        %2817 = vmatprep.subr.mxu0 0.0
        %2818 = vmatpush1.msra.mxu0 %v2285
        %2819 = vmatprep.subr.mxu0 0.0
        %2820 = vmatpush1.msra.mxu0 %v2284
        %2821 = vmatprep.subr.mxu0 0.0
        %2822 = vmatpush1.msra.mxu0 %v2283
        %2823 = vmatprep.subr.mxu0 0.0
        %2824 = vmatpush1.msra.mxu0 %v2282
        %2825 = vmatprep.subr.mxu0 0.0
        %2826 = vmatpush1.msra.mxu0 %v2281
        %2827 = vmatprep.subr.mxu0 0.0
        %2828 = vmatpush1.msra.mxu0 %v2280
        %2829 = vmatprep.subr.mxu0 0.0
        %2830 = vmatpush1.msra.mxu0 %v2279
        %2831 = vmatprep.subr.mxu0 0.0
        %2832 = vmatpush1.msra.mxu0 %v2278
        %2833 = vmatprep.subr.mxu0 0.0
        %2834 = vmatpush1.msra.mxu0 %v2277
        %2835 = vmatprep.subr.mxu0 0.0
        %2836 = vmatpush1.msra.mxu0 %v2276
        %2837 = vmatprep.subr.mxu0 0.0
        %2838 = vmatpush2.msra.mxu0 %v2307
        %2839 = vmatprep.subr.mxu0 0.0
        %2840 = vmatpush2.msra.mxu0 %v2306
        %2841 = vmatprep.subr.mxu0 0.0
        %2842 = vmatpush2.msra.mxu0 %v2305
        %2843 = vmatprep.subr.mxu0 0.0
        %2844 = vmatpush2.msra.mxu0 %v2304
        %2845 = vmatprep.subr.mxu0 0.0
        %2846 = vmatpush2.msra.mxu0 %v2303
        %2847 = vmatprep.subr.mxu0 0.0
        %2848 = vmatpush2.msra.mxu0 %v2302
        %2849 = vmatprep.subr.mxu0 0.0
        %2850 = vmatpush2.msra.mxu0 %v2301
        %2851 = vmatprep.subr.mxu0 0.0
        %2852 = vmatpush2.msra.mxu0 %v2300
        %2853 = vmatprep.subr.mxu0 0.0
        %2854 = vmatpush2.msra.mxu0 %v2299
        %2855 = vmatprep.subr.mxu0 0.0
        %2856 = vmatpush2.msra.mxu0 %v2298
        %2857 = vmatprep.subr.mxu0 0.0
        %2858 = vmatpush2.msra.mxu0 %v2297
        %2859 = vmatprep.subr.mxu0 0.0
        %2860 = vmatpush2.msra.mxu0 %v2296
        %2861 = vmatprep.subr.mxu0 0.0
        %2862 = vmatpush2.msra.mxu0 %v2295
        %2863 = vmatprep.subr.mxu0 0.0
        %2864 = vmatpush2.msra.mxu0 %v2294
        %2865 = vmatprep.subr.mxu0 0.0
        %2866 = vmatpush2.msra.mxu0 %v2293
        %2867 = vmatprep.subr.mxu0 0.0
        %2868 = vmatpush2.msra.mxu0 %v2292
        %2869 = vmatprep.mubr.f32.mxu0 %v2051
        %2870 = vmatmul.mubr.f32.gmra.mxu0 %v2050
        %v2871 = vpop.f32.mrf.mxu0
        %v2872 = vadd.f32 %v2802, %v2871
        %v2873 = vpop.f32.mrf.mxu0
        %2874 = vdwg.mxu0
        %v2875 = vadd.f32 %v1316, %v2872
        %v2876 = vld [vmem:[%s11] sm:$0x1]
        %v2877 = vld [vmem:[%s12] sm:$0x1]
        %v2878 = vsel %vm447, %v2875, 0.0
        %2879 = vadd.xlane.f32.xlu0 %v2878
        %v2880 = vpop.xlane.xlu0 %2879
        %v2881 = vmul.f32 %v2880, %v1292
        %v2882 = vsub.f32 %v2875, %v2881
        %v2883 = vmul.f32 %v2882, %v2882
        %v2884 = vsel %vm447, %v2883, 0.0
        %2885 = vadd.xlane.f32.xlu0 %v2884
        %v2886 = vpop.xlane.xlu0 %2885
        %v2887 = vmul.f32 %v2886, %v1292
        %v2888 = vadd.f32 %v2887, 1e-05
        %v2889 = vrsqrt.pop %v2888
        %v2890 = vmul.f32 %v2882, %v2889
        %v2892 = vlaneseq
        %v2893 = vshrl.u32 %v2892, 7
        %v2894 = vsub.s32 0, %v2893
        %v2895 = vrot.slane %v2876, %v2894
        %v2897 = vmul.f32 %v2890, %v2895
        %v2899 = vlaneseq
        %v2900 = vshrl.u32 %v2899, 7
        %v2901 = vsub.s32 0, %v2900
        %v2902 = vrot.slane %v2877, %v2901
        %v2904 = vadd.f32 %v2897, %v2902
        %s2905 = scalar_lea.vmem %s1, 32
        %v2906 = vld [vmem:[%s2905] sm:$0xff]
        %v2907 = vld [vmem:[%s2905 + $0x8] sm:$0xff]
        %v2908 = vld [vmem:[%s2905 + $0x10] sm:$0xff]
        %v2909 = vld [vmem:[%s2905 + $0x18] sm:$0xff]
        %s2910 = scalar_lea.vmem %s2, 1
        %v2911 = vld [vmem:[%s2910] sm:$0x1]
        %v2913 = vlaneseq
        %v2914 = vshrl.u32 %v2913, 7
        %v2915 = vsub.s32 0, %v2914
        %v2916 = vrot.slane %v2911, %v2915
        %v2919 = vsel %vm447, %v2904, 0
        %2921 = vmatprep.subr.mxu0 0.0
        %2922 = vmatpush1.msra.mxu0 0.0
        %2923 = vmatprep.subr.mxu0 0.0
        %2924 = vmatpush1.msra.mxu0 0.0
        %2925 = vmatprep.subr.mxu0 0.0
        %2926 = vmatpush1.msra.mxu0 0.0
        %2927 = vmatprep.subr.mxu0 0.0
        %2928 = vmatpush1.msra.mxu0 0.0
        %2929 = vmatprep.subr.mxu0 0.0
        %2930 = vmatpush1.msra.mxu0 0.0
        %2931 = vmatprep.subr.mxu0 0.0
        %2932 = vmatpush1.msra.mxu0 0.0
        %2933 = vmatprep.subr.mxu0 0.0
        %2934 = vmatpush1.msra.mxu0 0.0
        %2935 = vmatprep.subr.mxu0 0.0
        %2936 = vmatpush1.msra.mxu0 0.0
        %2937 = vmatprep.subr.mxu0 0.0
        %2938 = vmatpush1.msra.mxu0 0.0
        %2939 = vmatprep.subr.mxu0 0.0
        %2940 = vmatpush1.msra.mxu0 0.0
        %2941 = vmatprep.subr.mxu0 0.0
        %2942 = vmatpush1.msra.mxu0 0.0
        %2943 = vmatprep.subr.mxu0 0.0
        %2944 = vmatpush1.msra.mxu0 0.0
        %2945 = vmatprep.subr.mxu0 0.0
        %2946 = vmatpush1.msra.mxu0 %v2909
        %2947 = vmatprep.subr.mxu0 0.0
        %2948 = vmatpush1.msra.mxu0 %v2908
        %2949 = vmatprep.subr.mxu0 0.0
        %2950 = vmatpush1.msra.mxu0 %v2907
        %2951 = vmatprep.subr.mxu0 0.0
        %2952 = vmatpush1.msra.mxu0 %v2906
        %2953 = vmatprep.subr.mxu0 0.0
        %2954 = vmatpush2.msra.mxu0 0.0
        %2955 = vmatprep.subr.mxu0 0.0
        %2956 = vmatpush2.msra.mxu0 0.0
        %2957 = vmatprep.subr.mxu0 0.0
        %2958 = vmatpush2.msra.mxu0 0.0
        %2959 = vmatprep.subr.mxu0 0.0
        %2960 = vmatpush2.msra.mxu0 0.0
        %2961 = vmatprep.subr.mxu0 0.0
        %2962 = vmatpush2.msra.mxu0 0.0
        %2963 = vmatprep.subr.mxu0 0.0
        %2964 = vmatpush2.msra.mxu0 0.0
        %2965 = vmatprep.subr.mxu0 0.0
        %2966 = vmatpush2.msra.mxu0 0.0
        %2967 = vmatprep.subr.mxu0 0.0
        %2968 = vmatpush2.msra.mxu0 0.0
        %2969 = vmatprep.subr.mxu0 0.0
        %2970 = vmatpush2.msra.mxu0 0.0
        %2971 = vmatprep.subr.mxu0 0.0
        %2972 = vmatpush2.msra.mxu0 0.0
        %2973 = vmatprep.subr.mxu0 0.0
        %2974 = vmatpush2.msra.mxu0 0.0
        %2975 = vmatprep.subr.mxu0 0.0
        %2976 = vmatpush2.msra.mxu0 0.0
        %2977 = vmatprep.subr.mxu0 0.0
        %2978 = vmatpush2.msra.mxu0 0.0
        %2979 = vmatprep.subr.mxu0 0.0
        %2980 = vmatpush2.msra.mxu0 0.0
        %2981 = vmatprep.subr.mxu0 0.0
        %2982 = vmatpush2.msra.mxu0 0.0
        %2983 = vmatprep.subr.mxu0 0.0
        %2984 = vmatpush2.msra.mxu0 0.0
        %2985 = vmatprep.mubr.f32.mxu0 0.0
        %2986 = vmatmul.mubr.f32.gmra.mxu0 %v2919
        %v2987 = vpop.f32.mrf.mxu0
        %v2988 = vadd.f32 %v2916, %v2987
        %v2989 = vpop.f32.mrf.mxu0
        %2990 = vdwg.mxu0
        %2992 = vrot.lane.b32.xlu0 %v2988, 96
        %v2993 = vpop.permute.xlu0 %2992
        %v2994 = vsel %vm524, %v2988, 0
        %v2996 = vsel %vm524, %v2993, 0
        %2998 = vmatprep.subr.mxu0 0.0
        %2999 = vmatpush1.xpose.msra.mxu0 0.0
        %3000 = vmatprep.subr.mxu0 0.0
        %3001 = vmatpush1.xpose.msra.mxu0 0.0
        %3002 = vmatprep.subr.mxu0 0.0
        %3003 = vmatpush1.xpose.msra.mxu0 0.0
        %3004 = vmatprep.subr.mxu0 0.0
        %3005 = vmatpush1.xpose.msra.mxu0 0.0
        %3006 = vmatprep.subr.mxu0 0.0
        %3007 = vmatpush1.xpose.msra.mxu0 0.0
        %3008 = vmatprep.subr.mxu0 0.0
        %3009 = vmatpush1.xpose.msra.mxu0 0.0
        %3010 = vmatprep.subr.mxu0 0.0
        %3011 = vmatpush1.xpose.msra.mxu0 0.0
        %3012 = vmatprep.subr.mxu0 0.0
        %3013 = vmatpush1.xpose.msra.mxu0 0.0
        %3014 = vmatprep.subr.mxu0 0.0
        %3015 = vmatpush1.xpose.msra.mxu0 0.0
        %3016 = vmatprep.subr.mxu0 0.0
        %3017 = vmatpush1.xpose.msra.mxu0 0.0
        %3018 = vmatprep.subr.mxu0 0.0
        %3019 = vmatpush1.xpose.msra.mxu0 0.0
        %3020 = vmatprep.subr.mxu0 0.0
        %3021 = vmatpush1.xpose.msra.mxu0 0.0
        %3022 = vmatprep.subr.mxu0 0.0
        %3023 = vmatpush1.xpose.msra.mxu0 0.0
        %3024 = vmatprep.subr.mxu0 0.0
        %3025 = vmatpush1.xpose.msra.mxu0 0.0
        %3026 = vmatprep.subr.mxu0 0.0
        %3027 = vmatpush1.xpose.msra.mxu0 0.0
        %3028 = vmatprep.subr.mxu0 0.0
        %3029 = vmatpush1.xpose.msra.mxu0 %v2996
        %3030 = vmatprep.subr.mxu0 0.0
        %3031 = vmatpush2.xpose.msra.mxu0 0.0
        %3032 = vmatprep.subr.mxu0 0.0
        %3033 = vmatpush2.xpose.msra.mxu0 0.0
        %3034 = vmatprep.subr.mxu0 0.0
        %3035 = vmatpush2.xpose.msra.mxu0 0.0
        %3036 = vmatprep.subr.mxu0 0.0
        %3037 = vmatpush2.xpose.msra.mxu0 0.0
        %3038 = vmatprep.subr.mxu0 0.0
        %3039 = vmatpush2.xpose.msra.mxu0 0.0
        %3040 = vmatprep.subr.mxu0 0.0
        %3041 = vmatpush2.xpose.msra.mxu0 0.0
        %3042 = vmatprep.subr.mxu0 0.0
        %3043 = vmatpush2.xpose.msra.mxu0 0.0
        %3044 = vmatprep.subr.mxu0 0.0
        %3045 = vmatpush2.xpose.msra.mxu0 0.0
        %3046 = vmatprep.subr.mxu0 0.0
        %3047 = vmatpush2.xpose.msra.mxu0 0.0
        %3048 = vmatprep.subr.mxu0 0.0
        %3049 = vmatpush2.xpose.msra.mxu0 0.0
        %3050 = vmatprep.subr.mxu0 0.0
        %3051 = vmatpush2.xpose.msra.mxu0 0.0
        %3052 = vmatprep.subr.mxu0 0.0
        %3053 = vmatpush2.xpose.msra.mxu0 0.0
        %3054 = vmatprep.subr.mxu0 0.0
        %3055 = vmatpush2.xpose.msra.mxu0 0.0
        %3056 = vmatprep.subr.mxu0 0.0
        %3057 = vmatpush2.xpose.msra.mxu0 0.0
        %3058 = vmatprep.subr.mxu0 0.0
        %3059 = vmatpush2.xpose.msra.mxu0 0.0
        %3060 = vmatprep.subr.mxu0 0.0
        %3061 = vmatpush2.xpose.msra.mxu0 0.0
        %3062 = vmatprep.mubr.f32.mxu0 0.0
        %3063 = vmatmul.mubr.f32.gmra.mxu0 %v2994
        %v3064 = vpop.f32.mrf.mxu0
        %v3065 = vadd.f32 0.0, %v3064
        %v3066 = vpop.f32.mrf.mxu0
        %3067 = vdwg.mxu0
        %v3068 = vmul.f32 %v3065, 0.35355338
        %v3069 = vsel %vm524, %v3068, -inf
        %3070 = vmax.xlane.f32.xlu0 %v3069
        %v3071 = vpop.xlane.xlu0 %3070
        %v3072 = vsub.f32 %v3068, %v3071
        %v3073 = vmul.f32 %v3072, 1.442695
        %v3074 = vpow.pop %v3073
        %v3075 = vsel %vm524, %v3074, 0.0
        %3076 = vadd.xlane.f32.xlu0 %v3075
        %v3077 = vpop.xlane.xlu0 %3076
        %v3078 = vrcp.pop %v3077
        %v3079 = vmul.f32 %v3074, %v3078
        %3080 = vrot.lane.b32.xlu0 %v2988, 64
        %v3081 = vpop.permute.xlu0 %3080
        %v3084 = vsel %vm524, %v3079, 0
        %3086 = vmatprep.subr.mxu0 0.0
        %3087 = vmatpush1.msra.mxu0 0.0
        %3088 = vmatprep.subr.mxu0 0.0
        %3089 = vmatpush1.msra.mxu0 0.0
        %3090 = vmatprep.subr.mxu0 0.0
        %3091 = vmatpush1.msra.mxu0 0.0
        %3092 = vmatprep.subr.mxu0 0.0
        %3093 = vmatpush1.msra.mxu0 0.0
        %3094 = vmatprep.subr.mxu0 0.0
        %3095 = vmatpush1.msra.mxu0 0.0
        %3096 = vmatprep.subr.mxu0 0.0
        %3097 = vmatpush1.msra.mxu0 0.0
        %3098 = vmatprep.subr.mxu0 0.0
        %3099 = vmatpush1.msra.mxu0 0.0
        %3100 = vmatprep.subr.mxu0 0.0
        %3101 = vmatpush1.msra.mxu0 0.0
        %3102 = vmatprep.subr.mxu0 0.0
        %3103 = vmatpush1.msra.mxu0 0.0
        %3104 = vmatprep.subr.mxu0 0.0
        %3105 = vmatpush1.msra.mxu0 0.0
        %3106 = vmatprep.subr.mxu0 0.0
        %3107 = vmatpush1.msra.mxu0 0.0
        %3108 = vmatprep.subr.mxu0 0.0
        %3109 = vmatpush1.msra.mxu0 0.0
        %3110 = vmatprep.subr.mxu0 0.0
        %3111 = vmatpush1.msra.mxu0 0.0
        %3112 = vmatprep.subr.mxu0 0.0
        %3113 = vmatpush1.msra.mxu0 0.0
        %3114 = vmatprep.subr.mxu0 0.0
        %3115 = vmatpush1.msra.mxu0 0.0
        %3116 = vmatprep.subr.mxu0 0.0
        %3117 = vmatpush1.msra.mxu0 %v3081
        %3118 = vmatprep.subr.mxu0 0.0
        %3119 = vmatpush2.msra.mxu0 0.0
        %3120 = vmatprep.subr.mxu0 0.0
        %3121 = vmatpush2.msra.mxu0 0.0
        %3122 = vmatprep.subr.mxu0 0.0
        %3123 = vmatpush2.msra.mxu0 0.0
        %3124 = vmatprep.subr.mxu0 0.0
        %3125 = vmatpush2.msra.mxu0 0.0
        %3126 = vmatprep.subr.mxu0 0.0
        %3127 = vmatpush2.msra.mxu0 0.0
        %3128 = vmatprep.subr.mxu0 0.0
        %3129 = vmatpush2.msra.mxu0 0.0
        %3130 = vmatprep.subr.mxu0 0.0
        %3131 = vmatpush2.msra.mxu0 0.0
        %3132 = vmatprep.subr.mxu0 0.0
        %3133 = vmatpush2.msra.mxu0 0.0
        %3134 = vmatprep.subr.mxu0 0.0
        %3135 = vmatpush2.msra.mxu0 0.0
        %3136 = vmatprep.subr.mxu0 0.0
        %3137 = vmatpush2.msra.mxu0 0.0
        %3138 = vmatprep.subr.mxu0 0.0
        %3139 = vmatpush2.msra.mxu0 0.0
        %3140 = vmatprep.subr.mxu0 0.0
        %3141 = vmatpush2.msra.mxu0 0.0
        %3142 = vmatprep.subr.mxu0 0.0
        %3143 = vmatpush2.msra.mxu0 0.0
        %3144 = vmatprep.subr.mxu0 0.0
        %3145 = vmatpush2.msra.mxu0 0.0
        %3146 = vmatprep.subr.mxu0 0.0
        %3147 = vmatpush2.msra.mxu0 0.0
        %3148 = vmatprep.subr.mxu0 0.0
        %3149 = vmatpush2.msra.mxu0 0.0
        %3150 = vmatprep.mubr.f32.mxu0 0.0
        %3151 = vmatmul.mubr.f32.gmra.mxu0 %v3084
        %v3152 = vpop.f32.mrf.mxu0
        %v3153 = vadd.f32 0.0, %v3152
        %v3154 = vpop.f32.mrf.mxu0
        %3155 = vdwg.mxu0
        %3156 = vrot.lane.b32.xlu0 %v2988, 120
        %v3157 = vpop.permute.xlu0 %3156
        %3158 = vrot.lane.b32.xlu0 %v2988, 88
        %v3159 = vpop.permute.xlu0 %3158
        %v3160 = vsel %vm524, %v3157, 0
        %v3162 = vsel %vm524, %v3159, 0
        %3164 = vmatprep.subr.mxu0 0.0
        %3165 = vmatpush1.xpose.msra.mxu0 0.0
        %3166 = vmatprep.subr.mxu0 0.0
        %3167 = vmatpush1.xpose.msra.mxu0 0.0
        %3168 = vmatprep.subr.mxu0 0.0
        %3169 = vmatpush1.xpose.msra.mxu0 0.0
        %3170 = vmatprep.subr.mxu0 0.0
        %3171 = vmatpush1.xpose.msra.mxu0 0.0
        %3172 = vmatprep.subr.mxu0 0.0
        %3173 = vmatpush1.xpose.msra.mxu0 0.0
        %3174 = vmatprep.subr.mxu0 0.0
        %3175 = vmatpush1.xpose.msra.mxu0 0.0
        %3176 = vmatprep.subr.mxu0 0.0
        %3177 = vmatpush1.xpose.msra.mxu0 0.0
        %3178 = vmatprep.subr.mxu0 0.0
        %3179 = vmatpush1.xpose.msra.mxu0 0.0
        %3180 = vmatprep.subr.mxu0 0.0
        %3181 = vmatpush1.xpose.msra.mxu0 0.0
        %3182 = vmatprep.subr.mxu0 0.0
        %3183 = vmatpush1.xpose.msra.mxu0 0.0
        %3184 = vmatprep.subr.mxu0 0.0
        %3185 = vmatpush1.xpose.msra.mxu0 0.0
        %3186 = vmatprep.subr.mxu0 0.0
        %3187 = vmatpush1.xpose.msra.mxu0 0.0
        %3188 = vmatprep.subr.mxu0 0.0
        %3189 = vmatpush1.xpose.msra.mxu0 0.0
        %3190 = vmatprep.subr.mxu0 0.0
        %3191 = vmatpush1.xpose.msra.mxu0 0.0
        %3192 = vmatprep.subr.mxu0 0.0
        %3193 = vmatpush1.xpose.msra.mxu0 0.0
        %3194 = vmatprep.subr.mxu0 0.0
        %3195 = vmatpush1.xpose.msra.mxu0 %v3162
        %3196 = vmatprep.subr.mxu0 0.0
        %3197 = vmatpush2.xpose.msra.mxu0 0.0
        %3198 = vmatprep.subr.mxu0 0.0
        %3199 = vmatpush2.xpose.msra.mxu0 0.0
        %3200 = vmatprep.subr.mxu0 0.0
        %3201 = vmatpush2.xpose.msra.mxu0 0.0
        %3202 = vmatprep.subr.mxu0 0.0
        %3203 = vmatpush2.xpose.msra.mxu0 0.0
        %3204 = vmatprep.subr.mxu0 0.0
        %3205 = vmatpush2.xpose.msra.mxu0 0.0
        %3206 = vmatprep.subr.mxu0 0.0
        %3207 = vmatpush2.xpose.msra.mxu0 0.0
        %3208 = vmatprep.subr.mxu0 0.0
        %3209 = vmatpush2.xpose.msra.mxu0 0.0
        %3210 = vmatprep.subr.mxu0 0.0
        %3211 = vmatpush2.xpose.msra.mxu0 0.0
        %3212 = vmatprep.subr.mxu0 0.0
        %3213 = vmatpush2.xpose.msra.mxu0 0.0
        %3214 = vmatprep.subr.mxu0 0.0
        %3215 = vmatpush2.xpose.msra.mxu0 0.0
        %3216 = vmatprep.subr.mxu0 0.0
        %3217 = vmatpush2.xpose.msra.mxu0 0.0
        %3218 = vmatprep.subr.mxu0 0.0
        %3219 = vmatpush2.xpose.msra.mxu0 0.0
        %3220 = vmatprep.subr.mxu0 0.0
        %3221 = vmatpush2.xpose.msra.mxu0 0.0
        %3222 = vmatprep.subr.mxu0 0.0
        %3223 = vmatpush2.xpose.msra.mxu0 0.0
        %3224 = vmatprep.subr.mxu0 0.0
        %3225 = vmatpush2.xpose.msra.mxu0 0.0
        %3226 = vmatprep.subr.mxu0 0.0
        %3227 = vmatpush2.xpose.msra.mxu0 0.0
        %3228 = vmatprep.mubr.f32.mxu0 0.0
        %3229 = vmatmul.mubr.f32.gmra.mxu0 %v3160
        %v3230 = vpop.f32.mrf.mxu0
        %v3231 = vadd.f32 0.0, %v3230
        %v3232 = vpop.f32.mrf.mxu0
        %3233 = vdwg.mxu0
        %v3234 = vmul.f32 %v3231, 0.35355338
        %v3235 = vsel %vm524, %v3234, -inf
        %3236 = vmax.xlane.f32.xlu0 %v3235
        %v3237 = vpop.xlane.xlu0 %3236
        %v3238 = vsub.f32 %v3234, %v3237
        %v3239 = vmul.f32 %v3238, 1.442695
        %v3240 = vpow.pop %v3239
        %v3241 = vsel %vm524, %v3240, 0.0
        %3242 = vadd.xlane.f32.xlu0 %v3241
        %v3243 = vpop.xlane.xlu0 %3242
        %v3244 = vrcp.pop %v3243
        %v3245 = vmul.f32 %v3240, %v3244
        %3246 = vrot.lane.b32.xlu0 %v2988, 56
        %v3247 = vpop.permute.xlu0 %3246
        %v3250 = vsel %vm524, %v3245, 0
        %3252 = vmatprep.subr.mxu0 0.0
        %3253 = vmatpush1.msra.mxu0 0.0
        %3254 = vmatprep.subr.mxu0 0.0
        %3255 = vmatpush1.msra.mxu0 0.0
        %3256 = vmatprep.subr.mxu0 0.0
        %3257 = vmatpush1.msra.mxu0 0.0
        %3258 = vmatprep.subr.mxu0 0.0
        %3259 = vmatpush1.msra.mxu0 0.0
        %3260 = vmatprep.subr.mxu0 0.0
        %3261 = vmatpush1.msra.mxu0 0.0
        %3262 = vmatprep.subr.mxu0 0.0
        %3263 = vmatpush1.msra.mxu0 0.0
        %3264 = vmatprep.subr.mxu0 0.0
        %3265 = vmatpush1.msra.mxu0 0.0
        %3266 = vmatprep.subr.mxu0 0.0
        %3267 = vmatpush1.msra.mxu0 0.0
        %3268 = vmatprep.subr.mxu0 0.0
        %3269 = vmatpush1.msra.mxu0 0.0
        %3270 = vmatprep.subr.mxu0 0.0
        %3271 = vmatpush1.msra.mxu0 0.0
        %3272 = vmatprep.subr.mxu0 0.0
        %3273 = vmatpush1.msra.mxu0 0.0
        %3274 = vmatprep.subr.mxu0 0.0
        %3275 = vmatpush1.msra.mxu0 0.0
        %3276 = vmatprep.subr.mxu0 0.0
        %3277 = vmatpush1.msra.mxu0 0.0
        %3278 = vmatprep.subr.mxu0 0.0
        %3279 = vmatpush1.msra.mxu0 0.0
        %3280 = vmatprep.subr.mxu0 0.0
        %3281 = vmatpush1.msra.mxu0 0.0
        %3282 = vmatprep.subr.mxu0 0.0
        %3283 = vmatpush1.msra.mxu0 %v3247
        %3284 = vmatprep.subr.mxu0 0.0
        %3285 = vmatpush2.msra.mxu0 0.0
        %3286 = vmatprep.subr.mxu0 0.0
        %3287 = vmatpush2.msra.mxu0 0.0
        %3288 = vmatprep.subr.mxu0 0.0
        %3289 = vmatpush2.msra.mxu0 0.0
        %3290 = vmatprep.subr.mxu0 0.0
        %3291 = vmatpush2.msra.mxu0 0.0
        %3292 = vmatprep.subr.mxu0 0.0
        %3293 = vmatpush2.msra.mxu0 0.0
        %3294 = vmatprep.subr.mxu0 0.0
        %3295 = vmatpush2.msra.mxu0 0.0
        %3296 = vmatprep.subr.mxu0 0.0
        %3297 = vmatpush2.msra.mxu0 0.0
        %3298 = vmatprep.subr.mxu0 0.0
        %3299 = vmatpush2.msra.mxu0 0.0
        %3300 = vmatprep.subr.mxu0 0.0
        %3301 = vmatpush2.msra.mxu0 0.0
        %3302 = vmatprep.subr.mxu0 0.0
        %3303 = vmatpush2.msra.mxu0 0.0
        %3304 = vmatprep.subr.mxu0 0.0
        %3305 = vmatpush2.msra.mxu0 0.0
        %3306 = vmatprep.subr.mxu0 0.0
        %3307 = vmatpush2.msra.mxu0 0.0
        %3308 = vmatprep.subr.mxu0 0.0
        %3309 = vmatpush2.msra.mxu0 0.0
        %3310 = vmatprep.subr.mxu0 0.0
        %3311 = vmatpush2.msra.mxu0 0.0
        %3312 = vmatprep.subr.mxu0 0.0
        %3313 = vmatpush2.msra.mxu0 0.0
        %3314 = vmatprep.subr.mxu0 0.0
        %3315 = vmatpush2.msra.mxu0 0.0
        %3316 = vmatprep.mubr.f32.mxu0 0.0
        %3317 = vmatmul.mubr.f32.gmra.mxu0 %v3250
        %v3318 = vpop.f32.mrf.mxu0
        %v3319 = vadd.f32 0.0, %v3318
        %v3320 = vpop.f32.mrf.mxu0
        %3321 = vdwg.mxu0
        %3322 = vrot.lane.b32.xlu0 %v2988, 112
        %v3323 = vpop.permute.xlu0 %3322
        %3324 = vrot.lane.b32.xlu0 %v2988, 80
        %v3325 = vpop.permute.xlu0 %3324
        %v3326 = vsel %vm524, %v3323, 0
        %v3328 = vsel %vm524, %v3325, 0
        %3330 = vmatprep.subr.mxu0 0.0
        %3331 = vmatpush1.xpose.msra.mxu0 0.0
        %3332 = vmatprep.subr.mxu0 0.0
        %3333 = vmatpush1.xpose.msra.mxu0 0.0
        %3334 = vmatprep.subr.mxu0 0.0
        %3335 = vmatpush1.xpose.msra.mxu0 0.0
        %3336 = vmatprep.subr.mxu0 0.0
        %3337 = vmatpush1.xpose.msra.mxu0 0.0
        %3338 = vmatprep.subr.mxu0 0.0
        %3339 = vmatpush1.xpose.msra.mxu0 0.0
        %3340 = vmatprep.subr.mxu0 0.0
        %3341 = vmatpush1.xpose.msra.mxu0 0.0
        %3342 = vmatprep.subr.mxu0 0.0
        %3343 = vmatpush1.xpose.msra.mxu0 0.0
        %3344 = vmatprep.subr.mxu0 0.0
        %3345 = vmatpush1.xpose.msra.mxu0 0.0
        %3346 = vmatprep.subr.mxu0 0.0
        %3347 = vmatpush1.xpose.msra.mxu0 0.0
        %3348 = vmatprep.subr.mxu0 0.0
        %3349 = vmatpush1.xpose.msra.mxu0 0.0
        %3350 = vmatprep.subr.mxu0 0.0
        %3351 = vmatpush1.xpose.msra.mxu0 0.0
        %3352 = vmatprep.subr.mxu0 0.0
        %3353 = vmatpush1.xpose.msra.mxu0 0.0
        %3354 = vmatprep.subr.mxu0 0.0
        %3355 = vmatpush1.xpose.msra.mxu0 0.0
        %3356 = vmatprep.subr.mxu0 0.0
        %3357 = vmatpush1.xpose.msra.mxu0 0.0
        %3358 = vmatprep.subr.mxu0 0.0
        %3359 = vmatpush1.xpose.msra.mxu0 0.0
        %3360 = vmatprep.subr.mxu0 0.0
        %3361 = vmatpush1.xpose.msra.mxu0 %v3328
        %3362 = vmatprep.subr.mxu0 0.0
        %3363 = vmatpush2.xpose.msra.mxu0 0.0
        %3364 = vmatprep.subr.mxu0 0.0
        %3365 = vmatpush2.xpose.msra.mxu0 0.0
        %3366 = vmatprep.subr.mxu0 0.0
        %3367 = vmatpush2.xpose.msra.mxu0 0.0
        %3368 = vmatprep.subr.mxu0 0.0
        %3369 = vmatpush2.xpose.msra.mxu0 0.0
        %3370 = vmatprep.subr.mxu0 0.0
        %3371 = vmatpush2.xpose.msra.mxu0 0.0
        %3372 = vmatprep.subr.mxu0 0.0
        %3373 = vmatpush2.xpose.msra.mxu0 0.0
        %3374 = vmatprep.subr.mxu0 0.0
        %3375 = vmatpush2.xpose.msra.mxu0 0.0
        %3376 = vmatprep.subr.mxu0 0.0
        %3377 = vmatpush2.xpose.msra.mxu0 0.0
        %3378 = vmatprep.subr.mxu0 0.0
        %3379 = vmatpush2.xpose.msra.mxu0 0.0
        %3380 = vmatprep.subr.mxu0 0.0
        %3381 = vmatpush2.xpose.msra.mxu0 0.0
        %3382 = vmatprep.subr.mxu0 0.0
        %3383 = vmatpush2.xpose.msra.mxu0 0.0
        %3384 = vmatprep.subr.mxu0 0.0
        %3385 = vmatpush2.xpose.msra.mxu0 0.0
        %3386 = vmatprep.subr.mxu0 0.0
        %3387 = vmatpush2.xpose.msra.mxu0 0.0
        %3388 = vmatprep.subr.mxu0 0.0
        %3389 = vmatpush2.xpose.msra.mxu0 0.0
        %3390 = vmatprep.subr.mxu0 0.0
        %3391 = vmatpush2.xpose.msra.mxu0 0.0
        %3392 = vmatprep.subr.mxu0 0.0
        %3393 = vmatpush2.xpose.msra.mxu0 0.0
        %3394 = vmatprep.mubr.f32.mxu0 0.0
        %3395 = vmatmul.mubr.f32.gmra.mxu0 %v3326
        %v3396 = vpop.f32.mrf.mxu0
        %v3397 = vadd.f32 0.0, %v3396
        %v3398 = vpop.f32.mrf.mxu0
        %3399 = vdwg.mxu0
        %v3400 = vmul.f32 %v3397, 0.35355338
        %v3401 = vsel %vm524, %v3400, -inf
        %3402 = vmax.xlane.f32.xlu0 %v3401
        %v3403 = vpop.xlane.xlu0 %3402
        %v3404 = vsub.f32 %v3400, %v3403
        %v3405 = vmul.f32 %v3404, 1.442695
        %v3406 = vpow.pop %v3405
        %v3407 = vsel %vm524, %v3406, 0.0
        %3408 = vadd.xlane.f32.xlu0 %v3407
        %v3409 = vpop.xlane.xlu0 %3408
        %v3410 = vrcp.pop %v3409
        %v3411 = vmul.f32 %v3406, %v3410
        %3412 = vrot.lane.b32.xlu0 %v2988, 48
        %v3413 = vpop.permute.xlu0 %3412
        %v3416 = vsel %vm524, %v3411, 0
        %3418 = vmatprep.subr.mxu0 0.0
        %3419 = vmatpush1.msra.mxu0 0.0
        %3420 = vmatprep.subr.mxu0 0.0
        %3421 = vmatpush1.msra.mxu0 0.0
        %3422 = vmatprep.subr.mxu0 0.0
        %3423 = vmatpush1.msra.mxu0 0.0
        %3424 = vmatprep.subr.mxu0 0.0
        %3425 = vmatpush1.msra.mxu0 0.0
        %3426 = vmatprep.subr.mxu0 0.0
        %3427 = vmatpush1.msra.mxu0 0.0
        %3428 = vmatprep.subr.mxu0 0.0
        %3429 = vmatpush1.msra.mxu0 0.0
        %3430 = vmatprep.subr.mxu0 0.0
        %3431 = vmatpush1.msra.mxu0 0.0
        %3432 = vmatprep.subr.mxu0 0.0
        %3433 = vmatpush1.msra.mxu0 0.0
        %3434 = vmatprep.subr.mxu0 0.0
        %3435 = vmatpush1.msra.mxu0 0.0
        %3436 = vmatprep.subr.mxu0 0.0
        %3437 = vmatpush1.msra.mxu0 0.0
        %3438 = vmatprep.subr.mxu0 0.0
        %3439 = vmatpush1.msra.mxu0 0.0
        %3440 = vmatprep.subr.mxu0 0.0
        %3441 = vmatpush1.msra.mxu0 0.0
        %3442 = vmatprep.subr.mxu0 0.0
        %3443 = vmatpush1.msra.mxu0 0.0
        %3444 = vmatprep.subr.mxu0 0.0
        %3445 = vmatpush1.msra.mxu0 0.0
        %3446 = vmatprep.subr.mxu0 0.0
        %3447 = vmatpush1.msra.mxu0 0.0
        %3448 = vmatprep.subr.mxu0 0.0
        %3449 = vmatpush1.msra.mxu0 %v3413
        %3450 = vmatprep.subr.mxu0 0.0
        %3451 = vmatpush2.msra.mxu0 0.0
        %3452 = vmatprep.subr.mxu0 0.0
        %3453 = vmatpush2.msra.mxu0 0.0
        %3454 = vmatprep.subr.mxu0 0.0
        %3455 = vmatpush2.msra.mxu0 0.0
        %3456 = vmatprep.subr.mxu0 0.0
        %3457 = vmatpush2.msra.mxu0 0.0
        %3458 = vmatprep.subr.mxu0 0.0
        %3459 = vmatpush2.msra.mxu0 0.0
        %3460 = vmatprep.subr.mxu0 0.0
        %3461 = vmatpush2.msra.mxu0 0.0
        %3462 = vmatprep.subr.mxu0 0.0
        %3463 = vmatpush2.msra.mxu0 0.0
        %3464 = vmatprep.subr.mxu0 0.0
        %3465 = vmatpush2.msra.mxu0 0.0
        %3466 = vmatprep.subr.mxu0 0.0
        %3467 = vmatpush2.msra.mxu0 0.0
        %3468 = vmatprep.subr.mxu0 0.0
        %3469 = vmatpush2.msra.mxu0 0.0
        %3470 = vmatprep.subr.mxu0 0.0
        %3471 = vmatpush2.msra.mxu0 0.0
        %3472 = vmatprep.subr.mxu0 0.0
        %3473 = vmatpush2.msra.mxu0 0.0
        %3474 = vmatprep.subr.mxu0 0.0
        %3475 = vmatpush2.msra.mxu0 0.0
        %3476 = vmatprep.subr.mxu0 0.0
        %3477 = vmatpush2.msra.mxu0 0.0
        %3478 = vmatprep.subr.mxu0 0.0
        %3479 = vmatpush2.msra.mxu0 0.0
        %3480 = vmatprep.subr.mxu0 0.0
        %3481 = vmatpush2.msra.mxu0 0.0
        %3482 = vmatprep.mubr.f32.mxu0 0.0
        %3483 = vmatmul.mubr.f32.gmra.mxu0 %v3416
        %v3484 = vpop.f32.mrf.mxu0
        %v3485 = vadd.f32 0.0, %v3484
        %v3486 = vpop.f32.mrf.mxu0
        %3487 = vdwg.mxu0
        %3488 = vrot.lane.b32.xlu0 %v2988, 104
        %v3489 = vpop.permute.xlu0 %3488
        %3490 = vrot.lane.b32.xlu0 %v2988, 72
        %v3491 = vpop.permute.xlu0 %3490
        %v3492 = vsel %vm524, %v3489, 0
        %v3494 = vsel %vm524, %v3491, 0
        %3496 = vmatprep.subr.mxu0 0.0
        %3497 = vmatpush1.xpose.msra.mxu0 0.0
        %3498 = vmatprep.subr.mxu0 0.0
        %3499 = vmatpush1.xpose.msra.mxu0 0.0
        %3500 = vmatprep.subr.mxu0 0.0
        %3501 = vmatpush1.xpose.msra.mxu0 0.0
        %3502 = vmatprep.subr.mxu0 0.0
        %3503 = vmatpush1.xpose.msra.mxu0 0.0
        %3504 = vmatprep.subr.mxu0 0.0
        %3505 = vmatpush1.xpose.msra.mxu0 0.0
        %3506 = vmatprep.subr.mxu0 0.0
        %3507 = vmatpush1.xpose.msra.mxu0 0.0
        %3508 = vmatprep.subr.mxu0 0.0
        %3509 = vmatpush1.xpose.msra.mxu0 0.0
        %3510 = vmatprep.subr.mxu0 0.0
        %3511 = vmatpush1.xpose.msra.mxu0 0.0
        %3512 = vmatprep.subr.mxu0 0.0
        %3513 = vmatpush1.xpose.msra.mxu0 0.0
        %3514 = vmatprep.subr.mxu0 0.0
        %3515 = vmatpush1.xpose.msra.mxu0 0.0
        %3516 = vmatprep.subr.mxu0 0.0
        %3517 = vmatpush1.xpose.msra.mxu0 0.0
        %3518 = vmatprep.subr.mxu0 0.0
        %3519 = vmatpush1.xpose.msra.mxu0 0.0
        %3520 = vmatprep.subr.mxu0 0.0
        %3521 = vmatpush1.xpose.msra.mxu0 0.0
        %3522 = vmatprep.subr.mxu0 0.0
        %3523 = vmatpush1.xpose.msra.mxu0 0.0
        %3524 = vmatprep.subr.mxu0 0.0
        %3525 = vmatpush1.xpose.msra.mxu0 0.0
        %3526 = vmatprep.subr.mxu0 0.0
        %3527 = vmatpush1.xpose.msra.mxu0 %v3494
        %3528 = vmatprep.subr.mxu0 0.0
        %3529 = vmatpush2.xpose.msra.mxu0 0.0
        %3530 = vmatprep.subr.mxu0 0.0
        %3531 = vmatpush2.xpose.msra.mxu0 0.0
        %3532 = vmatprep.subr.mxu0 0.0
        %3533 = vmatpush2.xpose.msra.mxu0 0.0
        %3534 = vmatprep.subr.mxu0 0.0
        %3535 = vmatpush2.xpose.msra.mxu0 0.0
        %3536 = vmatprep.subr.mxu0 0.0
        %3537 = vmatpush2.xpose.msra.mxu0 0.0
        %3538 = vmatprep.subr.mxu0 0.0
        %3539 = vmatpush2.xpose.msra.mxu0 0.0
        %3540 = vmatprep.subr.mxu0 0.0
        %3541 = vmatpush2.xpose.msra.mxu0 0.0
        %3542 = vmatprep.subr.mxu0 0.0
        %3543 = vmatpush2.xpose.msra.mxu0 0.0
        %3544 = vmatprep.subr.mxu0 0.0
        %3545 = vmatpush2.xpose.msra.mxu0 0.0
        %3546 = vmatprep.subr.mxu0 0.0
        %3547 = vmatpush2.xpose.msra.mxu0 0.0
        %3548 = vmatprep.subr.mxu0 0.0
        %3549 = vmatpush2.xpose.msra.mxu0 0.0
        %3550 = vmatprep.subr.mxu0 0.0
        %3551 = vmatpush2.xpose.msra.mxu0 0.0
        %3552 = vmatprep.subr.mxu0 0.0
        %3553 = vmatpush2.xpose.msra.mxu0 0.0
        %3554 = vmatprep.subr.mxu0 0.0
        %3555 = vmatpush2.xpose.msra.mxu0 0.0
        %3556 = vmatprep.subr.mxu0 0.0
        %3557 = vmatpush2.xpose.msra.mxu0 0.0
        %3558 = vmatprep.subr.mxu0 0.0
        %3559 = vmatpush2.xpose.msra.mxu0 0.0
        %3560 = vmatprep.mubr.f32.mxu0 0.0
        %3561 = vmatmul.mubr.f32.gmra.mxu0 %v3492
        %v3562 = vpop.f32.mrf.mxu0
        %v3563 = vadd.f32 0.0, %v3562
        %v3564 = vpop.f32.mrf.mxu0
        %3565 = vdwg.mxu0
        %v3566 = vmul.f32 %v3563, 0.35355338
        %v3567 = vsel %vm524, %v3566, -inf
        %3568 = vmax.xlane.f32.xlu0 %v3567
        %v3569 = vpop.xlane.xlu0 %3568
        %v3570 = vsub.f32 %v3566, %v3569
        %v3571 = vmul.f32 %v3570, 1.442695
        %v3572 = vpow.pop %v3571
        %v3573 = vsel %vm524, %v3572, 0.0
        %3574 = vadd.xlane.f32.xlu0 %v3573
        %v3575 = vpop.xlane.xlu0 %3574
        %v3576 = vrcp.pop %v3575
        %v3577 = vmul.f32 %v3572, %v3576
        %3578 = vrot.lane.b32.xlu0 %v2988, 40
        %v3579 = vpop.permute.xlu0 %3578
        %v3582 = vsel %vm524, %v3577, 0
        %3584 = vmatprep.subr.mxu0 0.0
        %3585 = vmatpush1.msra.mxu0 0.0
        %3586 = vmatprep.subr.mxu0 0.0
        %3587 = vmatpush1.msra.mxu0 0.0
        %3588 = vmatprep.subr.mxu0 0.0
        %3589 = vmatpush1.msra.mxu0 0.0
        %3590 = vmatprep.subr.mxu0 0.0
        %3591 = vmatpush1.msra.mxu0 0.0
        %3592 = vmatprep.subr.mxu0 0.0
        %3593 = vmatpush1.msra.mxu0 0.0
        %3594 = vmatprep.subr.mxu0 0.0
        %3595 = vmatpush1.msra.mxu0 0.0
        %3596 = vmatprep.subr.mxu0 0.0
        %3597 = vmatpush1.msra.mxu0 0.0
        %3598 = vmatprep.subr.mxu0 0.0
        %3599 = vmatpush1.msra.mxu0 0.0
        %3600 = vmatprep.subr.mxu0 0.0
        %3601 = vmatpush1.msra.mxu0 0.0
        %3602 = vmatprep.subr.mxu0 0.0
        %3603 = vmatpush1.msra.mxu0 0.0
        %3604 = vmatprep.subr.mxu0 0.0
        %3605 = vmatpush1.msra.mxu0 0.0
        %3606 = vmatprep.subr.mxu0 0.0
        %3607 = vmatpush1.msra.mxu0 0.0
        %3608 = vmatprep.subr.mxu0 0.0
        %3609 = vmatpush1.msra.mxu0 0.0
        %3610 = vmatprep.subr.mxu0 0.0
        %3611 = vmatpush1.msra.mxu0 0.0
        %3612 = vmatprep.subr.mxu0 0.0
        %3613 = vmatpush1.msra.mxu0 0.0
        %3614 = vmatprep.subr.mxu0 0.0
        %3615 = vmatpush1.msra.mxu0 %v3579
        %3616 = vmatprep.subr.mxu0 0.0
        %3617 = vmatpush2.msra.mxu0 0.0
        %3618 = vmatprep.subr.mxu0 0.0
        %3619 = vmatpush2.msra.mxu0 0.0
        %3620 = vmatprep.subr.mxu0 0.0
        %3621 = vmatpush2.msra.mxu0 0.0
        %3622 = vmatprep.subr.mxu0 0.0
        %3623 = vmatpush2.msra.mxu0 0.0
        %3624 = vmatprep.subr.mxu0 0.0
        %3625 = vmatpush2.msra.mxu0 0.0
        %3626 = vmatprep.subr.mxu0 0.0
        %3627 = vmatpush2.msra.mxu0 0.0
        %3628 = vmatprep.subr.mxu0 0.0
        %3629 = vmatpush2.msra.mxu0 0.0
        %3630 = vmatprep.subr.mxu0 0.0
        %3631 = vmatpush2.msra.mxu0 0.0
        %3632 = vmatprep.subr.mxu0 0.0
        %3633 = vmatpush2.msra.mxu0 0.0
        %3634 = vmatprep.subr.mxu0 0.0
        %3635 = vmatpush2.msra.mxu0 0.0
        %3636 = vmatprep.subr.mxu0 0.0
        %3637 = vmatpush2.msra.mxu0 0.0
        %3638 = vmatprep.subr.mxu0 0.0
        %3639 = vmatpush2.msra.mxu0 0.0
        %3640 = vmatprep.subr.mxu0 0.0
        %3641 = vmatpush2.msra.mxu0 0.0
        %3642 = vmatprep.subr.mxu0 0.0
        %3643 = vmatpush2.msra.mxu0 0.0
        %3644 = vmatprep.subr.mxu0 0.0
        %3645 = vmatpush2.msra.mxu0 0.0
        %3646 = vmatprep.subr.mxu0 0.0
        %3647 = vmatpush2.msra.mxu0 0.0
        %3648 = vmatprep.mubr.f32.mxu0 0.0
        %3649 = vmatmul.mubr.f32.gmra.mxu0 %v3582
        %v3650 = vpop.f32.mrf.mxu0
        %v3651 = vadd.f32 0.0, %v3650
        %v3652 = vpop.f32.mrf.mxu0
        %3653 = vdwg.mxu0
        %3655 = vrot.lane.b32.xlu0 %v3319, 8
        %v3656 = vpop.permute.xlu0 %3655
        %3659 = vrot.lane.b32.xlu0 %v3485, 16
        %v3660 = vpop.permute.xlu0 %3659
        %3663 = vrot.lane.b32.xlu0 %v3651, 24
        %v3664 = vpop.permute.xlu0 %3663
        %v3666 = vsel %vm524, %v3153, %v3656
        %v3667 = vsel %vm1198, %v3666, %v3660
        %v3668 = vsel %vm1200, %v3667, %v3664
        %s3669 = scalar_lea.vmem %s3, 32
        %v3670 = vld [vmem:[%s3669] sm:$0xff]
        %v3671 = vld [vmem:[%s3669 + $0x8] sm:$0xff]
        %v3672 = vld [vmem:[%s3669 + $0x10] sm:$0xff]
        %v3673 = vld [vmem:[%s3669 + $0x18] sm:$0xff]
        %s3674 = scalar_lea.vmem %s4, 1
        %v3675 = vld [vmem:[%s3674] sm:$0x1]
        %v3677 = vlaneseq
        %v3678 = vshrl.u32 %v3677, 7
        %v3679 = vsub.s32 0, %v3678
        %v3680 = vrot.slane %v3675, %v3679
        %v3683 = vsel %vm447, %v3668, 0
        %3685 = vmatprep.subr.mxu0 0.0
        %3686 = vmatpush1.msra.mxu0 0.0
        %3687 = vmatprep.subr.mxu0 0.0
        %3688 = vmatpush1.msra.mxu0 0.0
        %3689 = vmatprep.subr.mxu0 0.0
        %3690 = vmatpush1.msra.mxu0 0.0
        %3691 = vmatprep.subr.mxu0 0.0
        %3692 = vmatpush1.msra.mxu0 0.0
        %3693 = vmatprep.subr.mxu0 0.0
        %3694 = vmatpush1.msra.mxu0 0.0
        %3695 = vmatprep.subr.mxu0 0.0
        %3696 = vmatpush1.msra.mxu0 0.0
        %3697 = vmatprep.subr.mxu0 0.0
        %3698 = vmatpush1.msra.mxu0 0.0
        %3699 = vmatprep.subr.mxu0 0.0
        %3700 = vmatpush1.msra.mxu0 0.0
        %3701 = vmatprep.subr.mxu0 0.0
        %3702 = vmatpush1.msra.mxu0 0.0
        %3703 = vmatprep.subr.mxu0 0.0
        %3704 = vmatpush1.msra.mxu0 0.0
        %3705 = vmatprep.subr.mxu0 0.0
        %3706 = vmatpush1.msra.mxu0 0.0
        %3707 = vmatprep.subr.mxu0 0.0
        %3708 = vmatpush1.msra.mxu0 0.0
        %3709 = vmatprep.subr.mxu0 0.0
        %3710 = vmatpush1.msra.mxu0 %v3673
        %3711 = vmatprep.subr.mxu0 0.0
        %3712 = vmatpush1.msra.mxu0 %v3672
        %3713 = vmatprep.subr.mxu0 0.0
        %3714 = vmatpush1.msra.mxu0 %v3671
        %3715 = vmatprep.subr.mxu0 0.0
        %3716 = vmatpush1.msra.mxu0 %v3670
        %3717 = vmatprep.subr.mxu0 0.0
        %3718 = vmatpush2.msra.mxu0 0.0
        %3719 = vmatprep.subr.mxu0 0.0
        %3720 = vmatpush2.msra.mxu0 0.0
        %3721 = vmatprep.subr.mxu0 0.0
        %3722 = vmatpush2.msra.mxu0 0.0
        %3723 = vmatprep.subr.mxu0 0.0
        %3724 = vmatpush2.msra.mxu0 0.0
        %3725 = vmatprep.subr.mxu0 0.0
        %3726 = vmatpush2.msra.mxu0 0.0
        %3727 = vmatprep.subr.mxu0 0.0
        %3728 = vmatpush2.msra.mxu0 0.0
        %3729 = vmatprep.subr.mxu0 0.0
        %3730 = vmatpush2.msra.mxu0 0.0
        %3731 = vmatprep.subr.mxu0 0.0
        %3732 = vmatpush2.msra.mxu0 0.0
        %3733 = vmatprep.subr.mxu0 0.0
        %3734 = vmatpush2.msra.mxu0 0.0
        %3735 = vmatprep.subr.mxu0 0.0
        %3736 = vmatpush2.msra.mxu0 0.0
        %3737 = vmatprep.subr.mxu0 0.0
        %3738 = vmatpush2.msra.mxu0 0.0
        %3739 = vmatprep.subr.mxu0 0.0
        %3740 = vmatpush2.msra.mxu0 0.0
        %3741 = vmatprep.subr.mxu0 0.0
        %3742 = vmatpush2.msra.mxu0 0.0
        %3743 = vmatprep.subr.mxu0 0.0
        %3744 = vmatpush2.msra.mxu0 0.0
        %3745 = vmatprep.subr.mxu0 0.0
        %3746 = vmatpush2.msra.mxu0 0.0
        %3747 = vmatprep.subr.mxu0 0.0
        %3748 = vmatpush2.msra.mxu0 0.0
        %3749 = vmatprep.mubr.f32.mxu0 0.0
        %3750 = vmatmul.mubr.f32.gmra.mxu0 %v3683
        %v3751 = vpop.f32.mrf.mxu0
        %v3752 = vadd.f32 %v3680, %v3751
        %v3753 = vpop.f32.mrf.mxu0
        %3754 = vdwg.mxu0
        %v3755 = vadd.f32 %v2904, %v3752
        %s3756 = scalar_lea.vmem %s5, 1
        %v3757 = vld [vmem:[%s3756] sm:$0x1]
        %s3758 = scalar_lea.vmem %s6, 1
        %v3759 = vld [vmem:[%s3758] sm:$0x1]
        %v3760 = vsel %vm447, %v3755, 0.0
        %3761 = vadd.xlane.f32.xlu0 %v3760
        %v3762 = vpop.xlane.xlu0 %3761
        %v3763 = vmul.f32 %v3762, %v1292
        %v3764 = vsub.f32 %v3755, %v3763
        %v3765 = vmul.f32 %v3764, %v3764
        %v3766 = vsel %vm447, %v3765, 0.0
        %3767 = vadd.xlane.f32.xlu0 %v3766
        %v3768 = vpop.xlane.xlu0 %3767
        %v3769 = vmul.f32 %v3768, %v1292
        %v3770 = vadd.f32 %v3769, 1e-05
        %v3771 = vrsqrt.pop %v3770
        %v3772 = vmul.f32 %v3764, %v3771
        %v3774 = vlaneseq
        %v3775 = vshrl.u32 %v3774, 7
        %v3776 = vsub.s32 0, %v3775
        %v3777 = vrot.slane %v3757, %v3776
        %v3779 = vmul.f32 %v3772, %v3777
        %v3781 = vlaneseq
        %v3782 = vshrl.u32 %v3781, 7
        %v3783 = vsub.s32 0, %v3782
        %v3784 = vrot.slane %v3759, %v3783
        %v3786 = vadd.f32 %v3779, %v3784
        %s3787 = scalar_lea.vmem %s7, 512
        %v3788 = vld [vmem:[%s3787] sm:$0xff]
        %v3789 = vld [vmem:[%s3787 + $0x8] sm:$0xff]
        %v3790 = vld [vmem:[%s3787 + $0x10] sm:$0xff]
        %v3791 = vld [vmem:[%s3787 + $0x18] sm:$0xff]
        %v3792 = vld [vmem:[%s3787 + $0x20] sm:$0xff]
        %v3793 = vld [vmem:[%s3787 + $0x28] sm:$0xff]
        %v3794 = vld [vmem:[%s3787 + $0x30] sm:$0xff]
        %v3795 = vld [vmem:[%s3787 + $0x38] sm:$0xff]
        %v3796 = vld [vmem:[%s3787 + $0x40] sm:$0xff]
        %v3797 = vld [vmem:[%s3787 + $0x48] sm:$0xff]
        %v3798 = vld [vmem:[%s3787 + $0x50] sm:$0xff]
        %v3799 = vld [vmem:[%s3787 + $0x58] sm:$0xff]
        %v3800 = vld [vmem:[%s3787 + $0x60] sm:$0xff]
        %v3801 = vld [vmem:[%s3787 + $0x68] sm:$0xff]
        %v3802 = vld [vmem:[%s3787 + $0x70] sm:$0xff]
        %v3803 = vld [vmem:[%s3787 + $0x78] sm:$0xff]
        %v3804 = vld [vmem:[%s3787 + $0x80] sm:$0xff]
        %v3805 = vld [vmem:[%s3787 + $0x88] sm:$0xff]
        %v3806 = vld [vmem:[%s3787 + $0x90] sm:$0xff]
        %v3807 = vld [vmem:[%s3787 + $0x98] sm:$0xff]
        %v3808 = vld [vmem:[%s3787 + $0xa0] sm:$0xff]
        %v3809 = vld [vmem:[%s3787 + $0xa8] sm:$0xff]
        %v3810 = vld [vmem:[%s3787 + $0xb0] sm:$0xff]
        %v3811 = vld [vmem:[%s3787 + $0xb8] sm:$0xff]
        %v3812 = vld [vmem:[%s3787 + $0xc0] sm:$0xff]
        %v3813 = vld [vmem:[%s3787 + $0xc8] sm:$0xff]
        %v3814 = vld [vmem:[%s3787 + $0xd0] sm:$0xff]
        %v3815 = vld [vmem:[%s3787 + $0xd8] sm:$0xff]
        %v3816 = vld [vmem:[%s3787 + $0xe0] sm:$0xff]
        %v3817 = vld [vmem:[%s3787 + $0xe8] sm:$0xff]
        %v3818 = vld [vmem:[%s3787 + $0xf0] sm:$0xff]
        %v3819 = vld [vmem:[%s3787 + $0xf8] sm:$0xff]
        %v3820 = vld [vmem:[%s3787 + $0x100] sm:$0xff]
        %v3821 = vld [vmem:[%s3787 + $0x108] sm:$0xff]
        %v3822 = vld [vmem:[%s3787 + $0x110] sm:$0xff]
        %v3823 = vld [vmem:[%s3787 + $0x118] sm:$0xff]
        %v3824 = vld [vmem:[%s3787 + $0x120] sm:$0xff]
        %v3825 = vld [vmem:[%s3787 + $0x128] sm:$0xff]
        %v3826 = vld [vmem:[%s3787 + $0x130] sm:$0xff]
        %v3827 = vld [vmem:[%s3787 + $0x138] sm:$0xff]
        %v3828 = vld [vmem:[%s3787 + $0x140] sm:$0xff]
        %v3829 = vld [vmem:[%s3787 + $0x148] sm:$0xff]
        %v3830 = vld [vmem:[%s3787 + $0x150] sm:$0xff]
        %v3831 = vld [vmem:[%s3787 + $0x158] sm:$0xff]
        %v3832 = vld [vmem:[%s3787 + $0x160] sm:$0xff]
        %v3833 = vld [vmem:[%s3787 + $0x168] sm:$0xff]
        %v3834 = vld [vmem:[%s3787 + $0x170] sm:$0xff]
        %v3835 = vld [vmem:[%s3787 + $0x178] sm:$0xff]
        %v3836 = vld [vmem:[%s3787 + $0x180] sm:$0xff]
        %v3837 = vld [vmem:[%s3787 + $0x188] sm:$0xff]
        %v3838 = vld [vmem:[%s3787 + $0x190] sm:$0xff]
        %v3839 = vld [vmem:[%s3787 + $0x198] sm:$0xff]
        %v3840 = vld [vmem:[%s3787 + $0x1a0] sm:$0xff]
        %v3841 = vld [vmem:[%s3787 + $0x1a8] sm:$0xff]
        %v3842 = vld [vmem:[%s3787 + $0x1b0] sm:$0xff]
        %v3843 = vld [vmem:[%s3787 + $0x1b8] sm:$0xff]
        %v3844 = vld [vmem:[%s3787 + $0x1c0] sm:$0xff]
        %v3845 = vld [vmem:[%s3787 + $0x1c8] sm:$0xff]
        %v3846 = vld [vmem:[%s3787 + $0x1d0] sm:$0xff]
        %v3847 = vld [vmem:[%s3787 + $0x1d8] sm:$0xff]
        %v3848 = vld [vmem:[%s3787 + $0x1e0] sm:$0xff]
        %v3849 = vld [vmem:[%s3787 + $0x1e8] sm:$0xff]
        %v3850 = vld [vmem:[%s3787 + $0x1f0] sm:$0xff]
        %v3851 = vld [vmem:[%s3787 + $0x1f8] sm:$0xff]
        %s3852 = scalar_lea.vmem %s8, 16
        %v3853 = vld [vmem:[%s3852] sm:$0xff]
        %v3854 = vld [vmem:[%s3852 + $0x8] sm:$0xff]
        %v3857 = vlaneseq
        %v3858 = vshrl.u32 %v3857, 7
        %v3859 = vsub.s32 0, %v3858
        %v3860 = vrot.slane %v3853, %v3859
        %v3861 = vlaneseq
        %v3862 = vshrl.u32 %v3861, 7
        %v3863 = vsub.s32 1, %v3862
        %v3864 = vrot.slane %v3853, %v3863
        %v3865 = vlaneseq
        %v3866 = vshrl.u32 %v3865, 7
        %v3867 = vsub.s32 2, %v3866
        %v3868 = vrot.slane %v3853, %v3867
        %v3869 = vlaneseq
        %v3870 = vshrl.u32 %v3869, 7
        %v3871 = vsub.s32 3, %v3870
        %v3872 = vrot.slane %v3853, %v3871
        %v3873 = vlaneseq
        %v3874 = vshrl.u32 %v3873, 7
        %v3875 = vsub.s32 4, %v3874
        %v3876 = vrot.slane %v3853, %v3875
        %v3877 = vlaneseq
        %v3878 = vshrl.u32 %v3877, 7
        %v3879 = vsub.s32 5, %v3878
        %v3880 = vrot.slane %v3853, %v3879
        %v3881 = vlaneseq
        %v3882 = vshrl.u32 %v3881, 7
        %v3883 = vsub.s32 6, %v3882
        %v3884 = vrot.slane %v3853, %v3883
        %v3885 = vlaneseq
        %v3886 = vshrl.u32 %v3885, 7
        %v3887 = vsub.s32 7, %v3886
        %v3888 = vrot.slane %v3853, %v3887
        %v3889 = vlaneseq
        %v3890 = vshrl.u32 %v3889, 7
        %v3891 = vsub.s32 0, %v3890
        %v3892 = vrot.slane %v3854, %v3891
        %v3893 = vlaneseq
        %v3894 = vshrl.u32 %v3893, 7
        %v3895 = vsub.s32 1, %v3894
        %v3896 = vrot.slane %v3854, %v3895
        %v3897 = vlaneseq
        %v3898 = vshrl.u32 %v3897, 7
        %v3899 = vsub.s32 2, %v3898
        %v3900 = vrot.slane %v3854, %v3899
        %v3901 = vlaneseq
        %v3902 = vshrl.u32 %v3901, 7
        %v3903 = vsub.s32 3, %v3902
        %v3904 = vrot.slane %v3854, %v3903
        %v3905 = vlaneseq
        %v3906 = vshrl.u32 %v3905, 7
        %v3907 = vsub.s32 4, %v3906
        %v3908 = vrot.slane %v3854, %v3907
        %v3909 = vlaneseq
        %v3910 = vshrl.u32 %v3909, 7
        %v3911 = vsub.s32 5, %v3910
        %v3912 = vrot.slane %v3854, %v3911
        %v3913 = vlaneseq
        %v3914 = vshrl.u32 %v3913, 7
        %v3915 = vsub.s32 6, %v3914
        %v3916 = vrot.slane %v3854, %v3915
        %v3917 = vlaneseq
        %v3918 = vshrl.u32 %v3917, 7
        %v3919 = vsub.s32 7, %v3918
        %v3920 = vrot.slane %v3854, %v3919
        %v3938 = vsel %vm447, %v3786, 0
        %3940 = vmatprep.subr.mxu0 0.0
        %3941 = vmatpush1.msra.mxu0 0.0
        %3942 = vmatprep.subr.mxu0 0.0
        %3943 = vmatpush1.msra.mxu0 0.0
        %3944 = vmatprep.subr.mxu0 0.0
        %3945 = vmatpush1.msra.mxu0 0.0
        %3946 = vmatprep.subr.mxu0 0.0
        %3947 = vmatpush1.msra.mxu0 0.0
        %3948 = vmatprep.subr.mxu0 0.0
        %3949 = vmatpush1.msra.mxu0 0.0
        %3950 = vmatprep.subr.mxu0 0.0
        %3951 = vmatpush1.msra.mxu0 0.0
        %3952 = vmatprep.subr.mxu0 0.0
        %3953 = vmatpush1.msra.mxu0 0.0
        %3954 = vmatprep.subr.mxu0 0.0
        %3955 = vmatpush1.msra.mxu0 0.0
        %3956 = vmatprep.subr.mxu0 0.0
        %3957 = vmatpush1.msra.mxu0 0.0
        %3958 = vmatprep.subr.mxu0 0.0
        %3959 = vmatpush1.msra.mxu0 0.0
        %3960 = vmatprep.subr.mxu0 0.0
        %3961 = vmatpush1.msra.mxu0 0.0
        %3962 = vmatprep.subr.mxu0 0.0
        %3963 = vmatpush1.msra.mxu0 0.0
        %3964 = vmatprep.subr.mxu0 %v3837
        %3965 = vmatpush1.msra.mxu0 %v3836
        %3966 = vmatprep.subr.mxu0 %v3821
        %3967 = vmatpush1.msra.mxu0 %v3820
        %3968 = vmatprep.subr.mxu0 %v3805
        %3969 = vmatpush1.msra.mxu0 %v3804
        %3970 = vmatprep.subr.mxu0 %v3789
        %3971 = vmatpush1.msra.mxu0 %v3788
        %3972 = vmatprep.subr.mxu0 0.0
        %3973 = vmatpush2.msra.mxu0 0.0
        %3974 = vmatprep.subr.mxu0 0.0
        %3975 = vmatpush2.msra.mxu0 0.0
        %3976 = vmatprep.subr.mxu0 0.0
        %3977 = vmatpush2.msra.mxu0 0.0
        %3978 = vmatprep.subr.mxu0 0.0
        %3979 = vmatpush2.msra.mxu0 0.0
        %3980 = vmatprep.subr.mxu0 0.0
        %3981 = vmatpush2.msra.mxu0 0.0
        %3982 = vmatprep.subr.mxu0 0.0
        %3983 = vmatpush2.msra.mxu0 0.0
        %3984 = vmatprep.subr.mxu0 0.0
        %3985 = vmatpush2.msra.mxu0 0.0
        %3986 = vmatprep.subr.mxu0 0.0
        %3987 = vmatpush2.msra.mxu0 0.0
        %3988 = vmatprep.subr.mxu0 0.0
        %3989 = vmatpush2.msra.mxu0 0.0
        %3990 = vmatprep.subr.mxu0 0.0
        %3991 = vmatpush2.msra.mxu0 0.0
        %3992 = vmatprep.subr.mxu0 0.0
        %3993 = vmatpush2.msra.mxu0 0.0
        %3994 = vmatprep.subr.mxu0 0.0
        %3995 = vmatpush2.msra.mxu0 0.0
        %3996 = vmatprep.subr.mxu0 0.0
        %3997 = vmatpush2.msra.mxu0 0.0
        %3998 = vmatprep.subr.mxu0 0.0
        %3999 = vmatpush2.msra.mxu0 0.0
        %4000 = vmatprep.subr.mxu0 0.0
        %4001 = vmatpush2.msra.mxu0 0.0
        %4002 = vmatprep.subr.mxu0 0.0
        %4003 = vmatpush2.msra.mxu0 0.0
        %4004 = vmatprep.mubr.f32.mxu0 0.0
        %4005 = vmatmul.mubr.f32.gmra.mxu0 %v3938
        %v4006 = vpop.f32.mrf.mxu0
        %v4007 = vadd.f32 %v3860, %v4006
        %v4008 = vpop.f32.mrf.mxu0
        %v4009 = vadd.f32 %v3864, %v4008
        %4010 = vdwg.mxu0
        %4011 = vmatprep.subr.mxu0 0.0
        %4012 = vmatpush1.msra.mxu0 0.0
        %4013 = vmatprep.subr.mxu0 0.0
        %4014 = vmatpush1.msra.mxu0 0.0
        %4015 = vmatprep.subr.mxu0 0.0
        %4016 = vmatpush1.msra.mxu0 0.0
        %4017 = vmatprep.subr.mxu0 0.0
        %4018 = vmatpush1.msra.mxu0 0.0
        %4019 = vmatprep.subr.mxu0 0.0
        %4020 = vmatpush1.msra.mxu0 0.0
        %4021 = vmatprep.subr.mxu0 0.0
        %4022 = vmatpush1.msra.mxu0 0.0
        %4023 = vmatprep.subr.mxu0 0.0
        %4024 = vmatpush1.msra.mxu0 0.0
        %4025 = vmatprep.subr.mxu0 0.0
        %4026 = vmatpush1.msra.mxu0 0.0
        %4027 = vmatprep.subr.mxu0 0.0
        %4028 = vmatpush1.msra.mxu0 0.0
        %4029 = vmatprep.subr.mxu0 0.0
        %4030 = vmatpush1.msra.mxu0 0.0
        %4031 = vmatprep.subr.mxu0 0.0
        %4032 = vmatpush1.msra.mxu0 0.0
        %4033 = vmatprep.subr.mxu0 0.0
        %4034 = vmatpush1.msra.mxu0 0.0
        %4035 = vmatprep.subr.mxu0 %v3839
        %4036 = vmatpush1.msra.mxu0 %v3838
        %4037 = vmatprep.subr.mxu0 %v3823
        %4038 = vmatpush1.msra.mxu0 %v3822
        %4039 = vmatprep.subr.mxu0 %v3807
        %4040 = vmatpush1.msra.mxu0 %v3806
        %4041 = vmatprep.subr.mxu0 %v3791
        %4042 = vmatpush1.msra.mxu0 %v3790
        %4043 = vmatprep.subr.mxu0 0.0
        %4044 = vmatpush2.msra.mxu0 0.0
        %4045 = vmatprep.subr.mxu0 0.0
        %4046 = vmatpush2.msra.mxu0 0.0
        %4047 = vmatprep.subr.mxu0 0.0
        %4048 = vmatpush2.msra.mxu0 0.0
        %4049 = vmatprep.subr.mxu0 0.0
        %4050 = vmatpush2.msra.mxu0 0.0
        %4051 = vmatprep.subr.mxu0 0.0
        %4052 = vmatpush2.msra.mxu0 0.0
        %4053 = vmatprep.subr.mxu0 0.0
        %4054 = vmatpush2.msra.mxu0 0.0
        %4055 = vmatprep.subr.mxu0 0.0
        %4056 = vmatpush2.msra.mxu0 0.0
        %4057 = vmatprep.subr.mxu0 0.0
        %4058 = vmatpush2.msra.mxu0 0.0
        %4059 = vmatprep.subr.mxu0 0.0
        %4060 = vmatpush2.msra.mxu0 0.0
        %4061 = vmatprep.subr.mxu0 0.0
        %4062 = vmatpush2.msra.mxu0 0.0
        %4063 = vmatprep.subr.mxu0 0.0
        %4064 = vmatpush2.msra.mxu0 0.0
        %4065 = vmatprep.subr.mxu0 0.0
        %4066 = vmatpush2.msra.mxu0 0.0
        %4067 = vmatprep.subr.mxu0 0.0
        %4068 = vmatpush2.msra.mxu0 0.0
        %4069 = vmatprep.subr.mxu0 0.0
        %4070 = vmatpush2.msra.mxu0 0.0
        %4071 = vmatprep.subr.mxu0 0.0
        %4072 = vmatpush2.msra.mxu0 0.0
        %4073 = vmatprep.subr.mxu0 0.0
        %4074 = vmatpush2.msra.mxu0 0.0
        %4075 = vmatprep.mubr.f32.mxu0 0.0
        %4076 = vmatmul.mubr.f32.gmra.mxu0 %v3938
        %v4077 = vpop.f32.mrf.mxu0
        %v4078 = vadd.f32 %v3868, %v4077
        %v4079 = vpop.f32.mrf.mxu0
        %v4080 = vadd.f32 %v3872, %v4079
        %4081 = vdwg.mxu0
        %4082 = vmatprep.subr.mxu0 0.0
        %4083 = vmatpush1.msra.mxu0 0.0
        %4084 = vmatprep.subr.mxu0 0.0
        %4085 = vmatpush1.msra.mxu0 0.0
        %4086 = vmatprep.subr.mxu0 0.0
        %4087 = vmatpush1.msra.mxu0 0.0
        %4088 = vmatprep.subr.mxu0 0.0
        %4089 = vmatpush1.msra.mxu0 0.0
        %4090 = vmatprep.subr.mxu0 0.0
        %4091 = vmatpush1.msra.mxu0 0.0
        %4092 = vmatprep.subr.mxu0 0.0
        %4093 = vmatpush1.msra.mxu0 0.0
        %4094 = vmatprep.subr.mxu0 0.0
        %4095 = vmatpush1.msra.mxu0 0.0
        %4096 = vmatprep.subr.mxu0 0.0
        %4097 = vmatpush1.msra.mxu0 0.0
        %4098 = vmatprep.subr.mxu0 0.0
        %4099 = vmatpush1.msra.mxu0 0.0
        %4100 = vmatprep.subr.mxu0 0.0
        %4101 = vmatpush1.msra.mxu0 0.0
        %4102 = vmatprep.subr.mxu0 0.0
        %4103 = vmatpush1.msra.mxu0 0.0
        %4104 = vmatprep.subr.mxu0 0.0
        %4105 = vmatpush1.msra.mxu0 0.0
        %4106 = vmatprep.subr.mxu0 %v3841
        %4107 = vmatpush1.msra.mxu0 %v3840
        %4108 = vmatprep.subr.mxu0 %v3825
        %4109 = vmatpush1.msra.mxu0 %v3824
        %4110 = vmatprep.subr.mxu0 %v3809
        %4111 = vmatpush1.msra.mxu0 %v3808
        %4112 = vmatprep.subr.mxu0 %v3793
        %4113 = vmatpush1.msra.mxu0 %v3792
        %4114 = vmatprep.subr.mxu0 0.0
        %4115 = vmatpush2.msra.mxu0 0.0
        %4116 = vmatprep.subr.mxu0 0.0
        %4117 = vmatpush2.msra.mxu0 0.0
        %4118 = vmatprep.subr.mxu0 0.0
        %4119 = vmatpush2.msra.mxu0 0.0
        %4120 = vmatprep.subr.mxu0 0.0
        %4121 = vmatpush2.msra.mxu0 0.0
        %4122 = vmatprep.subr.mxu0 0.0
        %4123 = vmatpush2.msra.mxu0 0.0
        %4124 = vmatprep.subr.mxu0 0.0
        %4125 = vmatpush2.msra.mxu0 0.0
        %4126 = vmatprep.subr.mxu0 0.0
        %4127 = vmatpush2.msra.mxu0 0.0
        %4128 = vmatprep.subr.mxu0 0.0
        %4129 = vmatpush2.msra.mxu0 0.0
        %4130 = vmatprep.subr.mxu0 0.0
        %4131 = vmatpush2.msra.mxu0 0.0
        %4132 = vmatprep.subr.mxu0 0.0
        %4133 = vmatpush2.msra.mxu0 0.0
        %4134 = vmatprep.subr.mxu0 0.0
        %4135 = vmatpush2.msra.mxu0 0.0
        %4136 = vmatprep.subr.mxu0 0.0
        %4137 = vmatpush2.msra.mxu0 0.0
        %4138 = vmatprep.subr.mxu0 0.0
        %4139 = vmatpush2.msra.mxu0 0.0
        %4140 = vmatprep.subr.mxu0 0.0
        %4141 = vmatpush2.msra.mxu0 0.0
        %4142 = vmatprep.subr.mxu0 0.0
        %4143 = vmatpush2.msra.mxu0 0.0
        %4144 = vmatprep.subr.mxu0 0.0
        %4145 = vmatpush2.msra.mxu0 0.0
        %4146 = vmatprep.mubr.f32.mxu0 0.0
        %4147 = vmatmul.mubr.f32.gmra.mxu0 %v3938
        %v4148 = vpop.f32.mrf.mxu0
        %v4149 = vadd.f32 %v3876, %v4148
        %v4150 = vpop.f32.mrf.mxu0
        %v4151 = vadd.f32 %v3880, %v4150
        %4152 = vdwg.mxu0
        %4153 = vmatprep.subr.mxu0 0.0
        %4154 = vmatpush1.msra.mxu0 0.0
        %4155 = vmatprep.subr.mxu0 0.0
        %4156 = vmatpush1.msra.mxu0 0.0
        %4157 = vmatprep.subr.mxu0 0.0
        %4158 = vmatpush1.msra.mxu0 0.0
        %4159 = vmatprep.subr.mxu0 0.0
        %4160 = vmatpush1.msra.mxu0 0.0
        %4161 = vmatprep.subr.mxu0 0.0
        %4162 = vmatpush1.msra.mxu0 0.0
        %4163 = vmatprep.subr.mxu0 0.0
        %4164 = vmatpush1.msra.mxu0 0.0
        %4165 = vmatprep.subr.mxu0 0.0
        %4166 = vmatpush1.msra.mxu0 0.0
        %4167 = vmatprep.subr.mxu0 0.0
        %4168 = vmatpush1.msra.mxu0 0.0
        %4169 = vmatprep.subr.mxu0 0.0
        %4170 = vmatpush1.msra.mxu0 0.0
        %4171 = vmatprep.subr.mxu0 0.0
        %4172 = vmatpush1.msra.mxu0 0.0
        %4173 = vmatprep.subr.mxu0 0.0
        %4174 = vmatpush1.msra.mxu0 0.0
        %4175 = vmatprep.subr.mxu0 0.0
        %4176 = vmatpush1.msra.mxu0 0.0
        %4177 = vmatprep.subr.mxu0 %v3843
        %4178 = vmatpush1.msra.mxu0 %v3842
        %4179 = vmatprep.subr.mxu0 %v3827
        %4180 = vmatpush1.msra.mxu0 %v3826
        %4181 = vmatprep.subr.mxu0 %v3811
        %4182 = vmatpush1.msra.mxu0 %v3810
        %4183 = vmatprep.subr.mxu0 %v3795
        %4184 = vmatpush1.msra.mxu0 %v3794
        %4185 = vmatprep.subr.mxu0 0.0
        %4186 = vmatpush2.msra.mxu0 0.0
        %4187 = vmatprep.subr.mxu0 0.0
        %4188 = vmatpush2.msra.mxu0 0.0
        %4189 = vmatprep.subr.mxu0 0.0
        %4190 = vmatpush2.msra.mxu0 0.0
        %4191 = vmatprep.subr.mxu0 0.0
        %4192 = vmatpush2.msra.mxu0 0.0
        %4193 = vmatprep.subr.mxu0 0.0
        %4194 = vmatpush2.msra.mxu0 0.0
        %4195 = vmatprep.subr.mxu0 0.0
        %4196 = vmatpush2.msra.mxu0 0.0
        %4197 = vmatprep.subr.mxu0 0.0
        %4198 = vmatpush2.msra.mxu0 0.0
        %4199 = vmatprep.subr.mxu0 0.0
        %4200 = vmatpush2.msra.mxu0 0.0
        %4201 = vmatprep.subr.mxu0 0.0
        %4202 = vmatpush2.msra.mxu0 0.0
        %4203 = vmatprep.subr.mxu0 0.0
        %4204 = vmatpush2.msra.mxu0 0.0
        %4205 = vmatprep.subr.mxu0 0.0
        %4206 = vmatpush2.msra.mxu0 0.0
        %4207 = vmatprep.subr.mxu0 0.0
        %4208 = vmatpush2.msra.mxu0 0.0
        %4209 = vmatprep.subr.mxu0 0.0
        %4210 = vmatpush2.msra.mxu0 0.0
        %4211 = vmatprep.subr.mxu0 0.0
        %4212 = vmatpush2.msra.mxu0 0.0
        %4213 = vmatprep.subr.mxu0 0.0
        %4214 = vmatpush2.msra.mxu0 0.0
        %4215 = vmatprep.subr.mxu0 0.0
        %4216 = vmatpush2.msra.mxu0 0.0
        %4217 = vmatprep.mubr.f32.mxu0 0.0
        %4218 = vmatmul.mubr.f32.gmra.mxu0 %v3938
        %v4219 = vpop.f32.mrf.mxu0
        %v4220 = vadd.f32 %v3884, %v4219
        %v4221 = vpop.f32.mrf.mxu0
        %v4222 = vadd.f32 %v3888, %v4221
        %4223 = vdwg.mxu0
        %4224 = vmatprep.subr.mxu0 0.0
        %4225 = vmatpush1.msra.mxu0 0.0
        %4226 = vmatprep.subr.mxu0 0.0
        %4227 = vmatpush1.msra.mxu0 0.0
        %4228 = vmatprep.subr.mxu0 0.0
        %4229 = vmatpush1.msra.mxu0 0.0
        %4230 = vmatprep.subr.mxu0 0.0
        %4231 = vmatpush1.msra.mxu0 0.0
        %4232 = vmatprep.subr.mxu0 0.0
        %4233 = vmatpush1.msra.mxu0 0.0
        %4234 = vmatprep.subr.mxu0 0.0
        %4235 = vmatpush1.msra.mxu0 0.0
        %4236 = vmatprep.subr.mxu0 0.0
        %4237 = vmatpush1.msra.mxu0 0.0
        %4238 = vmatprep.subr.mxu0 0.0
        %4239 = vmatpush1.msra.mxu0 0.0
        %4240 = vmatprep.subr.mxu0 0.0
        %4241 = vmatpush1.msra.mxu0 0.0
        %4242 = vmatprep.subr.mxu0 0.0
        %4243 = vmatpush1.msra.mxu0 0.0
        %4244 = vmatprep.subr.mxu0 0.0
        %4245 = vmatpush1.msra.mxu0 0.0
        %4246 = vmatprep.subr.mxu0 0.0
        %4247 = vmatpush1.msra.mxu0 0.0
        %4248 = vmatprep.subr.mxu0 %v3845
        %4249 = vmatpush1.msra.mxu0 %v3844
        %4250 = vmatprep.subr.mxu0 %v3829
        %4251 = vmatpush1.msra.mxu0 %v3828
        %4252 = vmatprep.subr.mxu0 %v3813
        %4253 = vmatpush1.msra.mxu0 %v3812
        %4254 = vmatprep.subr.mxu0 %v3797
        %4255 = vmatpush1.msra.mxu0 %v3796
        %4256 = vmatprep.subr.mxu0 0.0
        %4257 = vmatpush2.msra.mxu0 0.0
        %4258 = vmatprep.subr.mxu0 0.0
        %4259 = vmatpush2.msra.mxu0 0.0
        %4260 = vmatprep.subr.mxu0 0.0
        %4261 = vmatpush2.msra.mxu0 0.0
        %4262 = vmatprep.subr.mxu0 0.0
        %4263 = vmatpush2.msra.mxu0 0.0
        %4264 = vmatprep.subr.mxu0 0.0
        %4265 = vmatpush2.msra.mxu0 0.0
        %4266 = vmatprep.subr.mxu0 0.0
        %4267 = vmatpush2.msra.mxu0 0.0
        %4268 = vmatprep.subr.mxu0 0.0
        %4269 = vmatpush2.msra.mxu0 0.0
        %4270 = vmatprep.subr.mxu0 0.0
        %4271 = vmatpush2.msra.mxu0 0.0
        %4272 = vmatprep.subr.mxu0 0.0
        %4273 = vmatpush2.msra.mxu0 0.0
        %4274 = vmatprep.subr.mxu0 0.0
        %4275 = vmatpush2.msra.mxu0 0.0
        %4276 = vmatprep.subr.mxu0 0.0
        %4277 = vmatpush2.msra.mxu0 0.0
        %4278 = vmatprep.subr.mxu0 0.0
        %4279 = vmatpush2.msra.mxu0 0.0
        %4280 = vmatprep.subr.mxu0 0.0
        %4281 = vmatpush2.msra.mxu0 0.0
        %4282 = vmatprep.subr.mxu0 0.0
        %4283 = vmatpush2.msra.mxu0 0.0
        %4284 = vmatprep.subr.mxu0 0.0
        %4285 = vmatpush2.msra.mxu0 0.0
        %4286 = vmatprep.subr.mxu0 0.0
        %4287 = vmatpush2.msra.mxu0 0.0
        %4288 = vmatprep.mubr.f32.mxu0 0.0
        %4289 = vmatmul.mubr.f32.gmra.mxu0 %v3938
        %v4290 = vpop.f32.mrf.mxu0
        %v4291 = vadd.f32 %v3892, %v4290
        %v4292 = vpop.f32.mrf.mxu0
        %v4293 = vadd.f32 %v3896, %v4292
        %4294 = vdwg.mxu0
        %4295 = vmatprep.subr.mxu0 0.0
        %4296 = vmatpush1.msra.mxu0 0.0
        %4297 = vmatprep.subr.mxu0 0.0
        %4298 = vmatpush1.msra.mxu0 0.0
        %4299 = vmatprep.subr.mxu0 0.0
        %4300 = vmatpush1.msra.mxu0 0.0
        %4301 = vmatprep.subr.mxu0 0.0
        %4302 = vmatpush1.msra.mxu0 0.0
        %4303 = vmatprep.subr.mxu0 0.0
        %4304 = vmatpush1.msra.mxu0 0.0
        %4305 = vmatprep.subr.mxu0 0.0
        %4306 = vmatpush1.msra.mxu0 0.0
        %4307 = vmatprep.subr.mxu0 0.0
        %4308 = vmatpush1.msra.mxu0 0.0
        %4309 = vmatprep.subr.mxu0 0.0
        %4310 = vmatpush1.msra.mxu0 0.0
        %4311 = vmatprep.subr.mxu0 0.0
        %4312 = vmatpush1.msra.mxu0 0.0
        %4313 = vmatprep.subr.mxu0 0.0
        %4314 = vmatpush1.msra.mxu0 0.0
        %4315 = vmatprep.subr.mxu0 0.0
        %4316 = vmatpush1.msra.mxu0 0.0
        %4317 = vmatprep.subr.mxu0 0.0
        %4318 = vmatpush1.msra.mxu0 0.0
        %4319 = vmatprep.subr.mxu0 %v3847
        %4320 = vmatpush1.msra.mxu0 %v3846
        %4321 = vmatprep.subr.mxu0 %v3831
        %4322 = vmatpush1.msra.mxu0 %v3830
        %4323 = vmatprep.subr.mxu0 %v3815
        %4324 = vmatpush1.msra.mxu0 %v3814
        %4325 = vmatprep.subr.mxu0 %v3799
        %4326 = vmatpush1.msra.mxu0 %v3798
        %4327 = vmatprep.subr.mxu0 0.0
        %4328 = vmatpush2.msra.mxu0 0.0
        %4329 = vmatprep.subr.mxu0 0.0
        %4330 = vmatpush2.msra.mxu0 0.0
        %4331 = vmatprep.subr.mxu0 0.0
        %4332 = vmatpush2.msra.mxu0 0.0
        %4333 = vmatprep.subr.mxu0 0.0
        %4334 = vmatpush2.msra.mxu0 0.0
        %4335 = vmatprep.subr.mxu0 0.0
        %4336 = vmatpush2.msra.mxu0 0.0
        %4337 = vmatprep.subr.mxu0 0.0
        %4338 = vmatpush2.msra.mxu0 0.0
        %4339 = vmatprep.subr.mxu0 0.0
        %4340 = vmatpush2.msra.mxu0 0.0
        %4341 = vmatprep.subr.mxu0 0.0
        %4342 = vmatpush2.msra.mxu0 0.0
        %4343 = vmatprep.subr.mxu0 0.0
        %4344 = vmatpush2.msra.mxu0 0.0
        %4345 = vmatprep.subr.mxu0 0.0
        %4346 = vmatpush2.msra.mxu0 0.0
        %4347 = vmatprep.subr.mxu0 0.0
        %4348 = vmatpush2.msra.mxu0 0.0
        %4349 = vmatprep.subr.mxu0 0.0
        %4350 = vmatpush2.msra.mxu0 0.0
        %4351 = vmatprep.subr.mxu0 0.0
        %4352 = vmatpush2.msra.mxu0 0.0
        %4353 = vmatprep.subr.mxu0 0.0
        %4354 = vmatpush2.msra.mxu0 0.0
        %4355 = vmatprep.subr.mxu0 0.0
        %4356 = vmatpush2.msra.mxu0 0.0
        %4357 = vmatprep.subr.mxu0 0.0
        %4358 = vmatpush2.msra.mxu0 0.0
        %4359 = vmatprep.mubr.f32.mxu0 0.0
        %4360 = vmatmul.mubr.f32.gmra.mxu0 %v3938
        %v4361 = vpop.f32.mrf.mxu0
        %v4362 = vadd.f32 %v3900, %v4361
        %v4363 = vpop.f32.mrf.mxu0
        %v4364 = vadd.f32 %v3904, %v4363
        %4365 = vdwg.mxu0
        %4366 = vmatprep.subr.mxu0 0.0
        %4367 = vmatpush1.msra.mxu0 0.0
        %4368 = vmatprep.subr.mxu0 0.0
        %4369 = vmatpush1.msra.mxu0 0.0
        %4370 = vmatprep.subr.mxu0 0.0
        %4371 = vmatpush1.msra.mxu0 0.0
        %4372 = vmatprep.subr.mxu0 0.0
        %4373 = vmatpush1.msra.mxu0 0.0
        %4374 = vmatprep.subr.mxu0 0.0
        %4375 = vmatpush1.msra.mxu0 0.0
        %4376 = vmatprep.subr.mxu0 0.0
        %4377 = vmatpush1.msra.mxu0 0.0
        %4378 = vmatprep.subr.mxu0 0.0
        %4379 = vmatpush1.msra.mxu0 0.0
        %4380 = vmatprep.subr.mxu0 0.0
        %4381 = vmatpush1.msra.mxu0 0.0
        %4382 = vmatprep.subr.mxu0 0.0
        %4383 = vmatpush1.msra.mxu0 0.0
        %4384 = vmatprep.subr.mxu0 0.0
        %4385 = vmatpush1.msra.mxu0 0.0
        %4386 = vmatprep.subr.mxu0 0.0
        %4387 = vmatpush1.msra.mxu0 0.0
        %4388 = vmatprep.subr.mxu0 0.0
        %4389 = vmatpush1.msra.mxu0 0.0
        %4390 = vmatprep.subr.mxu0 %v3849
        %4391 = vmatpush1.msra.mxu0 %v3848
        %4392 = vmatprep.subr.mxu0 %v3833
        %4393 = vmatpush1.msra.mxu0 %v3832
        %4394 = vmatprep.subr.mxu0 %v3817
        %4395 = vmatpush1.msra.mxu0 %v3816
        %4396 = vmatprep.subr.mxu0 %v3801
        %4397 = vmatpush1.msra.mxu0 %v3800
        %4398 = vmatprep.subr.mxu0 0.0
        %4399 = vmatpush2.msra.mxu0 0.0
        %4400 = vmatprep.subr.mxu0 0.0
        %4401 = vmatpush2.msra.mxu0 0.0
        %4402 = vmatprep.subr.mxu0 0.0
        %4403 = vmatpush2.msra.mxu0 0.0
        %4404 = vmatprep.subr.mxu0 0.0
        %4405 = vmatpush2.msra.mxu0 0.0
        %4406 = vmatprep.subr.mxu0 0.0
        %4407 = vmatpush2.msra.mxu0 0.0
        %4408 = vmatprep.subr.mxu0 0.0
        %4409 = vmatpush2.msra.mxu0 0.0
        %4410 = vmatprep.subr.mxu0 0.0
        %4411 = vmatpush2.msra.mxu0 0.0
        %4412 = vmatprep.subr.mxu0 0.0
        %4413 = vmatpush2.msra.mxu0 0.0
        %4414 = vmatprep.subr.mxu0 0.0
        %4415 = vmatpush2.msra.mxu0 0.0
        %4416 = vmatprep.subr.mxu0 0.0
        %4417 = vmatpush2.msra.mxu0 0.0
        %4418 = vmatprep.subr.mxu0 0.0
        %4419 = vmatpush2.msra.mxu0 0.0
        %4420 = vmatprep.subr.mxu0 0.0
        %4421 = vmatpush2.msra.mxu0 0.0
        %4422 = vmatprep.subr.mxu0 0.0
        %4423 = vmatpush2.msra.mxu0 0.0
        %4424 = vmatprep.subr.mxu0 0.0
        %4425 = vmatpush2.msra.mxu0 0.0
        %4426 = vmatprep.subr.mxu0 0.0
        %4427 = vmatpush2.msra.mxu0 0.0
        %4428 = vmatprep.subr.mxu0 0.0
        %4429 = vmatpush2.msra.mxu0 0.0
        %4430 = vmatprep.mubr.f32.mxu0 0.0
        %4431 = vmatmul.mubr.f32.gmra.mxu0 %v3938
        %v4432 = vpop.f32.mrf.mxu0
        %v4433 = vadd.f32 %v3908, %v4432
        %v4434 = vpop.f32.mrf.mxu0
        %v4435 = vadd.f32 %v3912, %v4434
        %4436 = vdwg.mxu0
        %4437 = vmatprep.subr.mxu0 0.0
        %4438 = vmatpush1.msra.mxu0 0.0
        %4439 = vmatprep.subr.mxu0 0.0
        %4440 = vmatpush1.msra.mxu0 0.0
        %4441 = vmatprep.subr.mxu0 0.0
        %4442 = vmatpush1.msra.mxu0 0.0
        %4443 = vmatprep.subr.mxu0 0.0
        %4444 = vmatpush1.msra.mxu0 0.0
        %4445 = vmatprep.subr.mxu0 0.0
        %4446 = vmatpush1.msra.mxu0 0.0
        %4447 = vmatprep.subr.mxu0 0.0
        %4448 = vmatpush1.msra.mxu0 0.0
        %4449 = vmatprep.subr.mxu0 0.0
        %4450 = vmatpush1.msra.mxu0 0.0
        %4451 = vmatprep.subr.mxu0 0.0
        %4452 = vmatpush1.msra.mxu0 0.0
        %4453 = vmatprep.subr.mxu0 0.0
        %4454 = vmatpush1.msra.mxu0 0.0
        %4455 = vmatprep.subr.mxu0 0.0
        %4456 = vmatpush1.msra.mxu0 0.0
        %4457 = vmatprep.subr.mxu0 0.0
        %4458 = vmatpush1.msra.mxu0 0.0
        %4459 = vmatprep.subr.mxu0 0.0
        %4460 = vmatpush1.msra.mxu0 0.0
        %4461 = vmatprep.subr.mxu0 %v3851
        %4462 = vmatpush1.msra.mxu0 %v3850
        %4463 = vmatprep.subr.mxu0 %v3835
        %4464 = vmatpush1.msra.mxu0 %v3834
        %4465 = vmatprep.subr.mxu0 %v3819
        %4466 = vmatpush1.msra.mxu0 %v3818
        %4467 = vmatprep.subr.mxu0 %v3803
        %4468 = vmatpush1.msra.mxu0 %v3802
        %4469 = vmatprep.subr.mxu0 0.0
        %4470 = vmatpush2.msra.mxu0 0.0
        %4471 = vmatprep.subr.mxu0 0.0
        %4472 = vmatpush2.msra.mxu0 0.0
        %4473 = vmatprep.subr.mxu0 0.0
        %4474 = vmatpush2.msra.mxu0 0.0
        %4475 = vmatprep.subr.mxu0 0.0
        %4476 = vmatpush2.msra.mxu0 0.0
        %4477 = vmatprep.subr.mxu0 0.0
        %4478 = vmatpush2.msra.mxu0 0.0
        %4479 = vmatprep.subr.mxu0 0.0
        %4480 = vmatpush2.msra.mxu0 0.0
        %4481 = vmatprep.subr.mxu0 0.0
        %4482 = vmatpush2.msra.mxu0 0.0
        %4483 = vmatprep.subr.mxu0 0.0
        %4484 = vmatpush2.msra.mxu0 0.0
        %4485 = vmatprep.subr.mxu0 0.0
        %4486 = vmatpush2.msra.mxu0 0.0
        %4487 = vmatprep.subr.mxu0 0.0
        %4488 = vmatpush2.msra.mxu0 0.0
        %4489 = vmatprep.subr.mxu0 0.0
        %4490 = vmatpush2.msra.mxu0 0.0
        %4491 = vmatprep.subr.mxu0 0.0
        %4492 = vmatpush2.msra.mxu0 0.0
        %4493 = vmatprep.subr.mxu0 0.0
        %4494 = vmatpush2.msra.mxu0 0.0
        %4495 = vmatprep.subr.mxu0 0.0
        %4496 = vmatpush2.msra.mxu0 0.0
        %4497 = vmatprep.subr.mxu0 0.0
        %4498 = vmatpush2.msra.mxu0 0.0
        %4499 = vmatprep.subr.mxu0 0.0
        %4500 = vmatpush2.msra.mxu0 0.0
        %4501 = vmatprep.mubr.f32.mxu0 0.0
        %4502 = vmatmul.mubr.f32.gmra.mxu0 %v3938
        %v4503 = vpop.f32.mrf.mxu0
        %v4504 = vadd.f32 %v3916, %v4503
        %v4505 = vpop.f32.mrf.mxu0
        %v4506 = vadd.f32 %v3920, %v4505
        %4507 = vdwg.mxu0
        %v4508 = vmax.f32 %v4007, 0.0
        %v4509 = vmax.f32 %v4009, 0.0
        %v4510 = vmax.f32 %v4078, 0.0
        %v4511 = vmax.f32 %v4080, 0.0
        %v4512 = vmax.f32 %v4149, 0.0
        %v4513 = vmax.f32 %v4151, 0.0
        %v4514 = vmax.f32 %v4220, 0.0
        %v4515 = vmax.f32 %v4222, 0.0
        %v4516 = vmax.f32 %v4291, 0.0
        %v4517 = vmax.f32 %v4293, 0.0
        %v4518 = vmax.f32 %v4362, 0.0
        %v4519 = vmax.f32 %v4364, 0.0
        %v4520 = vmax.f32 %v4433, 0.0
        %v4521 = vmax.f32 %v4435, 0.0
        %v4522 = vmax.f32 %v4504, 0.0
        %v4523 = vmax.f32 %v4506, 0.0
        %s4524 = scalar_lea.vmem %s9, 2048
        %v4525 = vld [vmem:[%s4524] sm:$0xff]
        %v4526 = vld [vmem:[%s4524 + $0x8] sm:$0xff]
        %v4527 = vld [vmem:[%s4524 + $0x10] sm:$0xff]
        %v4528 = vld [vmem:[%s4524 + $0x18] sm:$0xff]
        %v4529 = vld [vmem:[%s4524 + $0x20] sm:$0xff]
        %v4530 = vld [vmem:[%s4524 + $0x28] sm:$0xff]
        %v4531 = vld [vmem:[%s4524 + $0x30] sm:$0xff]
        %v4532 = vld [vmem:[%s4524 + $0x38] sm:$0xff]
        %v4533 = vld [vmem:[%s4524 + $0x40] sm:$0xff]
        %v4534 = vld [vmem:[%s4524 + $0x48] sm:$0xff]
        %v4535 = vld [vmem:[%s4524 + $0x50] sm:$0xff]
        %v4536 = vld [vmem:[%s4524 + $0x58] sm:$0xff]
        %v4537 = vld [vmem:[%s4524 + $0x60] sm:$0xff]
        %v4538 = vld [vmem:[%s4524 + $0x68] sm:$0xff]
        %v4539 = vld [vmem:[%s4524 + $0x70] sm:$0xff]
        %v4540 = vld [vmem:[%s4524 + $0x78] sm:$0xff]
        %v4541 = vld [vmem:[%s4524 + $0x80] sm:$0xff]
        %v4542 = vld [vmem:[%s4524 + $0x88] sm:$0xff]
        %v4543 = vld [vmem:[%s4524 + $0x90] sm:$0xff]
        %v4544 = vld [vmem:[%s4524 + $0x98] sm:$0xff]
        %v4545 = vld [vmem:[%s4524 + $0xa0] sm:$0xff]
        %v4546 = vld [vmem:[%s4524 + $0xa8] sm:$0xff]
        %v4547 = vld [vmem:[%s4524 + $0xb0] sm:$0xff]
        %v4548 = vld [vmem:[%s4524 + $0xb8] sm:$0xff]
        %v4549 = vld [vmem:[%s4524 + $0xc0] sm:$0xff]
        %v4550 = vld [vmem:[%s4524 + $0xc8] sm:$0xff]
        %v4551 = vld [vmem:[%s4524 + $0xd0] sm:$0xff]
        %v4552 = vld [vmem:[%s4524 + $0xd8] sm:$0xff]
        %v4553 = vld [vmem:[%s4524 + $0xe0] sm:$0xff]
        %v4554 = vld [vmem:[%s4524 + $0xe8] sm:$0xff]
        %v4555 = vld [vmem:[%s4524 + $0xf0] sm:$0xff]
        %v4556 = vld [vmem:[%s4524 + $0xf8] sm:$0xff]
        %v4557 = vld [vmem:[%s4524 + $0x100] sm:$0xff]
        %v4558 = vld [vmem:[%s4524 + $0x108] sm:$0xff]
        %v4559 = vld [vmem:[%s4524 + $0x110] sm:$0xff]
        %v4560 = vld [vmem:[%s4524 + $0x118] sm:$0xff]
        %v4561 = vld [vmem:[%s4524 + $0x120] sm:$0xff]
        %v4562 = vld [vmem:[%s4524 + $0x128] sm:$0xff]
        %v4563 = vld [vmem:[%s4524 + $0x130] sm:$0xff]
        %v4564 = vld [vmem:[%s4524 + $0x138] sm:$0xff]
        %v4565 = vld [vmem:[%s4524 + $0x140] sm:$0xff]
        %v4566 = vld [vmem:[%s4524 + $0x148] sm:$0xff]
        %v4567 = vld [vmem:[%s4524 + $0x150] sm:$0xff]
        %v4568 = vld [vmem:[%s4524 + $0x158] sm:$0xff]
        %v4569 = vld [vmem:[%s4524 + $0x160] sm:$0xff]
        %v4570 = vld [vmem:[%s4524 + $0x168] sm:$0xff]
        %v4571 = vld [vmem:[%s4524 + $0x170] sm:$0xff]
        %v4572 = vld [vmem:[%s4524 + $0x178] sm:$0xff]
        %v4573 = vld [vmem:[%s4524 + $0x180] sm:$0xff]
        %v4574 = vld [vmem:[%s4524 + $0x188] sm:$0xff]
        %v4575 = vld [vmem:[%s4524 + $0x190] sm:$0xff]
        %v4576 = vld [vmem:[%s4524 + $0x198] sm:$0xff]
        %v4577 = vld [vmem:[%s4524 + $0x1a0] sm:$0xff]
        %v4578 = vld [vmem:[%s4524 + $0x1a8] sm:$0xff]
        %v4579 = vld [vmem:[%s4524 + $0x1b0] sm:$0xff]
        %v4580 = vld [vmem:[%s4524 + $0x1b8] sm:$0xff]
        %v4581 = vld [vmem:[%s4524 + $0x1c0] sm:$0xff]
        %v4582 = vld [vmem:[%s4524 + $0x1c8] sm:$0xff]
        %v4583 = vld [vmem:[%s4524 + $0x1d0] sm:$0xff]
        %v4584 = vld [vmem:[%s4524 + $0x1d8] sm:$0xff]
        %v4585 = vld [vmem:[%s4524 + $0x1e0] sm:$0xff]
        %v4586 = vld [vmem:[%s4524 + $0x1e8] sm:$0xff]
        %v4587 = vld [vmem:[%s4524 + $0x1f0] sm:$0xff]
        %v4588 = vld [vmem:[%s4524 + $0x1f8] sm:$0xff]
        %v4589 = vld [vmem:[%s4524 + $0x200] sm:$0xff]
        %v4590 = vld [vmem:[%s4524 + $0x208] sm:$0xff]
        %v4591 = vld [vmem:[%s4524 + $0x210] sm:$0xff]
        %v4592 = vld [vmem:[%s4524 + $0x218] sm:$0xff]
        %v4593 = vld [vmem:[%s4524 + $0x220] sm:$0xff]
        %v4594 = vld [vmem:[%s4524 + $0x228] sm:$0xff]
        %v4595 = vld [vmem:[%s4524 + $0x230] sm:$0xff]
        %v4596 = vld [vmem:[%s4524 + $0x238] sm:$0xff]
        %v4597 = vld [vmem:[%s4524 + $0x240] sm:$0xff]
        %v4598 = vld [vmem:[%s4524 + $0x248] sm:$0xff]
        %v4599 = vld [vmem:[%s4524 + $0x250] sm:$0xff]
        %v4600 = vld [vmem:[%s4524 + $0x258] sm:$0xff]
        %v4601 = vld [vmem:[%s4524 + $0x260] sm:$0xff]
        %v4602 = vld [vmem:[%s4524 + $0x268] sm:$0xff]
        %v4603 = vld [vmem:[%s4524 + $0x270] sm:$0xff]
        %v4604 = vld [vmem:[%s4524 + $0x278] sm:$0xff]
        %v4605 = vld [vmem:[%s4524 + $0x280] sm:$0xff]
        %v4606 = vld [vmem:[%s4524 + $0x288] sm:$0xff]
        %v4607 = vld [vmem:[%s4524 + $0x290] sm:$0xff]
        %v4608 = vld [vmem:[%s4524 + $0x298] sm:$0xff]
        %v4609 = vld [vmem:[%s4524 + $0x2a0] sm:$0xff]
        %v4610 = vld [vmem:[%s4524 + $0x2a8] sm:$0xff]
        %v4611 = vld [vmem:[%s4524 + $0x2b0] sm:$0xff]
        %v4612 = vld [vmem:[%s4524 + $0x2b8] sm:$0xff]
        %v4613 = vld [vmem:[%s4524 + $0x2c0] sm:$0xff]
        %v4614 = vld [vmem:[%s4524 + $0x2c8] sm:$0xff]
        %v4615 = vld [vmem:[%s4524 + $0x2d0] sm:$0xff]
        %v4616 = vld [vmem:[%s4524 + $0x2d8] sm:$0xff]
        %v4617 = vld [vmem:[%s4524 + $0x2e0] sm:$0xff]
        %v4618 = vld [vmem:[%s4524 + $0x2e8] sm:$0xff]
        %v4619 = vld [vmem:[%s4524 + $0x2f0] sm:$0xff]
        %v4620 = vld [vmem:[%s4524 + $0x2f8] sm:$0xff]
        %v4621 = vld [vmem:[%s4524 + $0x300] sm:$0xff]
        %v4622 = vld [vmem:[%s4524 + $0x308] sm:$0xff]
        %v4623 = vld [vmem:[%s4524 + $0x310] sm:$0xff]
        %v4624 = vld [vmem:[%s4524 + $0x318] sm:$0xff]
        %v4625 = vld [vmem:[%s4524 + $0x320] sm:$0xff]
        %v4626 = vld [vmem:[%s4524 + $0x328] sm:$0xff]
        %v4627 = vld [vmem:[%s4524 + $0x330] sm:$0xff]
        %v4628 = vld [vmem:[%s4524 + $0x338] sm:$0xff]
        %v4629 = vld [vmem:[%s4524 + $0x340] sm:$0xff]
        %v4630 = vld [vmem:[%s4524 + $0x348] sm:$0xff]
        %v4631 = vld [vmem:[%s4524 + $0x350] sm:$0xff]
        %v4632 = vld [vmem:[%s4524 + $0x358] sm:$0xff]
        %v4633 = vld [vmem:[%s4524 + $0x360] sm:$0xff]
        %v4634 = vld [vmem:[%s4524 + $0x368] sm:$0xff]
        %v4635 = vld [vmem:[%s4524 + $0x370] sm:$0xff]
        %v4636 = vld [vmem:[%s4524 + $0x378] sm:$0xff]
        %v4637 = vld [vmem:[%s4524 + $0x380] sm:$0xff]
        %v4638 = vld [vmem:[%s4524 + $0x388] sm:$0xff]
        %v4639 = vld [vmem:[%s4524 + $0x390] sm:$0xff]
        %v4640 = vld [vmem:[%s4524 + $0x398] sm:$0xff]
        %v4641 = vld [vmem:[%s4524 + $0x3a0] sm:$0xff]
        %v4642 = vld [vmem:[%s4524 + $0x3a8] sm:$0xff]
        %v4643 = vld [vmem:[%s4524 + $0x3b0] sm:$0xff]
        %v4644 = vld [vmem:[%s4524 + $0x3b8] sm:$0xff]
        %v4645 = vld [vmem:[%s4524 + $0x3c0] sm:$0xff]
        %v4646 = vld [vmem:[%s4524 + $0x3c8] sm:$0xff]
        %v4647 = vld [vmem:[%s4524 + $0x3d0] sm:$0xff]
        %v4648 = vld [vmem:[%s4524 + $0x3d8] sm:$0xff]
        %v4649 = vld [vmem:[%s4524 + $0x3e0] sm:$0xff]
        %v4650 = vld [vmem:[%s4524 + $0x3e8] sm:$0xff]
        %v4651 = vld [vmem:[%s4524 + $0x3f0] sm:$0xff]
        %v4652 = vld [vmem:[%s4524 + $0x3f8] sm:$0xff]
        %v4653 = vld [vmem:[%s4524 + $0x400] sm:$0xff]
        %v4654 = vld [vmem:[%s4524 + $0x408] sm:$0xff]
        %v4655 = vld [vmem:[%s4524 + $0x410] sm:$0xff]
        %v4656 = vld [vmem:[%s4524 + $0x418] sm:$0xff]
        %v4657 = vld [vmem:[%s4524 + $0x420] sm:$0xff]
        %v4658 = vld [vmem:[%s4524 + $0x428] sm:$0xff]
        %v4659 = vld [vmem:[%s4524 + $0x430] sm:$0xff]
        %v4660 = vld [vmem:[%s4524 + $0x438] sm:$0xff]
        %v4661 = vld [vmem:[%s4524 + $0x440] sm:$0xff]
        %v4662 = vld [vmem:[%s4524 + $0x448] sm:$0xff]
        %v4663 = vld [vmem:[%s4524 + $0x450] sm:$0xff]
        %v4664 = vld [vmem:[%s4524 + $0x458] sm:$0xff]
        %v4665 = vld [vmem:[%s4524 + $0x460] sm:$0xff]
        %v4666 = vld [vmem:[%s4524 + $0x468] sm:$0xff]
        %v4667 = vld [vmem:[%s4524 + $0x470] sm:$0xff]
        %v4668 = vld [vmem:[%s4524 + $0x478] sm:$0xff]
        %v4669 = vld [vmem:[%s4524 + $0x480] sm:$0xff]
        %v4670 = vld [vmem:[%s4524 + $0x488] sm:$0xff]
        %v4671 = vld [vmem:[%s4524 + $0x490] sm:$0xff]
        %v4672 = vld [vmem:[%s4524 + $0x498] sm:$0xff]
        %v4673 = vld [vmem:[%s4524 + $0x4a0] sm:$0xff]
        %v4674 = vld [vmem:[%s4524 + $0x4a8] sm:$0xff]
        %v4675 = vld [vmem:[%s4524 + $0x4b0] sm:$0xff]
        %v4676 = vld [vmem:[%s4524 + $0x4b8] sm:$0xff]
        %v4677 = vld [vmem:[%s4524 + $0x4c0] sm:$0xff]
        %v4678 = vld [vmem:[%s4524 + $0x4c8] sm:$0xff]
        %v4679 = vld [vmem:[%s4524 + $0x4d0] sm:$0xff]
        %v4680 = vld [vmem:[%s4524 + $0x4d8] sm:$0xff]
        %v4681 = vld [vmem:[%s4524 + $0x4e0] sm:$0xff]
        %v4682 = vld [vmem:[%s4524 + $0x4e8] sm:$0xff]
        %v4683 = vld [vmem:[%s4524 + $0x4f0] sm:$0xff]
        %v4684 = vld [vmem:[%s4524 + $0x4f8] sm:$0xff]
        %v4685 = vld [vmem:[%s4524 + $0x500] sm:$0xff]
        %v4686 = vld [vmem:[%s4524 + $0x508] sm:$0xff]
        %v4687 = vld [vmem:[%s4524 + $0x510] sm:$0xff]
        %v4688 = vld [vmem:[%s4524 + $0x518] sm:$0xff]
        %v4689 = vld [vmem:[%s4524 + $0x520] sm:$0xff]
        %v4690 = vld [vmem:[%s4524 + $0x528] sm:$0xff]
        %v4691 = vld [vmem:[%s4524 + $0x530] sm:$0xff]
        %v4692 = vld [vmem:[%s4524 + $0x538] sm:$0xff]
        %v4693 = vld [vmem:[%s4524 + $0x540] sm:$0xff]
        %v4694 = vld [vmem:[%s4524 + $0x548] sm:$0xff]
        %v4695 = vld [vmem:[%s4524 + $0x550] sm:$0xff]
        %v4696 = vld [vmem:[%s4524 + $0x558] sm:$0xff]
        %v4697 = vld [vmem:[%s4524 + $0x560] sm:$0xff]
        %v4698 = vld [vmem:[%s4524 + $0x568] sm:$0xff]
        %v4699 = vld [vmem:[%s4524 + $0x570] sm:$0xff]
        %v4700 = vld [vmem:[%s4524 + $0x578] sm:$0xff]
        %v4701 = vld [vmem:[%s4524 + $0x580] sm:$0xff]
        %v4702 = vld [vmem:[%s4524 + $0x588] sm:$0xff]
        %v4703 = vld [vmem:[%s4524 + $0x590] sm:$0xff]
        %v4704 = vld [vmem:[%s4524 + $0x598] sm:$0xff]
        %v4705 = vld [vmem:[%s4524 + $0x5a0] sm:$0xff]
        %v4706 = vld [vmem:[%s4524 + $0x5a8] sm:$0xff]
        %v4707 = vld [vmem:[%s4524 + $0x5b0] sm:$0xff]
        %v4708 = vld [vmem:[%s4524 + $0x5b8] sm:$0xff]
        %v4709 = vld [vmem:[%s4524 + $0x5c0] sm:$0xff]
        %v4710 = vld [vmem:[%s4524 + $0x5c8] sm:$0xff]
        %v4711 = vld [vmem:[%s4524 + $0x5d0] sm:$0xff]
        %v4712 = vld [vmem:[%s4524 + $0x5d8] sm:$0xff]
        %v4713 = vld [vmem:[%s4524 + $0x5e0] sm:$0xff]
        %v4714 = vld [vmem:[%s4524 + $0x5e8] sm:$0xff]
        %v4715 = vld [vmem:[%s4524 + $0x5f0] sm:$0xff]
        %v4716 = vld [vmem:[%s4524 + $0x5f8] sm:$0xff]
        %v4717 = vld [vmem:[%s4524 + $0x600] sm:$0xff]
        %v4718 = vld [vmem:[%s4524 + $0x608] sm:$0xff]
        %v4719 = vld [vmem:[%s4524 + $0x610] sm:$0xff]
        %v4720 = vld [vmem:[%s4524 + $0x618] sm:$0xff]
        %v4721 = vld [vmem:[%s4524 + $0x620] sm:$0xff]
        %v4722 = vld [vmem:[%s4524 + $0x628] sm:$0xff]
        %v4723 = vld [vmem:[%s4524 + $0x630] sm:$0xff]
        %v4724 = vld [vmem:[%s4524 + $0x638] sm:$0xff]
        %v4725 = vld [vmem:[%s4524 + $0x640] sm:$0xff]
        %v4726 = vld [vmem:[%s4524 + $0x648] sm:$0xff]
        %v4727 = vld [vmem:[%s4524 + $0x650] sm:$0xff]
        %v4728 = vld [vmem:[%s4524 + $0x658] sm:$0xff]
        %v4729 = vld [vmem:[%s4524 + $0x660] sm:$0xff]
        %v4730 = vld [vmem:[%s4524 + $0x668] sm:$0xff]
        %v4731 = vld [vmem:[%s4524 + $0x670] sm:$0xff]
        %v4732 = vld [vmem:[%s4524 + $0x678] sm:$0xff]
        %v4733 = vld [vmem:[%s4524 + $0x680] sm:$0xff]
        %v4734 = vld [vmem:[%s4524 + $0x688] sm:$0xff]
        %v4735 = vld [vmem:[%s4524 + $0x690] sm:$0xff]
        %v4736 = vld [vmem:[%s4524 + $0x698] sm:$0xff]
        %v4737 = vld [vmem:[%s4524 + $0x6a0] sm:$0xff]
        %v4738 = vld [vmem:[%s4524 + $0x6a8] sm:$0xff]
        %v4739 = vld [vmem:[%s4524 + $0x6b0] sm:$0xff]
        %v4740 = vld [vmem:[%s4524 + $0x6b8] sm:$0xff]
        %v4741 = vld [vmem:[%s4524 + $0x6c0] sm:$0xff]
        %v4742 = vld [vmem:[%s4524 + $0x6c8] sm:$0xff]
        %v4743 = vld [vmem:[%s4524 + $0x6d0] sm:$0xff]
        %v4744 = vld [vmem:[%s4524 + $0x6d8] sm:$0xff]
        %v4745 = vld [vmem:[%s4524 + $0x6e0] sm:$0xff]
        %v4746 = vld [vmem:[%s4524 + $0x6e8] sm:$0xff]
        %v4747 = vld [vmem:[%s4524 + $0x6f0] sm:$0xff]
        %v4748 = vld [vmem:[%s4524 + $0x6f8] sm:$0xff]
        %v4749 = vld [vmem:[%s4524 + $0x700] sm:$0xff]
        %v4750 = vld [vmem:[%s4524 + $0x708] sm:$0xff]
        %v4751 = vld [vmem:[%s4524 + $0x710] sm:$0xff]
        %v4752 = vld [vmem:[%s4524 + $0x718] sm:$0xff]
        %v4753 = vld [vmem:[%s4524 + $0x720] sm:$0xff]
        %v4754 = vld [vmem:[%s4524 + $0x728] sm:$0xff]
        %v4755 = vld [vmem:[%s4524 + $0x730] sm:$0xff]
        %v4756 = vld [vmem:[%s4524 + $0x738] sm:$0xff]
        %v4757 = vld [vmem:[%s4524 + $0x740] sm:$0xff]
        %v4758 = vld [vmem:[%s4524 + $0x748] sm:$0xff]
        %v4759 = vld [vmem:[%s4524 + $0x750] sm:$0xff]
        %v4760 = vld [vmem:[%s4524 + $0x758] sm:$0xff]
        %v4761 = vld [vmem:[%s4524 + $0x760] sm:$0xff]
        %v4762 = vld [vmem:[%s4524 + $0x768] sm:$0xff]
        %v4763 = vld [vmem:[%s4524 + $0x770] sm:$0xff]
        %v4764 = vld [vmem:[%s4524 + $0x778] sm:$0xff]
        %v4765 = vld [vmem:[%s4524 + $0x780] sm:$0xff]
        %v4766 = vld [vmem:[%s4524 + $0x788] sm:$0xff]
        %v4767 = vld [vmem:[%s4524 + $0x790] sm:$0xff]
        %v4768 = vld [vmem:[%s4524 + $0x798] sm:$0xff]
        %v4769 = vld [vmem:[%s4524 + $0x7a0] sm:$0xff]
        %v4770 = vld [vmem:[%s4524 + $0x7a8] sm:$0xff]
        %v4771 = vld [vmem:[%s4524 + $0x7b0] sm:$0xff]
        %v4772 = vld [vmem:[%s4524 + $0x7b8] sm:$0xff]
        %v4773 = vld [vmem:[%s4524 + $0x7c0] sm:$0xff]
        %v4774 = vld [vmem:[%s4524 + $0x7c8] sm:$0xff]
        %v4775 = vld [vmem:[%s4524 + $0x7d0] sm:$0xff]
        %v4776 = vld [vmem:[%s4524 + $0x7d8] sm:$0xff]
        %v4777 = vld [vmem:[%s4524 + $0x7e0] sm:$0xff]
        %v4778 = vld [vmem:[%s4524 + $0x7e8] sm:$0xff]
        %v4779 = vld [vmem:[%s4524 + $0x7f0] sm:$0xff]
        %v4780 = vld [vmem:[%s4524 + $0x7f8] sm:$0xff]
        %s4781 = scalar_lea.vmem %s10, 1
        %v4782 = vld [vmem:[%s4781] sm:$0x1]
        %v4784 = vlaneseq
        %v4785 = vshrl.u32 %v4784, 7
        %v4786 = vsub.s32 0, %v4785
        %v4787 = vrot.slane %v4782, %v4786
        %4789 = vmatprep.subr.mxu0 0.0
        %4790 = vmatpush1.msra.mxu0 %v4540
        %4791 = vmatprep.subr.mxu0 0.0
        %4792 = vmatpush1.msra.mxu0 %v4539
        %4793 = vmatprep.subr.mxu0 0.0
        %4794 = vmatpush1.msra.mxu0 %v4538
        %4795 = vmatprep.subr.mxu0 0.0
        %4796 = vmatpush1.msra.mxu0 %v4537
        %4797 = vmatprep.subr.mxu0 0.0
        %4798 = vmatpush1.msra.mxu0 %v4536
        %4799 = vmatprep.subr.mxu0 0.0
        %4800 = vmatpush1.msra.mxu0 %v4535
        %4801 = vmatprep.subr.mxu0 0.0
        %4802 = vmatpush1.msra.mxu0 %v4534
        %4803 = vmatprep.subr.mxu0 0.0
        %4804 = vmatpush1.msra.mxu0 %v4533
        %4805 = vmatprep.subr.mxu0 0.0
        %4806 = vmatpush1.msra.mxu0 %v4532
        %4807 = vmatprep.subr.mxu0 0.0
        %4808 = vmatpush1.msra.mxu0 %v4531
        %4809 = vmatprep.subr.mxu0 0.0
        %4810 = vmatpush1.msra.mxu0 %v4530
        %4811 = vmatprep.subr.mxu0 0.0
        %4812 = vmatpush1.msra.mxu0 %v4529
        %4813 = vmatprep.subr.mxu0 0.0
        %4814 = vmatpush1.msra.mxu0 %v4528
        %4815 = vmatprep.subr.mxu0 0.0
        %4816 = vmatpush1.msra.mxu0 %v4527
        %4817 = vmatprep.subr.mxu0 0.0
        %4818 = vmatpush1.msra.mxu0 %v4526
        %4819 = vmatprep.subr.mxu0 0.0
        %4820 = vmatpush1.msra.mxu0 %v4525
        %4821 = vmatprep.subr.mxu0 0.0
        %4822 = vmatpush2.msra.mxu0 %v4556
        %4823 = vmatprep.subr.mxu0 0.0
        %4824 = vmatpush2.msra.mxu0 %v4555
        %4825 = vmatprep.subr.mxu0 0.0
        %4826 = vmatpush2.msra.mxu0 %v4554
        %4827 = vmatprep.subr.mxu0 0.0
        %4828 = vmatpush2.msra.mxu0 %v4553
        %4829 = vmatprep.subr.mxu0 0.0
        %4830 = vmatpush2.msra.mxu0 %v4552
        %4831 = vmatprep.subr.mxu0 0.0
        %4832 = vmatpush2.msra.mxu0 %v4551
        %4833 = vmatprep.subr.mxu0 0.0
        %4834 = vmatpush2.msra.mxu0 %v4550
        %4835 = vmatprep.subr.mxu0 0.0
        %4836 = vmatpush2.msra.mxu0 %v4549
        %4837 = vmatprep.subr.mxu0 0.0
        %4838 = vmatpush2.msra.mxu0 %v4548
        %4839 = vmatprep.subr.mxu0 0.0
        %4840 = vmatpush2.msra.mxu0 %v4547
        %4841 = vmatprep.subr.mxu0 0.0
        %4842 = vmatpush2.msra.mxu0 %v4546
        %4843 = vmatprep.subr.mxu0 0.0
        %4844 = vmatpush2.msra.mxu0 %v4545
        %4845 = vmatprep.subr.mxu0 0.0
        %4846 = vmatpush2.msra.mxu0 %v4544
        %4847 = vmatprep.subr.mxu0 0.0
        %4848 = vmatpush2.msra.mxu0 %v4543
        %4849 = vmatprep.subr.mxu0 0.0
        %4850 = vmatpush2.msra.mxu0 %v4542
        %4851 = vmatprep.subr.mxu0 0.0
        %4852 = vmatpush2.msra.mxu0 %v4541
        %4853 = vmatprep.mubr.f32.mxu0 %v4509
        %4854 = vmatmul.mubr.f32.gmra.mxu0 %v4508
        %v4855 = vpop.f32.mrf.mxu0
        %v4856 = vadd.f32 %v4787, %v4855
        %v4857 = vpop.f32.mrf.mxu0
        %4858 = vdwg.mxu0
        %4859 = vmatprep.subr.mxu0 0.0
        %4860 = vmatpush1.msra.mxu0 %v4572
        %4861 = vmatprep.subr.mxu0 0.0
        %4862 = vmatpush1.msra.mxu0 %v4571
        %4863 = vmatprep.subr.mxu0 0.0
        %4864 = vmatpush1.msra.mxu0 %v4570
        %4865 = vmatprep.subr.mxu0 0.0
        %4866 = vmatpush1.msra.mxu0 %v4569
        %4867 = vmatprep.subr.mxu0 0.0
        %4868 = vmatpush1.msra.mxu0 %v4568
        %4869 = vmatprep.subr.mxu0 0.0
        %4870 = vmatpush1.msra.mxu0 %v4567
        %4871 = vmatprep.subr.mxu0 0.0
        %4872 = vmatpush1.msra.mxu0 %v4566
        %4873 = vmatprep.subr.mxu0 0.0
        %4874 = vmatpush1.msra.mxu0 %v4565
        %4875 = vmatprep.subr.mxu0 0.0
        %4876 = vmatpush1.msra.mxu0 %v4564
        %4877 = vmatprep.subr.mxu0 0.0
        %4878 = vmatpush1.msra.mxu0 %v4563
        %4879 = vmatprep.subr.mxu0 0.0
        %4880 = vmatpush1.msra.mxu0 %v4562
        %4881 = vmatprep.subr.mxu0 0.0
        %4882 = vmatpush1.msra.mxu0 %v4561
        %4883 = vmatprep.subr.mxu0 0.0
        %4884 = vmatpush1.msra.mxu0 %v4560
        %4885 = vmatprep.subr.mxu0 0.0
        %4886 = vmatpush1.msra.mxu0 %v4559
        %4887 = vmatprep.subr.mxu0 0.0
        %4888 = vmatpush1.msra.mxu0 %v4558
        %4889 = vmatprep.subr.mxu0 0.0
        %4890 = vmatpush1.msra.mxu0 %v4557
        %4891 = vmatprep.subr.mxu0 0.0
        %4892 = vmatpush2.msra.mxu0 %v4588
        %4893 = vmatprep.subr.mxu0 0.0
        %4894 = vmatpush2.msra.mxu0 %v4587
        %4895 = vmatprep.subr.mxu0 0.0
        %4896 = vmatpush2.msra.mxu0 %v4586
        %4897 = vmatprep.subr.mxu0 0.0
        %4898 = vmatpush2.msra.mxu0 %v4585
        %4899 = vmatprep.subr.mxu0 0.0
        %4900 = vmatpush2.msra.mxu0 %v4584
        %4901 = vmatprep.subr.mxu0 0.0
        %4902 = vmatpush2.msra.mxu0 %v4583
        %4903 = vmatprep.subr.mxu0 0.0
        %4904 = vmatpush2.msra.mxu0 %v4582
        %4905 = vmatprep.subr.mxu0 0.0
        %4906 = vmatpush2.msra.mxu0 %v4581
        %4907 = vmatprep.subr.mxu0 0.0
        %4908 = vmatpush2.msra.mxu0 %v4580
        %4909 = vmatprep.subr.mxu0 0.0
        %4910 = vmatpush2.msra.mxu0 %v4579
        %4911 = vmatprep.subr.mxu0 0.0
        %4912 = vmatpush2.msra.mxu0 %v4578
        %4913 = vmatprep.subr.mxu0 0.0
        %4914 = vmatpush2.msra.mxu0 %v4577
        %4915 = vmatprep.subr.mxu0 0.0
        %4916 = vmatpush2.msra.mxu0 %v4576
        %4917 = vmatprep.subr.mxu0 0.0
        %4918 = vmatpush2.msra.mxu0 %v4575
        %4919 = vmatprep.subr.mxu0 0.0
        %4920 = vmatpush2.msra.mxu0 %v4574
        %4921 = vmatprep.subr.mxu0 0.0
        %4922 = vmatpush2.msra.mxu0 %v4573
        %4923 = vmatprep.mubr.f32.mxu0 %v4511
        %4924 = vmatmul.mubr.f32.gmra.mxu0 %v4510
        %v4925 = vpop.f32.mrf.mxu0
        %v4926 = vadd.f32 %v4856, %v4925
        %v4927 = vpop.f32.mrf.mxu0
        %4928 = vdwg.mxu0
        %4929 = vmatprep.subr.mxu0 0.0
        %4930 = vmatpush1.msra.mxu0 %v4604
        %4931 = vmatprep.subr.mxu0 0.0
        %4932 = vmatpush1.msra.mxu0 %v4603
        %4933 = vmatprep.subr.mxu0 0.0
        %4934 = vmatpush1.msra.mxu0 %v4602
        %4935 = vmatprep.subr.mxu0 0.0
        %4936 = vmatpush1.msra.mxu0 %v4601
        %4937 = vmatprep.subr.mxu0 0.0
        %4938 = vmatpush1.msra.mxu0 %v4600
        %4939 = vmatprep.subr.mxu0 0.0
        %4940 = vmatpush1.msra.mxu0 %v4599
        %4941 = vmatprep.subr.mxu0 0.0
        %4942 = vmatpush1.msra.mxu0 %v4598
        %4943 = vmatprep.subr.mxu0 0.0
        %4944 = vmatpush1.msra.mxu0 %v4597
        %4945 = vmatprep.subr.mxu0 0.0
        %4946 = vmatpush1.msra.mxu0 %v4596
        %4947 = vmatprep.subr.mxu0 0.0
        %4948 = vmatpush1.msra.mxu0 %v4595
        %4949 = vmatprep.subr.mxu0 0.0
        %4950 = vmatpush1.msra.mxu0 %v4594
        %4951 = vmatprep.subr.mxu0 0.0
        %4952 = vmatpush1.msra.mxu0 %v4593
        %4953 = vmatprep.subr.mxu0 0.0
        %4954 = vmatpush1.msra.mxu0 %v4592
        %4955 = vmatprep.subr.mxu0 0.0
        %4956 = vmatpush1.msra.mxu0 %v4591
        %4957 = vmatprep.subr.mxu0 0.0
        %4958 = vmatpush1.msra.mxu0 %v4590
        %4959 = vmatprep.subr.mxu0 0.0
        %4960 = vmatpush1.msra.mxu0 %v4589
        %4961 = vmatprep.subr.mxu0 0.0
        %4962 = vmatpush2.msra.mxu0 %v4620
        %4963 = vmatprep.subr.mxu0 0.0
        %4964 = vmatpush2.msra.mxu0 %v4619
        %4965 = vmatprep.subr.mxu0 0.0
        %4966 = vmatpush2.msra.mxu0 %v4618
        %4967 = vmatprep.subr.mxu0 0.0
        %4968 = vmatpush2.msra.mxu0 %v4617
        %4969 = vmatprep.subr.mxu0 0.0
        %4970 = vmatpush2.msra.mxu0 %v4616
        %4971 = vmatprep.subr.mxu0 0.0
        %4972 = vmatpush2.msra.mxu0 %v4615
        %4973 = vmatprep.subr.mxu0 0.0
        %4974 = vmatpush2.msra.mxu0 %v4614
        %4975 = vmatprep.subr.mxu0 0.0
        %4976 = vmatpush2.msra.mxu0 %v4613
        %4977 = vmatprep.subr.mxu0 0.0
        %4978 = vmatpush2.msra.mxu0 %v4612
        %4979 = vmatprep.subr.mxu0 0.0
        %4980 = vmatpush2.msra.mxu0 %v4611
        %4981 = vmatprep.subr.mxu0 0.0
        %4982 = vmatpush2.msra.mxu0 %v4610
        %4983 = vmatprep.subr.mxu0 0.0
        %4984 = vmatpush2.msra.mxu0 %v4609
        %4985 = vmatprep.subr.mxu0 0.0
        %4986 = vmatpush2.msra.mxu0 %v4608
        %4987 = vmatprep.subr.mxu0 0.0
        %4988 = vmatpush2.msra.mxu0 %v4607
        %4989 = vmatprep.subr.mxu0 0.0
        %4990 = vmatpush2.msra.mxu0 %v4606
        %4991 = vmatprep.subr.mxu0 0.0
        %4992 = vmatpush2.msra.mxu0 %v4605
        %4993 = vmatprep.mubr.f32.mxu0 %v4513
        %4994 = vmatmul.mubr.f32.gmra.mxu0 %v4512
        %v4995 = vpop.f32.mrf.mxu0
        %v4996 = vadd.f32 %v4926, %v4995
        %v4997 = vpop.f32.mrf.mxu0
        %4998 = vdwg.mxu0
        %4999 = vmatprep.subr.mxu0 0.0
        %5000 = vmatpush1.msra.mxu0 %v4636
        %5001 = vmatprep.subr.mxu0 0.0
        %5002 = vmatpush1.msra.mxu0 %v4635
        %5003 = vmatprep.subr.mxu0 0.0
        %5004 = vmatpush1.msra.mxu0 %v4634
        %5005 = vmatprep.subr.mxu0 0.0
        %5006 = vmatpush1.msra.mxu0 %v4633
        %5007 = vmatprep.subr.mxu0 0.0
        %5008 = vmatpush1.msra.mxu0 %v4632
        %5009 = vmatprep.subr.mxu0 0.0
        %5010 = vmatpush1.msra.mxu0 %v4631
        %5011 = vmatprep.subr.mxu0 0.0
        %5012 = vmatpush1.msra.mxu0 %v4630
        %5013 = vmatprep.subr.mxu0 0.0
        %5014 = vmatpush1.msra.mxu0 %v4629
        %5015 = vmatprep.subr.mxu0 0.0
        %5016 = vmatpush1.msra.mxu0 %v4628
        %5017 = vmatprep.subr.mxu0 0.0
        %5018 = vmatpush1.msra.mxu0 %v4627
        %5019 = vmatprep.subr.mxu0 0.0
        %5020 = vmatpush1.msra.mxu0 %v4626
        %5021 = vmatprep.subr.mxu0 0.0
        %5022 = vmatpush1.msra.mxu0 %v4625
        %5023 = vmatprep.subr.mxu0 0.0
        %5024 = vmatpush1.msra.mxu0 %v4624
        %5025 = vmatprep.subr.mxu0 0.0
        %5026 = vmatpush1.msra.mxu0 %v4623
        %5027 = vmatprep.subr.mxu0 0.0
        %5028 = vmatpush1.msra.mxu0 %v4622
        %5029 = vmatprep.subr.mxu0 0.0
        %5030 = vmatpush1.msra.mxu0 %v4621
        %5031 = vmatprep.subr.mxu0 0.0
        %5032 = vmatpush2.msra.mxu0 %v4652
        %5033 = vmatprep.subr.mxu0 0.0
        %5034 = vmatpush2.msra.mxu0 %v4651
        %5035 = vmatprep.subr.mxu0 0.0
        %5036 = vmatpush2.msra.mxu0 %v4650
        %5037 = vmatprep.subr.mxu0 0.0
        %5038 = vmatpush2.msra.mxu0 %v4649
        %5039 = vmatprep.subr.mxu0 0.0
        %5040 = vmatpush2.msra.mxu0 %v4648
        %5041 = vmatprep.subr.mxu0 0.0
        %5042 = vmatpush2.msra.mxu0 %v4647
        %5043 = vmatprep.subr.mxu0 0.0
        %5044 = vmatpush2.msra.mxu0 %v4646
        %5045 = vmatprep.subr.mxu0 0.0
        %5046 = vmatpush2.msra.mxu0 %v4645
        %5047 = vmatprep.subr.mxu0 0.0
        %5048 = vmatpush2.msra.mxu0 %v4644
        %5049 = vmatprep.subr.mxu0 0.0
        %5050 = vmatpush2.msra.mxu0 %v4643
        %5051 = vmatprep.subr.mxu0 0.0
        %5052 = vmatpush2.msra.mxu0 %v4642
        %5053 = vmatprep.subr.mxu0 0.0
        %5054 = vmatpush2.msra.mxu0 %v4641
        %5055 = vmatprep.subr.mxu0 0.0
        %5056 = vmatpush2.msra.mxu0 %v4640
        %5057 = vmatprep.subr.mxu0 0.0
        %5058 = vmatpush2.msra.mxu0 %v4639
        %5059 = vmatprep.subr.mxu0 0.0
        %5060 = vmatpush2.msra.mxu0 %v4638
        %5061 = vmatprep.subr.mxu0 0.0
        %5062 = vmatpush2.msra.mxu0 %v4637
        %5063 = vmatprep.mubr.f32.mxu0 %v4515
        %5064 = vmatmul.mubr.f32.gmra.mxu0 %v4514
        %v5065 = vpop.f32.mrf.mxu0
        %v5066 = vadd.f32 %v4996, %v5065
        %v5067 = vpop.f32.mrf.mxu0
        %5068 = vdwg.mxu0
        %5069 = vmatprep.subr.mxu0 0.0
        %5070 = vmatpush1.msra.mxu0 %v4668
        %5071 = vmatprep.subr.mxu0 0.0
        %5072 = vmatpush1.msra.mxu0 %v4667
        %5073 = vmatprep.subr.mxu0 0.0
        %5074 = vmatpush1.msra.mxu0 %v4666
        %5075 = vmatprep.subr.mxu0 0.0
        %5076 = vmatpush1.msra.mxu0 %v4665
        %5077 = vmatprep.subr.mxu0 0.0
        %5078 = vmatpush1.msra.mxu0 %v4664
        %5079 = vmatprep.subr.mxu0 0.0
        %5080 = vmatpush1.msra.mxu0 %v4663
        %5081 = vmatprep.subr.mxu0 0.0
        %5082 = vmatpush1.msra.mxu0 %v4662
        %5083 = vmatprep.subr.mxu0 0.0
        %5084 = vmatpush1.msra.mxu0 %v4661
        %5085 = vmatprep.subr.mxu0 0.0
        %5086 = vmatpush1.msra.mxu0 %v4660
        %5087 = vmatprep.subr.mxu0 0.0
        %5088 = vmatpush1.msra.mxu0 %v4659
        %5089 = vmatprep.subr.mxu0 0.0
        %5090 = vmatpush1.msra.mxu0 %v4658
        %5091 = vmatprep.subr.mxu0 0.0
        %5092 = vmatpush1.msra.mxu0 %v4657
        %5093 = vmatprep.subr.mxu0 0.0
        %5094 = vmatpush1.msra.mxu0 %v4656
        %5095 = vmatprep.subr.mxu0 0.0
        %5096 = vmatpush1.msra.mxu0 %v4655
        %5097 = vmatprep.subr.mxu0 0.0
        %5098 = vmatpush1.msra.mxu0 %v4654
        %5099 = vmatprep.subr.mxu0 0.0
        %5100 = vmatpush1.msra.mxu0 %v4653
        %5101 = vmatprep.subr.mxu0 0.0
        %5102 = vmatpush2.msra.mxu0 %v4684
        %5103 = vmatprep.subr.mxu0 0.0
        %5104 = vmatpush2.msra.mxu0 %v4683
        %5105 = vmatprep.subr.mxu0 0.0
        %5106 = vmatpush2.msra.mxu0 %v4682
        %5107 = vmatprep.subr.mxu0 0.0
        %5108 = vmatpush2.msra.mxu0 %v4681
        %5109 = vmatprep.subr.mxu0 0.0
        %5110 = vmatpush2.msra.mxu0 %v4680
        %5111 = vmatprep.subr.mxu0 0.0
        %5112 = vmatpush2.msra.mxu0 %v4679
        %5113 = vmatprep.subr.mxu0 0.0
        %5114 = vmatpush2.msra.mxu0 %v4678
        %5115 = vmatprep.subr.mxu0 0.0
        %5116 = vmatpush2.msra.mxu0 %v4677
        %5117 = vmatprep.subr.mxu0 0.0
        %5118 = vmatpush2.msra.mxu0 %v4676
        %5119 = vmatprep.subr.mxu0 0.0
        %5120 = vmatpush2.msra.mxu0 %v4675
        %5121 = vmatprep.subr.mxu0 0.0
        %5122 = vmatpush2.msra.mxu0 %v4674
        %5123 = vmatprep.subr.mxu0 0.0
        %5124 = vmatpush2.msra.mxu0 %v4673
        %5125 = vmatprep.subr.mxu0 0.0
        %5126 = vmatpush2.msra.mxu0 %v4672
        %5127 = vmatprep.subr.mxu0 0.0
        %5128 = vmatpush2.msra.mxu0 %v4671
        %5129 = vmatprep.subr.mxu0 0.0
        %5130 = vmatpush2.msra.mxu0 %v4670
        %5131 = vmatprep.subr.mxu0 0.0
        %5132 = vmatpush2.msra.mxu0 %v4669
        %5133 = vmatprep.mubr.f32.mxu0 %v4517
        %5134 = vmatmul.mubr.f32.gmra.mxu0 %v4516
        %v5135 = vpop.f32.mrf.mxu0
        %v5136 = vadd.f32 %v5066, %v5135
        %v5137 = vpop.f32.mrf.mxu0
        %5138 = vdwg.mxu0
        %5139 = vmatprep.subr.mxu0 0.0
        %5140 = vmatpush1.msra.mxu0 %v4700
        %5141 = vmatprep.subr.mxu0 0.0
        %5142 = vmatpush1.msra.mxu0 %v4699
        %5143 = vmatprep.subr.mxu0 0.0
        %5144 = vmatpush1.msra.mxu0 %v4698
        %5145 = vmatprep.subr.mxu0 0.0
        %5146 = vmatpush1.msra.mxu0 %v4697
        %5147 = vmatprep.subr.mxu0 0.0
        %5148 = vmatpush1.msra.mxu0 %v4696
        %5149 = vmatprep.subr.mxu0 0.0
        %5150 = vmatpush1.msra.mxu0 %v4695
        %5151 = vmatprep.subr.mxu0 0.0
        %5152 = vmatpush1.msra.mxu0 %v4694
        %5153 = vmatprep.subr.mxu0 0.0
        %5154 = vmatpush1.msra.mxu0 %v4693
        %5155 = vmatprep.subr.mxu0 0.0
        %5156 = vmatpush1.msra.mxu0 %v4692
        %5157 = vmatprep.subr.mxu0 0.0
        %5158 = vmatpush1.msra.mxu0 %v4691
        %5159 = vmatprep.subr.mxu0 0.0
        %5160 = vmatpush1.msra.mxu0 %v4690
        %5161 = vmatprep.subr.mxu0 0.0
        %5162 = vmatpush1.msra.mxu0 %v4689
        %5163 = vmatprep.subr.mxu0 0.0
        %5164 = vmatpush1.msra.mxu0 %v4688
        %5165 = vmatprep.subr.mxu0 0.0
        %5166 = vmatpush1.msra.mxu0 %v4687
        %5167 = vmatprep.subr.mxu0 0.0
        %5168 = vmatpush1.msra.mxu0 %v4686
        %5169 = vmatprep.subr.mxu0 0.0
        %5170 = vmatpush1.msra.mxu0 %v4685
        %5171 = vmatprep.subr.mxu0 0.0
        %5172 = vmatpush2.msra.mxu0 %v4716
        %5173 = vmatprep.subr.mxu0 0.0
        %5174 = vmatpush2.msra.mxu0 %v4715
        %5175 = vmatprep.subr.mxu0 0.0
        %5176 = vmatpush2.msra.mxu0 %v4714
        %5177 = vmatprep.subr.mxu0 0.0
        %5178 = vmatpush2.msra.mxu0 %v4713
        %5179 = vmatprep.subr.mxu0 0.0
        %5180 = vmatpush2.msra.mxu0 %v4712
        %5181 = vmatprep.subr.mxu0 0.0
        %5182 = vmatpush2.msra.mxu0 %v4711
        %5183 = vmatprep.subr.mxu0 0.0
        %5184 = vmatpush2.msra.mxu0 %v4710
        %5185 = vmatprep.subr.mxu0 0.0
        %5186 = vmatpush2.msra.mxu0 %v4709
        %5187 = vmatprep.subr.mxu0 0.0
        %5188 = vmatpush2.msra.mxu0 %v4708
        %5189 = vmatprep.subr.mxu0 0.0
        %5190 = vmatpush2.msra.mxu0 %v4707
        %5191 = vmatprep.subr.mxu0 0.0
        %5192 = vmatpush2.msra.mxu0 %v4706
        %5193 = vmatprep.subr.mxu0 0.0
        %5194 = vmatpush2.msra.mxu0 %v4705
        %5195 = vmatprep.subr.mxu0 0.0
        %5196 = vmatpush2.msra.mxu0 %v4704
        %5197 = vmatprep.subr.mxu0 0.0
        %5198 = vmatpush2.msra.mxu0 %v4703
        %5199 = vmatprep.subr.mxu0 0.0
        %5200 = vmatpush2.msra.mxu0 %v4702
        %5201 = vmatprep.subr.mxu0 0.0
        %5202 = vmatpush2.msra.mxu0 %v4701
        %5203 = vmatprep.mubr.f32.mxu0 %v4519
        %5204 = vmatmul.mubr.f32.gmra.mxu0 %v4518
        %v5205 = vpop.f32.mrf.mxu0
        %v5206 = vadd.f32 %v5136, %v5205
        %v5207 = vpop.f32.mrf.mxu0
        %5208 = vdwg.mxu0
        %5209 = vmatprep.subr.mxu0 0.0
        %5210 = vmatpush1.msra.mxu0 %v4732
        %5211 = vmatprep.subr.mxu0 0.0
        %5212 = vmatpush1.msra.mxu0 %v4731
        %5213 = vmatprep.subr.mxu0 0.0
        %5214 = vmatpush1.msra.mxu0 %v4730
        %5215 = vmatprep.subr.mxu0 0.0
        %5216 = vmatpush1.msra.mxu0 %v4729
        %5217 = vmatprep.subr.mxu0 0.0
        %5218 = vmatpush1.msra.mxu0 %v4728
        %5219 = vmatprep.subr.mxu0 0.0
        %5220 = vmatpush1.msra.mxu0 %v4727
        %5221 = vmatprep.subr.mxu0 0.0
        %5222 = vmatpush1.msra.mxu0 %v4726
        %5223 = vmatprep.subr.mxu0 0.0
        %5224 = vmatpush1.msra.mxu0 %v4725
        %5225 = vmatprep.subr.mxu0 0.0
        %5226 = vmatpush1.msra.mxu0 %v4724
        %5227 = vmatprep.subr.mxu0 0.0
        %5228 = vmatpush1.msra.mxu0 %v4723
        %5229 = vmatprep.subr.mxu0 0.0
        %5230 = vmatpush1.msra.mxu0 %v4722
        %5231 = vmatprep.subr.mxu0 0.0
        %5232 = vmatpush1.msra.mxu0 %v4721
        %5233 = vmatprep.subr.mxu0 0.0
        %5234 = vmatpush1.msra.mxu0 %v4720
        %5235 = vmatprep.subr.mxu0 0.0
        %5236 = vmatpush1.msra.mxu0 %v4719
        %5237 = vmatprep.subr.mxu0 0.0
        %5238 = vmatpush1.msra.mxu0 %v4718
        %5239 = vmatprep.subr.mxu0 0.0
        %5240 = vmatpush1.msra.mxu0 %v4717
        %5241 = vmatprep.subr.mxu0 0.0
        %5242 = vmatpush2.msra.mxu0 %v4748
        %5243 = vmatprep.subr.mxu0 0.0
        %5244 = vmatpush2.msra.mxu0 %v4747
        %5245 = vmatprep.subr.mxu0 0.0
        %5246 = vmatpush2.msra.mxu0 %v4746
        %5247 = vmatprep.subr.mxu0 0.0
        %5248 = vmatpush2.msra.mxu0 %v4745
        %5249 = vmatprep.subr.mxu0 0.0
        %5250 = vmatpush2.msra.mxu0 %v4744
        %5251 = vmatprep.subr.mxu0 0.0
        %5252 = vmatpush2.msra.mxu0 %v4743
        %5253 = vmatprep.subr.mxu0 0.0
        %5254 = vmatpush2.msra.mxu0 %v4742
        %5255 = vmatprep.subr.mxu0 0.0
        %5256 = vmatpush2.msra.mxu0 %v4741
        %5257 = vmatprep.subr.mxu0 0.0
        %5258 = vmatpush2.msra.mxu0 %v4740
        %5259 = vmatprep.subr.mxu0 0.0
        %5260 = vmatpush2.msra.mxu0 %v4739
        %5261 = vmatprep.subr.mxu0 0.0
        %5262 = vmatpush2.msra.mxu0 %v4738
        %5263 = vmatprep.subr.mxu0 0.0
        %5264 = vmatpush2.msra.mxu0 %v4737
        %5265 = vmatprep.subr.mxu0 0.0
        %5266 = vmatpush2.msra.mxu0 %v4736
        %5267 = vmatprep.subr.mxu0 0.0
        %5268 = vmatpush2.msra.mxu0 %v4735
        %5269 = vmatprep.subr.mxu0 0.0
        %5270 = vmatpush2.msra.mxu0 %v4734
        %5271 = vmatprep.subr.mxu0 0.0
        %5272 = vmatpush2.msra.mxu0 %v4733
        %5273 = vmatprep.mubr.f32.mxu0 %v4521
        %5274 = vmatmul.mubr.f32.gmra.mxu0 %v4520
        %v5275 = vpop.f32.mrf.mxu0
        %v5276 = vadd.f32 %v5206, %v5275
        %v5277 = vpop.f32.mrf.mxu0
        %5278 = vdwg.mxu0
        %5279 = vmatprep.subr.mxu0 0.0
        %5280 = vmatpush1.msra.mxu0 %v4764
        %5281 = vmatprep.subr.mxu0 0.0
        %5282 = vmatpush1.msra.mxu0 %v4763
        %5283 = vmatprep.subr.mxu0 0.0
        %5284 = vmatpush1.msra.mxu0 %v4762
        %5285 = vmatprep.subr.mxu0 0.0
        %5286 = vmatpush1.msra.mxu0 %v4761
        %5287 = vmatprep.subr.mxu0 0.0
        %5288 = vmatpush1.msra.mxu0 %v4760
        %5289 = vmatprep.subr.mxu0 0.0
        %5290 = vmatpush1.msra.mxu0 %v4759
        %5291 = vmatprep.subr.mxu0 0.0
        %5292 = vmatpush1.msra.mxu0 %v4758
        %5293 = vmatprep.subr.mxu0 0.0
        %5294 = vmatpush1.msra.mxu0 %v4757
        %5295 = vmatprep.subr.mxu0 0.0
        %5296 = vmatpush1.msra.mxu0 %v4756
        %5297 = vmatprep.subr.mxu0 0.0
        %5298 = vmatpush1.msra.mxu0 %v4755
        %5299 = vmatprep.subr.mxu0 0.0
        %5300 = vmatpush1.msra.mxu0 %v4754
        %5301 = vmatprep.subr.mxu0 0.0
        %5302 = vmatpush1.msra.mxu0 %v4753
        %5303 = vmatprep.subr.mxu0 0.0
        %5304 = vmatpush1.msra.mxu0 %v4752
        %5305 = vmatprep.subr.mxu0 0.0
        %5306 = vmatpush1.msra.mxu0 %v4751
        %5307 = vmatprep.subr.mxu0 0.0
        %5308 = vmatpush1.msra.mxu0 %v4750
        %5309 = vmatprep.subr.mxu0 0.0
        %5310 = vmatpush1.msra.mxu0 %v4749
        %5311 = vmatprep.subr.mxu0 0.0
        %5312 = vmatpush2.msra.mxu0 %v4780
        %5313 = vmatprep.subr.mxu0 0.0
        %5314 = vmatpush2.msra.mxu0 %v4779
        %5315 = vmatprep.subr.mxu0 0.0
        %5316 = vmatpush2.msra.mxu0 %v4778
        %5317 = vmatprep.subr.mxu0 0.0
        %5318 = vmatpush2.msra.mxu0 %v4777
        %5319 = vmatprep.subr.mxu0 0.0
        %5320 = vmatpush2.msra.mxu0 %v4776
        %5321 = vmatprep.subr.mxu0 0.0
        %5322 = vmatpush2.msra.mxu0 %v4775
        %5323 = vmatprep.subr.mxu0 0.0
        %5324 = vmatpush2.msra.mxu0 %v4774
        %5325 = vmatprep.subr.mxu0 0.0
        %5326 = vmatpush2.msra.mxu0 %v4773
        %5327 = vmatprep.subr.mxu0 0.0
        %5328 = vmatpush2.msra.mxu0 %v4772
        %5329 = vmatprep.subr.mxu0 0.0
        %5330 = vmatpush2.msra.mxu0 %v4771
        %5331 = vmatprep.subr.mxu0 0.0
        %5332 = vmatpush2.msra.mxu0 %v4770
        %5333 = vmatprep.subr.mxu0 0.0
        %5334 = vmatpush2.msra.mxu0 %v4769
        %5335 = vmatprep.subr.mxu0 0.0
        %5336 = vmatpush2.msra.mxu0 %v4768
        %5337 = vmatprep.subr.mxu0 0.0
        %5338 = vmatpush2.msra.mxu0 %v4767
        %5339 = vmatprep.subr.mxu0 0.0
        %5340 = vmatpush2.msra.mxu0 %v4766
        %5341 = vmatprep.subr.mxu0 0.0
        %5342 = vmatpush2.msra.mxu0 %v4765
        %5343 = vmatprep.mubr.f32.mxu0 %v4523
        %5344 = vmatmul.mubr.f32.gmra.mxu0 %v4522
        %v5345 = vpop.f32.mrf.mxu0
        %v5346 = vadd.f32 %v5276, %v5345
        %v5347 = vpop.f32.mrf.mxu0
        %5348 = vdwg.mxu0
        %v5349 = vadd.f32 %v3786, %v5346
        %s5350 = scalar_lea.vmem %s11, 1
        %v5351 = vld [vmem:[%s5350] sm:$0x1]
        %s5352 = scalar_lea.vmem %s12, 1
        %v5353 = vld [vmem:[%s5352] sm:$0x1]
        %v5354 = vsel %vm447, %v5349, 0.0
        %5355 = vadd.xlane.f32.xlu0 %v5354
        %v5356 = vpop.xlane.xlu0 %5355
        %v5357 = vmul.f32 %v5356, %v1292
        %v5358 = vsub.f32 %v5349, %v5357
        %v5359 = vmul.f32 %v5358, %v5358
        %v5360 = vsel %vm447, %v5359, 0.0
        %5361 = vadd.xlane.f32.xlu0 %v5360
        %v5362 = vpop.xlane.xlu0 %5361
        %v5363 = vmul.f32 %v5362, %v1292
        %v5364 = vadd.f32 %v5363, 1e-05
        %v5365 = vrsqrt.pop %v5364
        %v5366 = vmul.f32 %v5358, %v5365
        %v5368 = vlaneseq
        %v5369 = vshrl.u32 %v5368, 7
        %v5370 = vsub.s32 0, %v5369
        %v5371 = vrot.slane %v5351, %v5370
        %v5373 = vmul.f32 %v5366, %v5371
        %v5375 = vlaneseq
        %v5376 = vshrl.u32 %v5375, 7
        %v5377 = vsub.s32 0, %v5376
        %v5378 = vrot.slane %v5353, %v5377
        %v5380 = vadd.f32 %v5373, %v5378
        %vm5381 = vcmask 261127
        %5382 = vst.msk [vmem:[%s430 - $0x7] sm:$0x80] %vm5381, %v5380
        %s5383 = sand.u32 %s313, 1
        %s5384 = scalar_lea.sflag [#allocation3], %s5383
        %s5385 = sand.u32 %s313, 1
        %s5386 = scalar_lea.vmem [#allocation2], %s5385
        // Predicated region
        $region73: #{tpu_custom_call.1} parent=71 // pred_check
          %p5387 = pneg %p323
        $region74: #{tpu_custom_call.1} parent=71 // pred_check_branch
          %5389 = sbr.rel (%p5387) target = $region76
        $region75: #{tpu_custom_call.1} parent=71 // pred_region
          %s5391 = ssub.s32 16, 16
          %5392 = vsyncadd %s5384, %s5391
          %s5393 = smul.addr %s27, 16
          %s5394 = scalar_lea.hbm %s13, %s5393
          %s5396 = sshll.u32 %s5386, 4
          %s5397 = int_to_ptr.vmem [resolvable:$true] %s5396
          %5399 = dma.vmem_to_hbm [thread:$0]  %s5397, 16, %s5394, %s5384
        $region76: #{tpu_custom_call.1} parent=71 // pred_fallthru
          _
      $region72: #{tpu_custom_call.1} parent=5 // pred_fallthru
        _
      %p5400 = scmp.le.s32.totalorder 2, %s22
      // Predicated region
      $region77: #{tpu_custom_call.1} parent=5 // pred_check
        %p5401 = pneg %p5400
      $region78: #{tpu_custom_call.1} parent=5 // pred_check_branch
        %5403 = sbr.rel (%p5401) target = $region80
      $region79: #{tpu_custom_call.1} parent=5 // pred_region
        %s5404 = ssub.s32 %s22, 2
        // Predicated region
        $region81: #{tpu_custom_call.1} parent=79 // pred_check
          %p5405 = pneg %p329
        $region82: #{tpu_custom_call.1} parent=79 // pred_check_branch
          %5407 = sbr.rel (%p5405) target = $region84
        $region83: #{tpu_custom_call.1} parent=79 // pred_region
          %s5408 = sand.u32 %s314, 1
          %s5409 = scalar_lea.sflag [#allocation3], %s5408
          %s5410 = sand.u32 %s314, 1
          %s5411 = scalar_lea.vmem [#allocation2], %s5410
          %5412 = dma.done %s5409, 16
        $region84: #{tpu_custom_call.1} parent=79 // pred_fallthru
          _
      $region80: #{tpu_custom_call.1} parent=5 // pred_fallthru
        _
    $region6: #{tpu_custom_call.1} parent=1 // loop_footer
      %s26 = sadd.s32 1, %s22
    $region7: #{tpu_custom_call.1} parent=1 // loop_footer_branch
      %21 = sbr.rel target = $region3
    $region8: #{tpu_custom_call.1} parent=1 // loop_exit
      _
    %5413 = vsyncpa [#allocation3], 1
    %s5414 = scalar_lea.sflag [#allocation3], 1
    %5415 = vsyncpa %s5414, 1

</llo_original>
